<compile_context>
chip_gen: v7x
topology: tpu7x:2x2x1
jax: 0.10.0
libtpu: 0.0.40
codegen_flags: <defaults>
</compile_context>

<pallas_src>
import functools
import math

import jax
import jax.numpy as jnp
from jax.experimental import pallas as pl
from jax.experimental.pallas import tpu as pltpu


_LN_EPS = 1e-12


# ----------------------------------------------------------------------------
# Per-chip knobs (v5e/v6e: 128 MiB VMEM; v7x: 64 MiB)
# ----------------------------------------------------------------------------
@functools.lru_cache(maxsize=None)
def _vmem_limit_bytes():
    try:
        cap = pltpu.get_tpu_info().vmem_capacity_bytes
        # 96 MiB on v5e/v6e (128 MiB physical), 48 MiB on v7x (64 MiB physical)
        return int(min(96 * 1024 * 1024, (cap * 3) // 4))
    except Exception:
        return 32 * 1024 * 1024  # conservative: fits every current part


@functools.lru_cache(maxsize=None)
def _max_row_tile():
    # v5e/v6e: 1024-row tiles amortize per-grid-step overhead on mem-bound
    # stages; v7x: cap at 512 (weights are single-buffered, see _const_spec).
    return 1024 if _vmem_limit_bytes() >= 64 * 1024 * 1024 else 512


def _compiler_params(semantics=("parallel",)):
    return pltpu.CompilerParams(
        dimension_semantics=semantics,
        vmem_limit_bytes=_vmem_limit_bytes(),
    )


@functools.lru_cache(maxsize=None)
def _single_buffer_mode():
    """pl.Buffered(1) if this jax build supports single-buffered constant blocks
    (probed with a tiny kernel); None -> fall back to default double-buffering."""
    try:
        mode = pl.Buffered(1)

        def k(x_ref, w_ref, o_ref):
            o_ref[...] = x_ref[...] + w_ref[...]

        f = pl.pallas_call(
            k,
            grid=(2,),
            out_shape=jax.ShapeDtypeStruct((16, 128), jnp.float32),
            in_specs=[
                pl.BlockSpec((8, 128), lambda i: (i, 0)),
                pl.BlockSpec((8, 128), lambda i: (0, 0), pipeline_mode=mode),
            ],
            out_specs=pl.BlockSpec((8, 128), lambda i: (i, 0)),
        )
        x = jnp.arange(16 * 128, dtype=jnp.float32).reshape(16, 128)
        w = jnp.ones((8, 128), jnp.float32)
        out = jax.block_until_ready(f(x, w))
        if not bool(jnp.allclose(out, x + 1.0)):
            return None
        return mode
    except Exception:
        return None


def _const_spec(shape):
    """BlockSpec for grid-invariant inputs (weights / biases / LN params): same
    block every grid step, single-buffered when supported so the default
    double-buffering does not waste VMEM (matters most on v7x's 64 MiB)."""
    idx = lambda *args: (0,) * len(shape)
    mode = _single_buffer_mode()
    if mode is None:
        return pl.BlockSpec(shape, idx)
    return pl.BlockSpec(shape, idx, pipeline_mode=mode)


def _row_tile(M):
    if M <= 128:
        return M  # single full block (block dim equals full array dim -> valid)
    t = _max_row_tile()
    while t > 128 and t > M:
        t //= 2
    return t


def _pad_rows(x, tile):
    """Pad the row axis up to a multiple of `tile` (no full-M fallback)."""
    M = x.shape[0]
    Mp = ((M + tile - 1) // tile) * tile
    if Mp == M:
        return x
    return jnp.pad(x, ((0, Mp - M), (0, 0)))


def _layernorm_f32(y, gamma, beta, eps):
    mu = jnp.mean(y, axis=-1, keepdims=True)
    var = jnp.mean((y - mu) ** 2, axis=-1, keepdims=True)
    return (y - mu) * jax.lax.rsqrt(var + eps) * gamma + beta


# ----------------------------------------------------------------------------
# Kernels
# ----------------------------------------------------------------------------
def _embed_ln_kernel(w_ref, p_ref, t_ref, g_ref, b_ref, o_ref, *, eps):
    """word + position + token-type embedding adds fused with LayerNorm: the
    summed f32 activation never round-trips HBM."""
    y = w_ref[0].astype(jnp.float32) + p_ref[...] + t_ref[...]
    o_ref[0] = _layernorm_f32(y, g_ref[...], b_ref[...], eps).astype(o_ref.dtype)


def _attn_block_kernel(x_ref, wqkv_ref, bqkv_ref, wo_ref, bo_ref, g_ref, b_ref,
                       o_ref, *, nh, dh, scale, eps):
    """Fused QKV proj + batched-over-heads MHA + out proj + residual + LayerNorm
    for one batch element.  q/k/v and the per-head score tiles stay in VMEM."""
    H = nh * dh
    x = x_ref[0]                                                    # (S, H) bf16
    S = x.shape[0]

    # fused QKV projection: one lane-dense (H, 3H) MXU matmul
    qkv = jnp.dot(x, wqkv_ref[...], preferred_element_type=jnp.float32) + bqkv_ref[...]
    # H is a multiple of 128 at real scale, so these lane slices are aligned.
    q = qkv[:, :H].astype(jnp.bfloat16).reshape(S, nh, dh)
    k = qkv[:, H:2 * H].astype(jnp.bfloat16).reshape(S, nh, dh)
    v = qkv[:, 2 * H:].astype(jnp.bfloat16).reshape(S, nh, dh)

    # Batched-over-heads score matmul (contraction depth K = dh is the weakest
    # MXU shape in the model; batching keeps vmatmuls back-to-back with no
    # per-head issue gaps and no Python list / concat).
    s = jnp.einsum('qhd,khd->hqk', q, k,
                   preferred_element_type=jnp.float32) * scale      # (nh, S, S) f32
    s = s - jnp.max(s, axis=-1, keepdims=True)
    p = jnp.exp(s)                                                  # f32 (EUP)
    p = p * pl.reciprocal(jnp.sum(p, axis=-1, keepdims=True), approx=True)

    ctx = jnp.einsum('hqk,khd->qhd', p.astype(jnp.bfloat16), v,
                     preferred_element_type=jnp.float32)            # (S, nh, dh) f32
    ctx = ctx.reshape(S, H).astype(jnp.bfloat16)

    attn = jnp.dot(ctx, wo_ref[...], preferred_element_type=jnp.float32) + bo_ref[...]
    y = x.astype(jnp.float32) + attn                                # residual
    o_ref[0] = _layernorm_f32(y, g_ref[...], b_ref[...], eps).astype(o_ref.dtype)


def _ffn_block_kernel(x_ref, w1_ref, b1_ref, w2_ref, b2_ref, g_ref, b_ref,
                      o_ref, *, eps):
    """Fused FFN1 + GELU + FFN2 + residual + LayerNorm; (tm, I) stays in VMEM."""
    x = x_ref[...]                                                  # (tm, H) bf16
    h = jnp.dot(x, w1_ref[...], preferred_element_type=jnp.float32) + b1_ref[...]
    # TODO(synk): HF BERT uses exact erf-GELU; tanh approximation kept for robust lowering.
    h = jax.nn.gelu(h, approximate=True)
    f = jnp.dot(h.astype(jnp.bfloat16), w2_ref[...],
                preferred_element_type=jnp.float32) + b2_ref[...]
    y = x.astype(jnp.float32) + f                                   # residual
    o_ref[...] = _layernorm_f32(y, g_ref[...], b_ref[...], eps).astype(o_ref.dtype)


def _head_kernel(x_ref, wp_ref, bp_ref, w1_ref, b1_ref, w2_ref, b2_ref, o_ref):
    """Fused pooler (tanh Linear) + classifier_3 (Linear -> ReLU -> Linear)."""
    x = x_ref[...]                                                  # (B, H) bf16
    pooled = jnp.tanh(jnp.dot(x, wp_ref[...],
                              preferred_element_type=jnp.float32) + bp_ref[...])
    hid = jnp.maximum(
        jnp.dot(pooled.astype(jnp.bfloat16), w1_ref[...],
                preferred_element_type=jnp.float32) + b1_ref[...], 0.0)
    o_ref[...] = jnp.dot(hid.astype(jnp.bfloat16), w2_ref[...],
                         preferred_element_type=jnp.float32) + b2_ref[...]


# ----------------------------------------------------------------------------
# pallas_call wrappers
# ----------------------------------------------------------------------------
def pallas_embeddings(word, pos, type_row, gamma, beta, *, eps=_LN_EPS,
                      out_dtype=jnp.bfloat16):
    B, S, H = word.shape
    return pl.pallas_call(
        functools.partial(_embed_ln_kernel, eps=eps),
        grid=(B,),
        out_shape=jax.ShapeDtypeStruct((B, S, H), out_dtype),
        in_specs=[
            pl.BlockSpec((1, S, H), lambda b: (b, 0, 0)),
            _const_spec((S, H)),
            _const_spec((1, H)),
            _const_spec((1, H)),
            _const_spec((1, H)),
        ],
        out_specs=pl.BlockSpec((1, S, H), lambda b: (b, 0, 0)),
        compiler_params=_compiler_params(("parallel",)),
    )(word, pos, type_row, gamma, beta)


def pallas_attention_block(x_bsh, wqkv, bqkv, wo, bo, gamma, beta, *,
                           num_heads, eps=_LN_EPS):
    B, S, H = x_bsh.shape
    dh = H // num_heads
    scale = 1.0 / math.sqrt(dh)
    kernel = functools.partial(_attn_block_kernel, nh=num_heads, dh=dh,
                               scale=scale, eps=eps)
    # TODO(synk): on v7x with B == 1 (or small odd B) add a second parallel axis
    # (q-row tile of 128) so both TensorCores stay busy; grid=(B,) suffices here.
    return pl.pallas_call(
        kernel,
        grid=(B,),
        out_shape=jax.ShapeDtypeStruct((B, S, H), x_bsh.dtype),
        in_specs=[
            pl.BlockSpec((1, S, H), lambda b: (b, 0, 0)),
            _const_spec((H, 3 * H)),      # weights stay resident, single-buffered
            _const_spec((1, 3 * H)),
            _const_spec((H, H)),
            _const_spec((1, H)),
            _const_spec((1, H)),
            _const_spec((1, H)),
        ],
        out_specs=pl.BlockSpec((1, S, H), lambda b: (b, 0, 0)),
        compiler_params=_compiler_params(("parallel",)),
    )(x_bsh, wqkv, bqkv, wo, bo, gamma, beta)


def pallas_ffn_block(x, w1, b1, w2, b2, gamma, beta, *, eps=_LN_EPS):
    M, H = x.shape
    I = w1.shape[1]
    tm = _row_tile(M)
    xp = _pad_rows(x, tm)
    Mp = xp.shape[0]
    out = pl.pallas_call(
        functools.partial(_ffn_block_kernel, eps=eps),
        grid=(Mp // tm,),
        out_shape=jax.ShapeDtypeStruct((Mp, H), x.dtype),
        in_specs=[
            pl.BlockSpec((tm, H), lambda i: (i, 0)),
            _const_spec((H, I)),          # weights stay resident, single-buffered
            _const_spec((1, I)),
            _const_spec((I, H)),
            _const_spec((1, H)),
            _const_spec((1, H)),
            _const_spec((1, H)),
        ],
        out_specs=pl.BlockSpec((tm, H), lambda i: (i, 0)),
        compiler_params=_compiler_params(("parallel",)),
    )(xp, w1, b1, w2, b2, gamma, beta)
    return out[:M] if Mp != M else out


def pallas_pooler_classifier(cls_tok, wp, bp, w1, b1, w2p, b2p, num_classes):
    B, H = cls_tok.shape
    Ch = w1.shape[1]
    Cp = w2p.shape[1]   # lane-dense padded class dim (multiple of 128)
    logits_padded = pl.pallas_call(
        _head_kernel,
        grid=(1,),
        out_shape=jax.ShapeDtypeStruct((B, Cp), jnp.float32),
        in_specs=[
            pl.BlockSpec((B, H), lambda i: (0, 0)),
            pl.BlockSpec((H, H), lambda i: (0, 0)),
            pl.BlockSpec((1, H), lambda i: (0, 0)),
            pl.BlockSpec((H, Ch), lambda i: (0, 0)),
            pl.BlockSpec((1, Ch), lambda i: (0, 0)),
            pl.BlockSpec((Ch, Cp), lambda i: (0, 0)),
            pl.BlockSpec((1, Cp), lambda i: (0, 0)),
        ],
        out_specs=pl.BlockSpec((B, Cp), lambda i: (0, 0)),
        compiler_params=_compiler_params(("arbitrary",)),
    )(cls_tok, wp, bp, w1, b1, w2p, b2p)
    return logits_padded[:, :num_classes]


# ----------------------------------------------------------------------------
# Deterministic parameter construction (synthetic, BERT-like shapes)
# ----------------------------------------------------------------------------
def _dense(key, fan_in, fan_out):
    w = (0.02 * jax.random.normal(key, (fan_in, fan_out), jnp.float32)).astype(jnp.bfloat16)
    b = jnp.zeros((1, fan_out), jnp.float32)
    return (w, b)


def _ln_params(H):
    return (jnp.ones((1, H), jnp.float32), jnp.zeros((1, H), jnp.float32))


def make_params(cfg, key):
    H, I = cfg["hidden"], cfg["intermediate"]
    keys = iter(jax.random.split(key, 64))
    params = {
        "word_emb": 0.02 * jax.random.normal(next(keys), (cfg["vocab"], H), jnp.float32),
        "pos_emb": 0.02 * jax.random.normal(next(keys), (cfg["max_pos"], H), jnp.float32),
        "type_emb": 0.02 * jax.random.normal(next(keys), (2, H), jnp.float32),
        "emb_ln": _ln_params(H),
        "layers": [],
    }
    for _ in range(cfg["layers"]):
        params["layers"].append({
            "qkv": _dense(next(keys), H, 3 * H),   # fused [Wq | Wk | Wv]
            "o": _dense(next(keys), H, H),
            "ln1": _ln_params(H),
            "ffn1": _dense(next(keys), H, I),
            "ffn2": _dense(next(keys), I, H),
            "ln2": _ln_params(H),
        })
    params["pooler"] = _dense(next(keys), H, H)
    # classifier_3 = Linear(hidden, cls_hidden) -> ReLU -> Linear(cls_hidden, num_classes)
    params["cls1"] = _dense(next(keys), H, cfg["cls_hidden"])
    w2, b2 = _dense(next(keys), cfg["cls_hidden"], cfg["num_classes"])
    # pad the final projection to a lane-dense 128-wide slab (zeros in the pad)
    Cp = max(128, ((cfg["num_classes"] + 127) // 128) * 128)
    w2p = jnp.zeros((cfg["cls_hidden"], Cp), jnp.bfloat16).at[:, :cfg["num_classes"]].set(w2)
    b2p = jnp.zeros((1, Cp), jnp.float32).at[:, :cfg["num_classes"]].set(b2)
    params["cls2"] = (w2p, b2p)
    return params


# ----------------------------------------------------------------------------
# Forward pass: BertModel(batch).pooler_output -> classifier_3
# ----------------------------------------------------------------------------
def task_prediction_obj_target(params, input_ids, cfg):
    B, S = input_ids.shape
    H = cfg["hidden"]
    NH = cfg["heads"]

    # --- BERT embeddings: gathers are plain-JAX glue; adds + LayerNorm fused
    #     in one kernel.  input_ids only -> implicit all-ones attention mask,
    #     token_type_ids == 0 (row 0 of the type table), matching HF defaults.
    word = params["word_emb"][input_ids]           # (B, S, H) f32 gather
    pos = params["pos_emb"][:S]                    # (S, H) f32
    typ = params["type_emb"][0:1]                  # (1, H) f32
    x = pallas_embeddings(word, pos, typ, *params["emb_ln"])       # (B, S, H) bf16

    # --- transformer encoder: 2 fused pallas_calls per layer
    for layer in params["layers"]:
        x = pallas_attention_block(
            x, *layer["qkv"], *layer["o"], *layer["ln1"], num_heads=NH)
        x = pallas_ffn_block(
            x.reshape(B * S, H), *layer["ffn1"], *layer["ffn2"], *layer["ln2"]
        ).reshape(B, S, H)

    # --- pooler_output (tanh Linear on token 0) + classifier_3, fused
    cls_tok = x[:, 0, :]                                            # (B, H) bf16
    logits = pallas_pooler_classifier(cls_tok, *params["pooler"], *params["cls1"],
                                      *params["cls2"], cfg["num_classes"])
    return logits


# ----------------------------------------------------------------------------
if __name__ == "__main__":
    cfg = dict(
        vocab=100,
        hidden=32,        # stands in for 768
        intermediate=64,  # stands in for 3072
        heads=4,
        layers=2,
        max_pos=16,
        cls_hidden=16,    # stands in for 256
        num_classes=12,   # stands in for len(obj_target_to_idx)
    )
    B, S = 2, 8

    # Warm the runtime probes (per-chip VMEM knobs, Buffered(1) support) once,
    # outside of the jitted forward.
    _vmem_limit_bytes()
    _single_buffer_mode()

    key = jax.random.PRNGKey(0)
    k_ids, k_params = jax.random.split(key)
    input_ids = jax.random.randint(k_ids, (B, S), 0, cfg["vocab"], dtype=jnp.int32)
    params = make_params(cfg, k_params)

    fwd = jax.jit(functools.partial(task_prediction_obj_target, cfg=cfg))
    logits = fwd(params, input_ids)
    jax.block_until_ready(logits)
    assert logits.shape == (B, cfg["num_classes"])
    assert logits.dtype == jnp.float32
    print("KERNEL_OK")
</pallas_src>

<mosaic_0001>
module attributes {stable_mosaic.version = 11 : i64} {
  func.func @k(%arg0: i32, %arg1: memref<8x128xf32, #tpu.memory_space<vmem>>, %arg2: memref<8x128xf32, #tpu.memory_space<vmem>>, %arg3: memref<8x128xf32, #tpu.memory_space<vmem>>) attributes {dimension_semantics = [#tpu.dimension_semantics<arbitrary>], iteration_bounds = array<i64: 2>, scalar_prefetch = 0 : i64, scratch_operands = 0 : i64, tpu.core_type = #tpu.core_type<tc>, window_params = [{transform_indices = @transform_0, window_bounds = array<i64: 8, 128>}, {pipeline_mode = #tpu.pipeline_mode<synchronous>, transform_indices = @transform_1, window_bounds = array<i64: 8, 128>}, {transform_indices = @transform_2, window_bounds = array<i64: 8, 128>}]} {
    %c0 = arith.constant 0 : index
    %c0_0 = arith.constant 0 : index
    %0 = vector.load %arg1[%c0, %c0_0] : memref<8x128xf32, #tpu.memory_space<vmem>>, vector<8x128xf32>
    %c0_1 = arith.constant 0 : index
    %c0_2 = arith.constant 0 : index
    %1 = vector.load %arg2[%c0_1, %c0_2] : memref<8x128xf32, #tpu.memory_space<vmem>>, vector<8x128xf32>
    %2 = arith.addf %0, %1 : vector<8x128xf32>
    %c0_3 = arith.constant 0 : index
    %c0_4 = arith.constant 0 : index
    %3 = vector.load %arg3[%c0_3, %c0_4] : memref<8x128xf32, #tpu.memory_space<vmem>>, vector<8x128xf32>
    tpu.vector_store %arg3[%c0_3, %c0_4], %2 {strides = array<i32>} : memref<8x128xf32, #tpu.memory_space<vmem>>, vector<8x128xf32>,
    return
  }
  func.func @transform_0(%arg0: i32) -> (i32, i32) {
    %c0_i32 = arith.constant 0 : i32
    %c0_i32_0 = arith.constant 0 : i32
    return %arg0, %c0_i32 : i32, i32
  }
  func.func @transform_1(%arg0: i32) -> (i32, i32) {
    %c0_i32 = arith.constant 0 : i32
    %c0_i32_0 = arith.constant 0 : i32
    %c0_i32_1 = arith.constant 0 : i32
    return %c0_i32, %c0_i32_0 : i32, i32
  }
  func.func @transform_2(%arg0: i32) -> (i32, i32) {
    %c0_i32 = arith.constant 0 : i32
    %c0_i32_0 = arith.constant 0 : i32
    return %arg0, %c0_i32 : i32, i32
  }
}

module attributes {stable_mosaic.version = 11 : i64} {
  func.func @_head_kernel(%arg0: i32, %arg1: memref<2x32xbf16, #tpu.memory_space<vmem>>, %arg2: memref<32x32xbf16, #tpu.memory_space<vmem>>, %arg3: memref<1x32xf32, #tpu.memory_space<vmem>>, %arg4: memref<32x16xbf16, #tpu.memory_space<vmem>>, %arg5: memref<1x16xf32, #tpu.memory_space<vmem>>, %arg6: memref<16x128xbf16, #tpu.memory_space<vmem>>, %arg7: memref<1x128xf32, #tpu.memory_space<vmem>>, %arg8: memref<2x128xf32, #tpu.memory_space<vmem>>) attributes {dimension_semantics = [#tpu.dimension_semantics<arbitrary>], iteration_bounds = array<i64: 1>, scalar_prefetch = 0 : i64, scratch_operands = 0 : i64, tpu.core_type = #tpu.core_type<tc>, window_params = [{pipeline_mode = #tpu.pipeline_mode<synchronous>, transform_indices = @transform_0, window_bounds = array<i64: 2, 32>}, {pipeline_mode = #tpu.pipeline_mode<synchronous>, transform_indices = @transform_1, window_bounds = array<i64: 32, 32>}, {pipeline_mode = #tpu.pipeline_mode<synchronous>, transform_indices = @transform_2, window_bounds = array<i64: 1, 32>}, {pipeline_mode = #tpu.pipeline_mode<synchronous>, transform_indices = @transform_3, window_bounds = array<i64: 32, 16>}, {pipeline_mode = #tpu.pipeline_mode<synchronous>, transform_indices = @transform_4, window_bounds = array<i64: 1, 16>}, {pipeline_mode = #tpu.pipeline_mode<synchronous>, transform_indices = @transform_5, window_bounds = array<i64: 16, 128>}, {pipeline_mode = #tpu.pipeline_mode<synchronous>, transform_indices = @transform_6, window_bounds = array<i64: 1, 128>}, {pipeline_mode = #tpu.pipeline_mode<synchronous>, transform_indices = @transform_7, window_bounds = array<i64: 2, 128>}]} {
    %c0 = arith.constant 0 : index
    %c0_0 = arith.constant 0 : index
    %0 = vector.load %arg1[%c0, %c0_0] : memref<2x32xbf16, #tpu.memory_space<vmem>>, vector<2x32xbf16>
    %c0_1 = arith.constant 0 : index
    %c0_2 = arith.constant 0 : index
    %1 = vector.load %arg2[%c0_1, %c0_2] : memref<32x32xbf16, #tpu.memory_space<vmem>>, vector<32x32xbf16>
    %cst = arith.constant dense<0.000000e+00> : vector<2x32xf32>
    %2 = tpu.matmul %0, %1, %cst {dimension_numbers = #tpu.dot_dimension_numbers<[1], [0], [0], [1], [0, 0, 1, 1], [], []>} : vector<2x32xbf16>, vector<32x32xbf16>, vector<2x32xf32> -> vector<2x32xf32>
    %c0_3 = arith.constant 0 : index
    %c0_4 = arith.constant 0 : index
    %3 = vector.load %arg3[%c0_3, %c0_4] : memref<1x32xf32, #tpu.memory_space<vmem>>, vector<1x32xf32>
    %4 = vector.broadcast %3 : vector<1x32xf32> to vector<2x32xf32>
    %5 = arith.addf %2, %4 : vector<2x32xf32>
    %6 = math.tanh %5 : vector<2x32xf32>
    %7 = arith.truncf %6 : vector<2x32xf32> to vector<2x32xbf16>
    %c0_5 = arith.constant 0 : index
    %c0_6 = arith.constant 0 : index
    %8 = vector.load %arg4[%c0_5, %c0_6] : memref<32x16xbf16, #tpu.memory_space<vmem>>, vector<32x16xbf16>
    %cst_7 = arith.constant dense<0.000000e+00> : vector<2x16xf32>
    %9 = tpu.matmul %7, %8, %cst_7 {dimension_numbers = #tpu.dot_dimension_numbers<[1], [0], [0], [1], [0, 0, 1, 1], [], []>} : vector<2x32xbf16>, vector<32x16xbf16>, vector<2x16xf32> -> vector<2x16xf32>
    %c0_8 = arith.constant 0 : index
    %c0_9 = arith.constant 0 : index
    %10 = vector.load %arg5[%c0_8, %c0_9] : memref<1x16xf32, #tpu.memory_space<vmem>>, vector<1x16xf32>
    %11 = vector.broadcast %10 : vector<1x16xf32> to vector<2x16xf32>
    %12 = arith.addf %9, %11 : vector<2x16xf32>
    %cst_10 = arith.constant 0.000000e+00 : f32
    %13 = vector.broadcast %cst_10 : f32 to vector<2x16xf32>
    %14 = arith.maximumf %12, %13 : vector<2x16xf32>
    %15 = arith.truncf %14 : vector<2x16xf32> to vector<2x16xbf16>
    %c0_11 = arith.constant 0 : index
    %c0_12 = arith.constant 0 : index
    %16 = vector.load %arg6[%c0_11, %c0_12] : memref<16x128xbf16, #tpu.memory_space<vmem>>, vector<16x128xbf16>
    %cst_13 = arith.constant dense<0.000000e+00> : vector<2x128xf32>
    %17 = tpu.matmul %15, %16, %cst_13 {dimension_numbers = #tpu.dot_dimension_numbers<[1], [0], [0], [1], [0, 0, 1, 1], [], []>} : vector<2x16xbf16>, vector<16x128xbf16>, vector<2x128xf32> -> vector<2x128xf32>
    %c0_14 = arith.constant 0 : index
    %c0_15 = arith.constant 0 : index
    %18 = vector.load %arg7[%c0_14, %c0_15] : memref<1x128xf32, #tpu.memory_space<vmem>>, vector<1x128xf32>
    %19 = vector.broadcast %18 : vector<1x128xf32> to vector<2x128xf32>
    %20 = arith.addf %17, %19 : vector<2x128xf32>
    %c0_16 = arith.constant 0 : index
    %c0_17 = arith.constant 0 : index
    %21 = vector.load %arg8[%c0_16, %c0_17] : memref<2x128xf32, #tpu.memory_space<vmem>>, vector<2x128xf32>
    tpu.vector_store %arg8[%c0_16, %c0_17], %20 {strides = array<i32>} : memref<2x128xf32, #tpu.memory_space<vmem>>, vector<2x128xf32>,
    return
  }
  func.func @transform_0(%arg0: i32) -> (i32, i32) {
    %c0_i32 = arith.constant 0 : i32
    %c0_i32_0 = arith.constant 0 : i32
    %c0_i32_1 = arith.constant 0 : i32
    return %c0_i32, %c0_i32_0 : i32, i32
  }
  func.func @transform_1(%arg0: i32) -> (i32, i32) {
    %c0_i32 = arith.constant 0 : i32
    %c0_i32_0 = arith.constant 0 : i32
    %c0_i32_1 = arith.constant 0 : i32
    return %c0_i32, %c0_i32_0 : i32, i32
  }
  func.func @transform_2(%arg0: i32) -> (i32, i32) {
    %c0_i32 = arith.constant 0 : i32
    %c0_i32_0 = arith.constant 0 : i32
    %c0_i32_1 = arith.constant 0 : i32
    return %c0_i32, %c0_i32_0 : i32, i32
  }
  func.func @transform_3(%arg0: i32) -> (i32, i32) {
    %c0_i32 = arith.constant 0 : i32
    %c0_i32_0 = arith.constant 0 : i32
    %c0_i32_1 = arith.constant 0 : i32
    return %c0_i32, %c0_i32_0 : i32, i32
  }
  func.func @transform_4(%arg0: i32) -> (i32, i32) {
    %c0_i32 = arith.constant 0 : i32
    %c0_i32_0 = arith.constant 0 : i32
    %c0_i32_1 = arith.constant 0 : i32
    return %c0_i32, %c0_i32_0 : i32, i32
  }
  func.func @transform_5(%arg0: i32) -> (i32, i32) {
    %c0_i32 = arith.constant 0 : i32
    %c0_i32_0 = arith.constant 0 : i32
    %c0_i32_1 = arith.constant 0 : i32
    return %c0_i32, %c0_i32_0 : i32, i32
  }
  func.func @transform_6(%arg0: i32) -> (i32, i32) {
    %c0_i32 = arith.constant 0 : i32
    %c0_i32_0 = arith.constant 0 : i32
    %c0_i32_1 = arith.constant 0 : i32
    return %c0_i32, %c0_i32_0 : i32, i32
  }
  func.func @transform_7(%arg0: i32) -> (i32, i32) {
    %c0_i32 = arith.constant 0 : i32
    %c0_i32_0 = arith.constant 0 : i32
    %c0_i32_1 = arith.constant 0 : i32
    return %c0_i32, %c0_i32_0 : i32, i32
  }
}

module attributes {stable_mosaic.version = 11 : i64} {
  func.func @_embed_ln_kernel(%arg0: i32, %arg1: memref<1x8x32xf32, #tpu.memory_space<vmem>>, %arg2: memref<8x32xf32, #tpu.memory_space<vmem>>, %arg3: memref<1x32xf32, #tpu.memory_space<vmem>>, %arg4: memref<1x32xf32, #tpu.memory_space<vmem>>, %arg5: memref<1x32xf32, #tpu.memory_space<vmem>>, %arg6: memref<1x8x32xbf16, #tpu.memory_space<vmem>>) attributes {dimension_semantics = [#tpu.dimension_semantics<parallel>], iteration_bounds = array<i64: 2>, scalar_prefetch = 0 : i64, scratch_operands = 0 : i64, tpu.core_type = #tpu.core_type<tc>, window_params = [{transform_indices = @transform_0, window_bounds = array<i64: 1, 8, 32>}, {pipeline_mode = #tpu.pipeline_mode<synchronous>, transform_indices = @transform_1, window_bounds = array<i64: 8, 32>}, {pipeline_mode = #tpu.pipeline_mode<synchronous>, transform_indices = @transform_2, window_bounds = array<i64: 1, 32>}, {pipeline_mode = #tpu.pipeline_mode<synchronous>, transform_indices = @transform_3, window_bounds = array<i64: 1, 32>}, {pipeline_mode = #tpu.pipeline_mode<synchronous>, transform_indices = @transform_4, window_bounds = array<i64: 1, 32>}, {transform_indices = @transform_5, window_bounds = array<i64: 1, 8, 32>}]} {
    %c0 = arith.constant 0 : index
    %c0_0 = arith.constant 0 : index
    %c0_1 = arith.constant 0 : index
    %0 = vector.load %arg1[%c0, %c0_0, %c0_1] : memref<1x8x32xf32, #tpu.memory_space<vmem>>, vector<1x8x32xf32>
    %1 = vector.shape_cast %0 : vector<1x8x32xf32> to vector<8x32xf32>
    %c0_2 = arith.constant 0 : index
    %c0_3 = arith.constant 0 : index
    %2 = vector.load %arg2[%c0_2, %c0_3] : memref<8x32xf32, #tpu.memory_space<vmem>>, vector<8x32xf32>
    %3 = arith.addf %1, %2 : vector<8x32xf32>
    %c0_4 = arith.constant 0 : index
    %c0_5 = arith.constant 0 : index
    %4 = vector.load %arg3[%c0_4, %c0_5] : memref<1x32xf32, #tpu.memory_space<vmem>>, vector<1x32xf32>
    %5 = vector.broadcast %4 : vector<1x32xf32> to vector<8x32xf32>
    %6 = arith.addf %3, %5 : vector<8x32xf32>
    %c0_6 = arith.constant 0 : index
    %c0_7 = arith.constant 0 : index
    %7 = vector.load %arg4[%c0_6, %c0_7] : memref<1x32xf32, #tpu.memory_space<vmem>>, vector<1x32xf32>
    %c0_8 = arith.constant 0 : index
    %c0_9 = arith.constant 0 : index
    %8 = vector.load %arg5[%c0_8, %c0_9] : memref<1x32xf32, #tpu.memory_space<vmem>>, vector<1x32xf32>
    %cst = arith.constant dense<0.000000e+00> : vector<8xf32>
    %9 = vector.multi_reduction <add>, %6, %cst [1] : vector<8x32xf32> to vector<8xf32>
    %10 = vector.shape_cast %9 : vector<8xf32> to vector<8x1xf32>
    %cst_10 = arith.constant 3.200000e+01 : f32
    %11 = vector.broadcast %cst_10 : f32 to vector<8x1xf32>
    %12 = arith.divf %10, %11 : vector<8x1xf32>
    %13 = vector.broadcast %12 : vector<8x1xf32> to vector<8x32xf32>
    %14 = arith.subf %6, %13 : vector<8x32xf32>
    %15 = arith.mulf %14, %14 : vector<8x32xf32>
    %cst_11 = arith.constant dense<0.000000e+00> : vector<8xf32>
    %16 = vector.multi_reduction <add>, %15, %cst_11 [1] : vector<8x32xf32> to vector<8xf32>
    %17 = vector.shape_cast %16 : vector<8xf32> to vector<8x1xf32>
    %cst_12 = arith.constant 3.200000e+01 : f32
    %18 = vector.broadcast %cst_12 : f32 to vector<8x1xf32>
    %19 = arith.divf %17, %18 : vector<8x1xf32>
    %20 = vector.broadcast %12 : vector<8x1xf32> to vector<8x32xf32>
    %21 = arith.subf %6, %20 : vector<8x32xf32>
    %cst_13 = arith.constant 9.99999996E-13 : f32
    %22 = vector.broadcast %cst_13 : f32 to vector<8x1xf32>
    %23 = arith.addf %19, %22 : vector<8x1xf32>
    %24 = math.rsqrt %23 : vector<8x1xf32>
    %25 = vector.broadcast %24 : vector<8x1xf32> to vector<8x32xf32>
    %26 = arith.mulf %21, %25 : vector<8x32xf32>
    %27 = vector.broadcast %7 : vector<1x32xf32> to vector<8x32xf32>
    %28 = arith.mulf %26, %27 : vector<8x32xf32>
    %29 = vector.broadcast %8 : vector<1x32xf32> to vector<8x32xf32>
    %30 = arith.addf %28, %29 : vector<8x32xf32>
    %31 = arith.truncf %30 : vector<8x32xf32> to vector<8x32xbf16>
    %c0_14 = arith.constant 0 : index
    %c0_15 = arith.constant 0 : index
    %c0_16 = arith.constant 0 : index
    %32 = vector.load %arg6[%c0_14, %c0_15, %c0_16] : memref<1x8x32xbf16, #tpu.memory_space<vmem>>, vector<1x8x32xbf16>
    %33 = vector.shape_cast %32 : vector<1x8x32xbf16> to vector<8x32xbf16>
    %34 = vector.shape_cast %31 : vector<8x32xbf16> to vector<1x8x32xbf16>
    tpu.vector_store %arg6[%c0_14, %c0_15, %c0_16], %34 {strides = array<i32>} : memref<1x8x32xbf16, #tpu.memory_space<vmem>>, vector<1x8x32xbf16>,
    return
  }
  func.func @transform_0(%arg0: i32) -> (i32, i32, i32) {
    %c0_i32 = arith.constant 0 : i32
    %c0_i32_0 = arith.constant 0 : i32
    %c0_i32_1 = arith.constant 0 : i32
    return %arg0, %c0_i32, %c0_i32_0 : i32, i32, i32
  }
  func.func @transform_1(%arg0: i32) -> (i32, i32) {
    %c0_i32 = arith.constant 0 : i32
    %c0_i32_0 = arith.constant 0 : i32
    %c0_i32_1 = arith.constant 0 : i32
    return %c0_i32, %c0_i32_0 : i32, i32
  }
  func.func @transform_2(%arg0: i32) -> (i32, i32) {
    %c0_i32 = arith.constant 0 : i32
    %c0_i32_0 = arith.constant 0 : i32
    %c0_i32_1 = arith.constant 0 : i32
    return %c0_i32, %c0_i32_0 : i32, i32
  }
  func.func @transform_3(%arg0: i32) -> (i32, i32) {
    %c0_i32 = arith.constant 0 : i32
    %c0_i32_0 = arith.constant 0 : i32
    %c0_i32_1 = arith.constant 0 : i32
    return %c0_i32, %c0_i32_0 : i32, i32
  }
  func.func @transform_4(%arg0: i32) -> (i32, i32) {
    %c0_i32 = arith.constant 0 : i32
    %c0_i32_0 = arith.constant 0 : i32
    %c0_i32_1 = arith.constant 0 : i32
    return %c0_i32, %c0_i32_0 : i32, i32
  }
  func.func @transform_5(%arg0: i32) -> (i32, i32, i32) {
    %c0_i32 = arith.constant 0 : i32
    %c0_i32_0 = arith.constant 0 : i32
    %c0_i32_1 = arith.constant 0 : i32
    return %arg0, %c0_i32, %c0_i32_0 : i32, i32, i32
  }
}

module attributes {stable_mosaic.version = 11 : i64} {
  func.func @_attn_block_kernel(%arg0: i32, %arg1: memref<1x8x32xbf16, #tpu.memory_space<vmem>>, %arg2: memref<32x96xbf16, #tpu.memory_space<vmem>>, %arg3: memref<1x96xf32, #tpu.memory_space<vmem>>, %arg4: memref<32x32xbf16, #tpu.memory_space<vmem>>, %arg5: memref<1x32xf32, #tpu.memory_space<vmem>>, %arg6: memref<1x32xf32, #tpu.memory_space<vmem>>, %arg7: memref<1x32xf32, #tpu.memory_space<vmem>>, %arg8: memref<1x8x32xbf16, #tpu.memory_space<vmem>>) attributes {dimension_semantics = [#tpu.dimension_semantics<parallel>], iteration_bounds = array<i64: 2>, scalar_prefetch = 0 : i64, scratch_operands = 0 : i64, tpu.core_type = #tpu.core_type<tc>, window_params = [{transform_indices = @transform_0, window_bounds = array<i64: 1, 8, 32>}, {pipeline_mode = #tpu.pipeline_mode<synchronous>, transform_indices = @transform_1, window_bounds = array<i64: 32, 96>}, {pipeline_mode = #tpu.pipeline_mode<synchronous>, transform_indices = @transform_2, window_bounds = array<i64: 1, 96>}, {pipeline_mode = #tpu.pipeline_mode<synchronous>, transform_indices = @transform_3, window_bounds = array<i64: 32, 32>}, {pipeline_mode = #tpu.pipeline_mode<synchronous>, transform_indices = @transform_4, window_bounds = array<i64: 1, 32>}, {pipeline_mode = #tpu.pipeline_mode<synchronous>, transform_indices = @transform_5, window_bounds = array<i64: 1, 32>}, {pipeline_mode = #tpu.pipeline_mode<synchronous>, transform_indices = @transform_6, window_bounds = array<i64: 1, 32>}, {transform_indices = @transform_7, window_bounds = array<i64: 1, 8, 32>}]} {
    %c0 = arith.constant 0 : index
    %c0_0 = arith.constant 0 : index
    %c0_1 = arith.constant 0 : index
    %0 = vector.load %arg1[%c0, %c0_0, %c0_1] : memref<1x8x32xbf16, #tpu.memory_space<vmem>>, vector<1x8x32xbf16>
    %1 = vector.shape_cast %0 : vector<1x8x32xbf16> to vector<8x32xbf16>
    %c0_2 = arith.constant 0 : index
    %c0_3 = arith.constant 0 : index
    %2 = vector.load %arg2[%c0_2, %c0_3] : memref<32x96xbf16, #tpu.memory_space<vmem>>, vector<32x96xbf16>
    %cst = arith.constant dense<0.000000e+00> : vector<8x96xf32>
    %3 = tpu.matmul %1, %2, %cst {dimension_numbers = #tpu.dot_dimension_numbers<[1], [0], [0], [1], [0, 0, 1, 1], [], []>} : vector<8x32xbf16>, vector<32x96xbf16>, vector<8x96xf32> -> vector<8x96xf32>
    %c0_4 = arith.constant 0 : index
    %c0_5 = arith.constant 0 : index
    %4 = vector.load %arg3[%c0_4, %c0_5] : memref<1x96xf32, #tpu.memory_space<vmem>>, vector<1x96xf32>
    %5 = vector.broadcast %4 : vector<1x96xf32> to vector<8x96xf32>
    %6 = arith.addf %3, %5 : vector<8x96xf32>
    %7 = vector.extract_strided_slice %6 {offsets = [0, 0], sizes = [8, 32], strides = [1, 1]} : vector<8x96xf32> to vector<8x32xf32>
    %8 = arith.truncf %7 : vector<8x32xf32> to vector<8x32xbf16>
    %9 = vector.shape_cast %8 : vector<8x32xbf16> to vector<8x4x8xbf16>
    %10 = vector.extract_strided_slice %6 {offsets = [0, 32], sizes = [8, 32], strides = [1, 1]} : vector<8x96xf32> to vector<8x32xf32>
    %11 = arith.truncf %10 : vector<8x32xf32> to vector<8x32xbf16>
    %12 = vector.shape_cast %11 : vector<8x32xbf16> to vector<8x4x8xbf16>
    %13 = vector.extract_strided_slice %6 {offsets = [0, 64], sizes = [8, 32], strides = [1, 1]} : vector<8x96xf32> to vector<8x32xf32>
    %14 = arith.truncf %13 : vector<8x32xf32> to vector<8x32xbf16>
    %15 = vector.shape_cast %14 : vector<8x32xbf16> to vector<8x4x8xbf16>
    "tpu.trace_start"() <{level = 10 : i32, message = "qhd,khd->hqk"}> : () -> ()
    %cst_6 = arith.constant dense<0.000000e+00> : vector<4x8x8xf32>
    %16 = tpu.matmul %9, %12, %cst_6 {dimension_numbers = #tpu.dot_dimension_numbers<[2], [2], [0], [0], [0, 1, 0, 0, 1, 0], [1], [1]>} : vector<8x4x8xbf16>, vector<8x4x8xbf16>, vector<4x8x8xf32> -> vector<4x8x8xf32>
    "tpu.trace_stop"() : () -> ()
    %cst_7 = arith.constant 0.353553385 : f32
    %17 = vector.broadcast %cst_7 : f32 to vector<4x8x8xf32>
    %18 = arith.mulf %16, %17 : vector<4x8x8xf32>
    %cst_8 = arith.constant dense<0xFF800000> : vector<4x8xf32>
    %19 = vector.multi_reduction <maximumf>, %18, %cst_8 [2] : vector<4x8x8xf32> to vector<4x8xf32>
    %20 = vector.shape_cast %19 : vector<4x8xf32> to vector<4x8x1xf32>
    %21 = vector.broadcast %20 : vector<4x8x1xf32> to vector<4x8x8xf32>
    %22 = arith.subf %18, %21 : vector<4x8x8xf32>
    %23 = math.exp %22 : vector<4x8x8xf32>
    %cst_9 = arith.constant dense<0.000000e+00> : vector<4x8xf32>
    %24 = vector.multi_reduction <add>, %23, %cst_9 [2] : vector<4x8x8xf32> to vector<4x8xf32>
    %25 = vector.shape_cast %24 : vector<4x8xf32> to vector<4x8x1xf32>
    %26 = tpu.reciprocal %25 {approx = true} : vector<4x8x1xf32> -> vector<4x8x1xf32>
    %27 = vector.broadcast %26 : vector<4x8x1xf32> to vector<4x8x8xf32>
    %28 = arith.mulf %23, %27 : vector<4x8x8xf32>
    %29 = arith.truncf %28 : vector<4x8x8xf32> to vector<4x8x8xbf16>
    "tpu.trace_start"() <{level = 10 : i32, message = "hqk,khd->qhd"}> : () -> ()
    %cst_10 = arith.constant dense<0.000000e+00> : vector<4x8x8xf32>
    %30 = tpu.matmul %15, %29, %cst_10 {dimension_numbers = #tpu.dot_dimension_numbers<[0], [2], [2], [1], [0, 1, 0, 2, 1, 1], [1], [0]>} : vector<8x4x8xbf16>, vector<4x8x8xbf16>, vector<4x8x8xf32> -> vector<4x8x8xf32>
    %31 = tpu.transpose %30, [2, 0, 1] : vector<4x8x8xf32> -> vector<8x4x8xf32>
    "tpu.trace_stop"() : () -> ()
    %32 = vector.shape_cast %31 : vector<8x4x8xf32> to vector<8x32xf32>
    %33 = arith.truncf %32 : vector<8x32xf32> to vector<8x32xbf16>
    %c0_11 = arith.constant 0 : index
    %c0_12 = arith.constant 0 : index
    %34 = vector.load %arg4[%c0_11, %c0_12] : memref<32x32xbf16, #tpu.memory_space<vmem>>, vector<32x32xbf16>
    %cst_13 = arith.constant dense<0.000000e+00> : vector<8x32xf32>
    %35 = tpu.matmul %33, %34, %cst_13 {dimension_numbers = #tpu.dot_dimension_numbers<[1], [0], [0], [1], [0, 0, 1, 1], [], []>} : vector<8x32xbf16>, vector<32x32xbf16>, vector<8x32xf32> -> vector<8x32xf32>
    %c0_14 = arith.constant 0 : index
    %c0_15 = arith.constant 0 : index
    %36 = vector.load %arg5[%c0_14, %c0_15] : memref<1x32xf32, #tpu.memory_space<vmem>>, vector<1x32xf32>
    %37 = vector.broadcast %36 : vector<1x32xf32> to vector<8x32xf32>
    %38 = arith.addf %35, %37 : vector<8x32xf32>
    %39 = arith.extf %1 : vector<8x32xbf16> to vector<8x32xf32>
    %40 = arith.addf %39, %38 : vector<8x32xf32>
    %c0_16 = arith.constant 0 : index
    %c0_17 = arith.constant 0 : index
    %41 = vector.load %arg6[%c0_16, %c0_17] : memref<1x32xf32, #tpu.memory_space<vmem>>, vector<1x32xf32>
    %c0_18 = arith.constant 0 : index
    %c0_19 = arith.constant 0 : index
    %42 = vector.load %arg7[%c0_18, %c0_19] : memref<1x32xf32, #tpu.memory_space<vmem>>, vector<1x32xf32>
    %cst_20 = arith.constant dense<0.000000e+00> : vector<8xf32>
    %43 = vector.multi_reduction <add>, %40, %cst_20 [1] : vector<8x32xf32> to vector<8xf32>
    %44 = vector.shape_cast %43 : vector<8xf32> to vector<8x1xf32>
    %cst_21 = arith.constant 3.200000e+01 : f32
    %45 = vector.broadcast %cst_21 : f32 to vector<8x1xf32>
    %46 = arith.divf %44, %45 : vector<8x1xf32>
    %47 = vector.broadcast %46 : vector<8x1xf32> to vector<8x32xf32>
    %48 = arith.subf %40, %47 : vector<8x32xf32>
    %49 = arith.mulf %48, %48 : vector<8x32xf32>
    %cst_22 = arith.constant dense<0.000000e+00> : vector<8xf32>
    %50 = vector.multi_reduction <add>, %49, %cst_22 [1] : vector<8x32xf32> to vector<8xf32>
    %51 = vector.shape_cast %50 : vector<8xf32> to vector<8x1xf32>
    %cst_23 = arith.constant 3.200000e+01 : f32
    %52 = vector.broadcast %cst_23 : f32 to vector<8x1xf32>
    %53 = arith.divf %51, %52 : vector<8x1xf32>
    %54 = vector.broadcast %46 : vector<8x1xf32> to vector<8x32xf32>
    %55 = arith.subf %40, %54 : vector<8x32xf32>
    %cst_24 = arith.constant 9.99999996E-13 : f32
    %56 = vector.broadcast %cst_24 : f32 to vector<8x1xf32>
    %57 = arith.addf %53, %56 : vector<8x1xf32>
    %58 = math.rsqrt %57 : vector<8x1xf32>
    %59 = vector.broadcast %58 : vector<8x1xf32> to vector<8x32xf32>
    %60 = arith.mulf %55, %59 : vector<8x32xf32>
    %61 = vector.broadcast %41 : vector<1x32xf32> to vector<8x32xf32>
    %62 = arith.mulf %60, %61 : vector<8x32xf32>
    %63 = vector.broadcast %42 : vector<1x32xf32> to vector<8x32xf32>
    %64 = arith.addf %62, %63 : vector<8x32xf32>
    %65 = arith.truncf %64 : vector<8x32xf32> to vector<8x32xbf16>
    %c0_25 = arith.constant 0 : index
    %c0_26 = arith.constant 0 : index
    %c0_27 = arith.constant 0 : index
    %66 = vector.load %arg8[%c0_25, %c0_26, %c0_27] : memref<1x8x32xbf16, #tpu.memory_space<vmem>>, vector<1x8x32xbf16>
    %67 = vector.shape_cast %66 : vector<1x8x32xbf16> to vector<8x32xbf16>
    %68 = vector.shape_cast %65 : vector<8x32xbf16> to vector<1x8x32xbf16>
    tpu.vector_store %arg8[%c0_25, %c0_26, %c0_27], %68 {strides = array<i32>} : memref<1x8x32xbf16, #tpu.memory_space<vmem>>, vector<1x8x32xbf16>,
    return
  }
  func.func @transform_0(%arg0: i32) -> (i32, i32, i32) {
    %c0_i32 = arith.constant 0 : i32
    %c0_i32_0 = arith.constant 0 : i32
    %c0_i32_1 = arith.constant 0 : i32
    return %arg0, %c0_i32, %c0_i32_0 : i32, i32, i32
  }
  func.func @transform_1(%arg0: i32) -> (i32, i32) {
    %c0_i32 = arith.constant 0 : i32
    %c0_i32_0 = arith.constant 0 : i32
    %c0_i32_1 = arith.constant 0 : i32
    return %c0_i32, %c0_i32_0 : i32, i32
  }
  func.func @transform_2(%arg0: i32) -> (i32, i32) {
    %c0_i32 = arith.constant 0 : i32
    %c0_i32_0 = arith.constant 0 : i32
    %c0_i32_1 = arith.constant 0 : i32
    return %c0_i32, %c0_i32_0 : i32, i32
  }
  func.func @transform_3(%arg0: i32) -> (i32, i32) {
    %c0_i32 = arith.constant 0 : i32
    %c0_i32_0 = arith.constant 0 : i32
    %c0_i32_1 = arith.constant 0 : i32
    return %c0_i32, %c0_i32_0 : i32, i32
  }
  func.func @transform_4(%arg0: i32) -> (i32, i32) {
    %c0_i32 = arith.constant 0 : i32
    %c0_i32_0 = arith.constant 0 : i32
    %c0_i32_1 = arith.constant 0 : i32
    return %c0_i32, %c0_i32_0 : i32, i32
  }
  func.func @transform_5(%arg0: i32) -> (i32, i32) {
    %c0_i32 = arith.constant 0 : i32
    %c0_i32_0 = arith.constant 0 : i32
    %c0_i32_1 = arith.constant 0 : i32
    return %c0_i32, %c0_i32_0 : i32, i32
  }
  func.func @transform_6(%arg0: i32) -> (i32, i32) {
    %c0_i32 = arith.constant 0 : i32
    %c0_i32_0 = arith.constant 0 : i32
    %c0_i32_1 = arith.constant 0 : i32
    return %c0_i32, %c0_i32_0 : i32, i32
  }
  func.func @transform_7(%arg0: i32) -> (i32, i32, i32) {
    %c0_i32 = arith.constant 0 : i32
    %c0_i32_0 = arith.constant 0 : i32
    %c0_i32_1 = arith.constant 0 : i32
    return %arg0, %c0_i32, %c0_i32_0 : i32, i32, i32
  }
}

module attributes {stable_mosaic.version = 11 : i64} {
  func.func @_ffn_block_kernel(%arg0: i32, %arg1: memref<16x32xbf16, #tpu.memory_space<vmem>>, %arg2: memref<32x64xbf16, #tpu.memory_space<vmem>>, %arg3: memref<1x64xf32, #tpu.memory_space<vmem>>, %arg4: memref<64x32xbf16, #tpu.memory_space<vmem>>, %arg5: memref<1x32xf32, #tpu.memory_space<vmem>>, %arg6: memref<1x32xf32, #tpu.memory_space<vmem>>, %arg7: memref<1x32xf32, #tpu.memory_space<vmem>>, %arg8: memref<16x32xbf16, #tpu.memory_space<vmem>>) attributes {dimension_semantics = [#tpu.dimension_semantics<parallel>], iteration_bounds = array<i64: 1>, scalar_prefetch = 0 : i64, scratch_operands = 0 : i64, tpu.core_type = #tpu.core_type<tc>, window_params = [{transform_indices = @transform_0, window_bounds = array<i64: 16, 32>}, {pipeline_mode = #tpu.pipeline_mode<synchronous>, transform_indices = @transform_1, window_bounds = array<i64: 32, 64>}, {pipeline_mode = #tpu.pipeline_mode<synchronous>, transform_indices = @transform_2, window_bounds = array<i64: 1, 64>}, {pipeline_mode = #tpu.pipeline_mode<synchronous>, transform_indices = @transform_3, window_bounds = array<i64: 64, 32>}, {pipeline_mode = #tpu.pipeline_mode<synchronous>, transform_indices = @transform_4, window_bounds = array<i64: 1, 32>}, {pipeline_mode = #tpu.pipeline_mode<synchronous>, transform_indices = @transform_5, window_bounds = array<i64: 1, 32>}, {pipeline_mode = #tpu.pipeline_mode<synchronous>, transform_indices = @transform_6, window_bounds = array<i64: 1, 32>}, {transform_indices = @transform_7, window_bounds = array<i64: 16, 32>}]} {
    %c0 = arith.constant 0 : index
    %c0_0 = arith.constant 0 : index
    %0 = vector.load %arg1[%c0, %c0_0] : memref<16x32xbf16, #tpu.memory_space<vmem>>, vector<16x32xbf16>
    %c0_1 = arith.constant 0 : index
    %c0_2 = arith.constant 0 : index
    %1 = vector.load %arg2[%c0_1, %c0_2] : memref<32x64xbf16, #tpu.memory_space<vmem>>, vector<32x64xbf16>
    %cst = arith.constant dense<0.000000e+00> : vector<16x64xf32>
    %2 = tpu.matmul %0, %1, %cst {dimension_numbers = #tpu.dot_dimension_numbers<[1], [0], [0], [1], [0, 0, 1, 1], [], []>} : vector<16x32xbf16>, vector<32x64xbf16>, vector<16x64xf32> -> vector<16x64xf32>
    %c0_3 = arith.constant 0 : index
    %c0_4 = arith.constant 0 : index
    %3 = vector.load %arg3[%c0_3, %c0_4] : memref<1x64xf32, #tpu.memory_space<vmem>>, vector<1x64xf32>
    %4 = vector.broadcast %3 : vector<1x64xf32> to vector<16x64xf32>
    %5 = arith.addf %2, %4 : vector<16x64xf32>
    %6 = arith.mulf %5, %5 : vector<16x64xf32>
    %7 = arith.mulf %5, %6 : vector<16x64xf32>
    %cst_5 = arith.constant 4.471500e-02 : f32
    %8 = vector.broadcast %cst_5 : f32 to vector<16x64xf32>
    %9 = arith.mulf %8, %7 : vector<16x64xf32>
    %10 = arith.addf %5, %9 : vector<16x64xf32>
    %cst_6 = arith.constant 0.797884583 : f32
    %11 = vector.broadcast %cst_6 : f32 to vector<16x64xf32>
    %12 = arith.mulf %11, %10 : vector<16x64xf32>
    %13 = math.tanh %12 : vector<16x64xf32>
    %cst_7 = arith.constant 1.000000e+00 : f32
    %14 = vector.broadcast %cst_7 : f32 to vector<16x64xf32>
    %15 = arith.addf %14, %13 : vector<16x64xf32>
    %cst_8 = arith.constant 5.000000e-01 : f32
    %16 = vector.broadcast %cst_8 : f32 to vector<16x64xf32>
    %17 = arith.mulf %16, %15 : vector<16x64xf32>
    %18 = arith.mulf %5, %17 : vector<16x64xf32>
    %19 = arith.truncf %18 : vector<16x64xf32> to vector<16x64xbf16>
    %c0_9 = arith.constant 0 : index
    %c0_10 = arith.constant 0 : index
    %20 = vector.load %arg4[%c0_9, %c0_10] : memref<64x32xbf16, #tpu.memory_space<vmem>>, vector<64x32xbf16>
    %cst_11 = arith.constant dense<0.000000e+00> : vector<16x32xf32>
    %21 = tpu.matmul %19, %20, %cst_11 {dimension_numbers = #tpu.dot_dimension_numbers<[1], [0], [0], [1], [0, 0, 1, 1], [], []>} : vector<16x64xbf16>, vector<64x32xbf16>, vector<16x32xf32> -> vector<16x32xf32>
    %c0_12 = arith.constant 0 : index
    %c0_13 = arith.constant 0 : index
    %22 = vector.load %arg5[%c0_12, %c0_13] : memref<1x32xf32, #tpu.memory_space<vmem>>, vector<1x32xf32>
    %23 = vector.broadcast %22 : vector<1x32xf32> to vector<16x32xf32>
    %24 = arith.addf %21, %23 : vector<16x32xf32>
    %25 = arith.extf %0 : vector<16x32xbf16> to vector<16x32xf32>
    %26 = arith.addf %25, %24 : vector<16x32xf32>
    %c0_14 = arith.constant 0 : index
    %c0_15 = arith.constant 0 : index
    %27 = vector.load %arg6[%c0_14, %c0_15] : memref<1x32xf32, #tpu.memory_space<vmem>>, vector<1x32xf32>
    %c0_16 = arith.constant 0 : index
    %c0_17 = arith.constant 0 : index
    %28 = vector.load %arg7[%c0_16, %c0_17] : memref<1x32xf32, #tpu.memory_space<vmem>>, vector<1x32xf32>
    %cst_18 = arith.constant dense<0.000000e+00> : vector<16xf32>
    %29 = vector.multi_reduction <add>, %26, %cst_18 [1] : vector<16x32xf32> to vector<16xf32>
    %30 = vector.shape_cast %29 : vector<16xf32> to vector<16x1xf32>
    %cst_19 = arith.constant 3.200000e+01 : f32
    %31 = vector.broadcast %cst_19 : f32 to vector<16x1xf32>
    %32 = arith.divf %30, %31 : vector<16x1xf32>
    %33 = vector.broadcast %32 : vector<16x1xf32> to vector<16x32xf32>
    %34 = arith.subf %26, %33 : vector<16x32xf32>
    %35 = arith.mulf %34, %34 : vector<16x32xf32>
    %cst_20 = arith.constant dense<0.000000e+00> : vector<16xf32>
    %36 = vector.multi_reduction <add>, %35, %cst_20 [1] : vector<16x32xf32> to vector<16xf32>
    %37 = vector.shape_cast %36 : vector<16xf32> to vector<16x1xf32>
    %cst_21 = arith.constant 3.200000e+01 : f32
    %38 = vector.broadcast %cst_21 : f32 to vector<16x1xf32>
    %39 = arith.divf %37, %38 : vector<16x1xf32>
    %40 = vector.broadcast %32 : vector<16x1xf32> to vector<16x32xf32>
    %41 = arith.subf %26, %40 : vector<16x32xf32>
    %cst_22 = arith.constant 9.99999996E-13 : f32
    %42 = vector.broadcast %cst_22 : f32 to vector<16x1xf32>
    %43 = arith.addf %39, %42 : vector<16x1xf32>
    %44 = math.rsqrt %43 : vector<16x1xf32>
    %45 = vector.broadcast %44 : vector<16x1xf32> to vector<16x32xf32>
    %46 = arith.mulf %41, %45 : vector<16x32xf32>
    %47 = vector.broadcast %27 : vector<1x32xf32> to vector<16x32xf32>
    %48 = arith.mulf %46, %47 : vector<16x32xf32>
    %49 = vector.broadcast %28 : vector<1x32xf32> to vector<16x32xf32>
    %50 = arith.addf %48, %49 : vector<16x32xf32>
    %51 = arith.truncf %50 : vector<16x32xf32> to vector<16x32xbf16>
    %c0_23 = arith.constant 0 : index
    %c0_24 = arith.constant 0 : index
    %52 = vector.load %arg8[%c0_23, %c0_24] : memref<16x32xbf16, #tpu.memory_space<vmem>>, vector<16x32xbf16>
    tpu.vector_store %arg8[%c0_23, %c0_24], %51 {strides = array<i32>} : memref<16x32xbf16, #tpu.memory_space<vmem>>, vector<16x32xbf16>,
    return
  }
  func.func @transform_0(%arg0: i32) -> (i32, i32) {
    %c0_i32 = arith.constant 0 : i32
    %c0_i32_0 = arith.constant 0 : i32
    return %arg0, %c0_i32 : i32, i32
  }
  func.func @transform_1(%arg0: i32) -> (i32, i32) {
    %c0_i32 = arith.constant 0 : i32
    %c0_i32_0 = arith.constant 0 : i32
    %c0_i32_1 = arith.constant 0 : i32
    return %c0_i32, %c0_i32_0 : i32, i32
  }
  func.func @transform_2(%arg0: i32) -> (i32, i32) {
    %c0_i32 = arith.constant 0 : i32
    %c0_i32_0 = arith.constant 0 : i32
    %c0_i32_1 = arith.constant 0 : i32
    return %c0_i32, %c0_i32_0 : i32, i32
  }
  func.func @transform_3(%arg0: i32) -> (i32, i32) {
    %c0_i32 = arith.constant 0 : i32
    %c0_i32_0 = arith.constant 0 : i32
    %c0_i32_1 = arith.constant 0 : i32
    return %c0_i32, %c0_i32_0 : i32, i32
  }
  func.func @transform_4(%arg0: i32) -> (i32, i32) {
    %c0_i32 = arith.constant 0 : i32
    %c0_i32_0 = arith.constant 0 : i32
    %c0_i32_1 = arith.constant 0 : i32
    return %c0_i32, %c0_i32_0 : i32, i32
  }
  func.func @transform_5(%arg0: i32) -> (i32, i32) {
    %c0_i32 = arith.constant 0 : i32
    %c0_i32_0 = arith.constant 0 : i32
    %c0_i32_1 = arith.constant 0 : i32
    return %c0_i32, %c0_i32_0 : i32, i32
  }
  func.func @transform_6(%arg0: i32) -> (i32, i32) {
    %c0_i32 = arith.constant 0 : i32
    %c0_i32_0 = arith.constant 0 : i32
    %c0_i32_1 = arith.constant 0 : i32
    return %c0_i32, %c0_i32_0 : i32, i32
  }
  func.func @transform_7(%arg0: i32) -> (i32, i32) {
    %c0_i32 = arith.constant 0 : i32
    %c0_i32_0 = arith.constant 0 : i32
    return %arg0, %c0_i32 : i32, i32
  }
}

</mosaic_0001>

<llo_original>
// kernel: tpu_custom_call.1
$region0: #{tpu_custom_call.1}
  #allocation0 [shape = 'u32[]', space=smem, size = 0x4, offset = 0x4, fixed_abs, tag = 'smem constant byte address 0x4 - core index']
  #allocation1 [shape = 'u32[144,128]{1,0:T(1,128)}', space=vmem, size = 0x12000, scoped, tag = 'internal scratch']
  %s0 = inlined_call_operand.hbm [shape: f32[16,128], index: 0, kind: input, shape index: {}]
  %s1 = inlined_call_operand.hbm [shape: f32[8,128], index: 1, kind: input, shape index: {}]
  %s2 = inlined_call_operand.hbm [shape: f32[16,128], index: 2, kind: output, shape index: {}]
  %s3 = sld [smem:[#allocation0]]
  $region49: #{tpu_custom_call.1} parent=0
    _
  %s5 = ssub.s32 1, %s3
  %s6 = scalar_select 0, %s5, %s3
  $region1: #{tpu_custom_call.1} parent=0
    #allocation2 [shape = 'u8[8192]{0}', space=vmem, size = 0x2000, scoped, tag = 'input window, operand 0']
    #allocation3 [shape = 's32[2]{0}', space=sflag, size = 0x8, scoped, tag = 'scoped memory for tpu_custom_call.1']
    #allocation4 [shape = 's32[2]{0}', space=sflag, size = 0x8, scoped, tag = 'scoped memory for tpu_custom_call.1']
    #allocation5 [shape = 'u8[4096]{0}', space=vmem, size = 0x1000, scoped, tag = 'input window, operand 1, single buffered']
    #allocation6 [shape = 's32[1]{0}', space=sflag, size = 0x4, scoped, tag = 'scoped memory for tpu_custom_call.1']
    #allocation7 [shape = 'u8[8192]{0}', space=vmem, size = 0x2000, scoped, tag = 'output window, operand 0']
    %7 = vsyncpa [#allocation3], 0
    %s8 = scalar_lea.sflag [#allocation3], 1
    %9 = vsyncpa %s8, 0
    %10 = vsyncpa [#allocation6], 0
    %11 = vsyncpa [#allocation4], 0
    %s12 = scalar_lea.sflag [#allocation4], 1
    %13 = vsyncpa %s12, 0
    loop: start=0, step=1, limit=4
    $region2: #{tpu_custom_call.1} parent=1 // loop_pre_header
      _
    $region3: #{tpu_custom_call.1} parent=1 // loop_header
      %s15 = sphi 0, %s19
      %p16 = scmp.ge.s32.totalorder %s15, 4
      %s25 = sphi 0, %s27
      %s28 = sphi 0, %s25
      %s29 = sphi 0, %s28
      %s45 = sphi 0, %s29
      %s49 = sphi 0, %s49
      %s51 = sphi 0, %s49
      %s52 = sphi 0, %s51
      %s66 = sphi 0, %s52
      %s72 = sphi 0, %s74
      %s75 = sphi 0, %s72
      %s76 = sphi 0, %s75
      %s92 = sphi 0, %s76
    $region4: #{tpu_custom_call.1} parent=1 // loop_header_branch
      %18 = sbr.rel (%p16) target = $region8
    $region5: #{tpu_custom_call.1} parent=1 // loop_body
      %s20 = ssub.s32 %s15, 1
      %s21 = ssub.s32 %s15, 2
      %s22 = sadd.s32 %s15, 1
      %s23 = ssub.s32 %s15, %s22
      %p24 = scmp.eq.s32.totalorder %s23, 0
      %s26 = sadd.s32 %s25, 1
      %s27 = scalar_select %p24, %s25, %s26
      %p30 = pneg %p24
      %p31 = scmp.eq.s32.totalorder %s15, 1
      %p32 = por %p30, %p31
      %p33 = scmp.ne.s32.totalorder %s25, %s28
      %p34 = scmp.eq.s32.totalorder %s15, 0
      %p35 = por %p33, %p34
      %p36 = scmp.ne.s32.totalorder %s25, %s28
      %p37 = scmp.eq.s32.totalorder %s20, 1
      %p38 = por %p36, %p37
      %p39 = scmp.ne.s32.totalorder %s28, %s29
      %p40 = scmp.eq.s32.totalorder %s20, 0
      %p41 = por %p39, %p40
      %p42 = scmp.ne.s32.totalorder %s28, %s29
      %p43 = scmp.eq.s32.totalorder %s21, 1
      %p44 = por %p42, %p43
      %p46 = scmp.ne.s32.totalorder %s29, %s45
      %p47 = scmp.eq.s32.totalorder %s21, 0
      %p48 = por %p46, %p47
      %s50 = sadd.s32 %s49, 1
      %p53 = scmp.eq.s32.totalorder %s15, 1
      %p54 = scmp.ne.s32.totalorder %s49, %s51
      %p55 = scmp.eq.s32.totalorder %s15, 0
      %p56 = por %p54, %p55
      %p57 = scmp.ne.s32.totalorder %s49, %s51
      %p58 = scmp.eq.s32.totalorder %s20, 1
      %p59 = por %p57, %p58
      %p60 = scmp.ne.s32.totalorder %s51, %s52
      %p61 = scmp.eq.s32.totalorder %s20, 0
      %p62 = por %p60, %p61
      %p63 = scmp.ne.s32.totalorder %s51, %s52
      %p64 = scmp.eq.s32.totalorder %s21, 1
      %p65 = por %p63, %p64
      %p67 = scmp.ne.s32.totalorder %s52, %s66
      %p68 = scmp.eq.s32.totalorder %s21, 0
      %p69 = por %p67, %p68
      %s70 = ssub.s32 %s15, %s22
      %p71 = scmp.eq.s32.totalorder %s70, 0
      %s73 = sadd.s32 %s72, 1
      %s74 = scalar_select %p71, %s72, %s73
      %p77 = pneg %p71
      %p78 = scmp.eq.s32.totalorder %s15, 1
      %p79 = por %p77, %p78
      %p80 = scmp.ne.s32.totalorder %s72, %s75
      %p81 = scmp.eq.s32.totalorder %s15, 0
      %p82 = por %p80, %p81
      %p83 = scmp.ne.s32.totalorder %s72, %s75
      %p84 = scmp.eq.s32.totalorder %s20, 1
      %p85 = por %p83, %p84
      %p86 = scmp.ne.s32.totalorder %s75, %s76
      %p87 = scmp.eq.s32.totalorder %s20, 0
      %p88 = por %p86, %p87
      %p89 = scmp.ne.s32.totalorder %s75, %s76
      %p90 = scmp.eq.s32.totalorder %s21, 1
      %p91 = por %p89, %p90
      %p93 = scmp.ne.s32.totalorder %s76, %s92
      %p94 = scmp.eq.s32.totalorder %s21, 0
      %p95 = por %p93, %p94
      %p96 = scmp.le.s32.totalorder 1, %s15
      %p97 = scmp.lt.s32.totalorder %s15, 3
      %p98 = pnand %p96, %p97
      %p99 = pneg %p98
      // Predicated region
      $region9: #{tpu_custom_call.1} parent=5 // pred_check
        _
      $region10: #{tpu_custom_call.1} parent=5 // pred_check_branch
        %101 = sbr.rel (%p98) target = $region12
      $region11: #{tpu_custom_call.1} parent=5 // pred_region
        %s102 = ssub.s32 %s15, 1
        // Predicated region
        $region13: #{tpu_custom_call.1} parent=11 // pred_check
          %p103 = pneg %p62
        $region14: #{tpu_custom_call.1} parent=11 // pred_check_branch
          %105 = sbr.rel (%p103) target = $region16
        $region15: #{tpu_custom_call.1} parent=11 // pred_region
          %s107 = ssub.s32 128, 128
          %108 = vsyncadd [#allocation6], %s107
          %s110 = sshll.u32 [#allocation5], 4
          %s111 = int_to_ptr.vmem [resolvable:$true] %s110
          %113 = dma.hbm_to_vmem [thread:$0]  %s1, 128, %s111, [#allocation6]
        $region16: #{tpu_custom_call.1} parent=11 // pred_fallthru
          _
      $region12: #{tpu_custom_call.1} parent=5 // pred_fallthru
        _
      %p114 = scmp.lt.s32.totalorder %s15, 2
      // Predicated region
      $region17: #{tpu_custom_call.1} parent=5 // pred_check
        %p115 = pneg %p114
      $region18: #{tpu_custom_call.1} parent=5 // pred_check_branch
        %117 = sbr.rel (%p115) target = $region20
      $region19: #{tpu_custom_call.1} parent=5 // pred_region
        // Predicated region
        $region21: #{tpu_custom_call.1} parent=19 // pred_check
          %p118 = pneg %p35
        $region22: #{tpu_custom_call.1} parent=19 // pred_check_branch
          %120 = sbr.rel (%p118) target = $region24
        $region23: #{tpu_custom_call.1} parent=19 // pred_region
          %s121 = sand.u32 %s25, 1
          %s122 = scalar_lea.sflag [#allocation3], %s121
          %s123 = sand.u32 %s25, 1
          %s124 = smul.addr %s123, 8
          %s125 = scalar_lea.vmem [#allocation2], %s124
          %s127 = ssub.s32 128, 128
          %128 = vsyncadd %s122, %s127
          %s129 = smul.addr %s15, 128
          %s130 = scalar_lea.hbm %s0, %s129
          %s132 = sshll.u32 %s125, 4
          %s133 = int_to_ptr.vmem [resolvable:$true] %s132
          %135 = dma.hbm_to_vmem [thread:$0]  %s130, 128, %s133, %s122
        $region24: #{tpu_custom_call.1} parent=19 // pred_fallthru
          _
      $region20: #{tpu_custom_call.1} parent=5 // pred_fallthru
        _
      %p136 = scmp.le.s32.totalorder 1, %s15
      %p137 = scmp.lt.s32.totalorder %s15, 3
      %p138 = pnand %p136, %p137
      %p139 = pneg %p138
      // Predicated region
      $region25: #{tpu_custom_call.1} parent=5 // pred_check
        _
      $region26: #{tpu_custom_call.1} parent=5 // pred_check_branch
        %141 = sbr.rel (%p138) target = $region28
      $region27: #{tpu_custom_call.1} parent=5 // pred_region
        %s142 = ssub.s32 %s15, 1
        %s143 = sand.u32 %s28, 1
        %s144 = scalar_lea.sflag [#allocation3], %s143
        %s145 = sand.u32 %s28, 1
        %s146 = smul.addr %s145, 8
        %s147 = scalar_lea.vmem [#allocation2], %s146
        // Predicated region
        $region29: #{tpu_custom_call.1} parent=27 // pred_check
          %p148 = pneg %p41
        $region30: #{tpu_custom_call.1} parent=27 // pred_check_branch
          %150 = sbr.rel (%p148) target = $region32
        $region31: #{tpu_custom_call.1} parent=27 // pred_region
          %151 = dma.done %s144, 128
        $region32: #{tpu_custom_call.1} parent=27 // pred_fallthru
          _
        // Predicated region
        $region33: #{tpu_custom_call.1} parent=27 // pred_check
          %p152 = pneg %p62
        $region34: #{tpu_custom_call.1} parent=27 // pred_check_branch
          %154 = sbr.rel (%p152) target = $region36
        $region35: #{tpu_custom_call.1} parent=27 // pred_region
          %155 = dma.done [#allocation6], 128
        $region36: #{tpu_custom_call.1} parent=27 // pred_fallthru
          _
        %s156 = sand.u32 %s28, 1
        %s157 = scalar_lea.sflag [#allocation3], %s156
        %s158 = sand.u32 %s28, 1
        %s159 = smul.addr %s158, 8
        %s160 = scalar_lea.vmem [#allocation2], %s159
        %p161 = pneg %p41
        %p162 = pneg %p38
        %p163 = pneg %p62
        %p164 = pneg %p59
        %p165 = pneg %p88
        %p166 = pneg %p85
        %s167 = sand.u32 %s75, 1
        %s168 = scalar_lea.sflag [#allocation4], %s167
        %s169 = sand.u32 %s75, 1
        %s170 = smul.addr %s169, 8
        %s171 = scalar_lea.vmem [#allocation7], %s170
        %v172 = vld [vmem:[%s147] sm:$0xff]
        %v173 = vld [vmem:[#allocation5] sm:$0xff]
        %v174 = vadd.f32 %v172, %v173
        %175 = vst [vmem:[%s171] sm:$0xff] %v174
        %s176 = sand.u32 %s75, 1
        %s177 = scalar_lea.sflag [#allocation4], %s176
        %s178 = sand.u32 %s75, 1
        %s179 = smul.addr %s178, 8
        %s180 = scalar_lea.vmem [#allocation7], %s179
        // Predicated region
        $region37: #{tpu_custom_call.1} parent=27 // pred_check
          %p181 = pneg %p85
        $region38: #{tpu_custom_call.1} parent=27 // pred_check_branch
          %183 = sbr.rel (%p181) target = $region40
        $region39: #{tpu_custom_call.1} parent=27 // pred_region
          %s185 = ssub.s32 128, 128
          %186 = vsyncadd %s177, %s185
          %s187 = smul.addr %s20, 128
          %s188 = scalar_lea.hbm %s2, %s187
          %s190 = sshll.u32 %s180, 4
          %s191 = int_to_ptr.vmem [resolvable:$true] %s190
          %193 = dma.vmem_to_hbm [thread:$0]  %s191, 128, %s188, %s177
        $region40: #{tpu_custom_call.1} parent=27 // pred_fallthru
          _
      $region28: #{tpu_custom_call.1} parent=5 // pred_fallthru
        _
      %p194 = scmp.le.s32.totalorder 2, %s15
      // Predicated region
      $region41: #{tpu_custom_call.1} parent=5 // pred_check
        %p195 = pneg %p194
      $region42: #{tpu_custom_call.1} parent=5 // pred_check_branch
        %197 = sbr.rel (%p195) target = $region44
      $region43: #{tpu_custom_call.1} parent=5 // pred_region
        %s198 = ssub.s32 %s15, 2
        // Predicated region
        $region45: #{tpu_custom_call.1} parent=43 // pred_check
          %p199 = pneg %p91
        $region46: #{tpu_custom_call.1} parent=43 // pred_check_branch
          %201 = sbr.rel (%p199) target = $region48
        $region47: #{tpu_custom_call.1} parent=43 // pred_region
          %s202 = sand.u32 %s76, 1
          %s203 = scalar_lea.sflag [#allocation4], %s202
          %s204 = sand.u32 %s76, 1
          %s205 = smul.addr %s204, 8
          %s206 = scalar_lea.vmem [#allocation7], %s205
          %207 = dma.done %s203, 128
        $region48: #{tpu_custom_call.1} parent=43 // pred_fallthru
          _
      $region44: #{tpu_custom_call.1} parent=5 // pred_fallthru
        _
    $region6: #{tpu_custom_call.1} parent=1 // loop_footer
      %s19 = sadd.s32 1, %s15
    $region7: #{tpu_custom_call.1} parent=1 // loop_footer_branch
      %14 = sbr.rel target = $region3
    $region8: #{tpu_custom_call.1} parent=1 // loop_exit
      _
    %208 = vsyncpa [#allocation3], 1
    %s209 = scalar_lea.sflag [#allocation3], 1
    %210 = vsyncpa %s209, 1
    %211 = vsyncpa [#allocation6], 1
    %212 = vsyncpa [#allocation4], 1
    %s213 = scalar_lea.sflag [#allocation4], 1
    %214 = vsyncpa %s213, 1

// kernel: task_prediction_obj_target.6
$region0: #{task_prediction_obj_target.6}
  #allocation0 [shape = 'u32[]', space=smem, size = 0x4, offset = 0x4, fixed_abs, tag = 'smem constant byte address 0x4 - core index']
  #allocation1 [shape = 'u32[144,128]{1,0:T(1,128)}', space=vmem, size = 0x12000, scoped, tag = 'internal scratch']
  %s0 = inlined_call_operand.vmem [shape: f32[2,8,32], index: 0, kind: input, shape index: {}]
  %s1 = inlined_call_operand.vmem [shape: f32[8,32], index: 1, kind: input, shape index: {}]
  %s2 = inlined_call_operand.vmem [shape: f32[1,32], index: 2, kind: input, shape index: {}]
  %s3 = inlined_call_operand.vmem [shape: f32[1,32], index: 3, kind: input, shape index: {}]
  %s4 = inlined_call_operand.vmem [shape: f32[1,32], index: 4, kind: input, shape index: {}]
  %s5 = inlined_call_operand.vmem [shape: bf16[2,8,32], index: 5, kind: output, shape index: {}]
  %s6 = sld [smem:[#allocation0]]
  $region53: #{task_prediction_obj_target.6} parent=0
    _
  %s8 = ssub.s32 1, %s6
  %s9 = scalar_select 0, %s8, %s6
  loop: start=0, step=1, limit=4
  $region2: #{task_prediction_obj_target.6} parent=0 // loop_pre_header
    _
  $region3: #{task_prediction_obj_target.6} parent=0 // loop_header
    %s11 = sphi 0, %s15
    %p12 = scmp.ge.s32.totalorder %s11, 4
    %s21 = sphi 0, %s23
    %s24 = sphi 0, %s21
    %s25 = sphi 0, %s24
    %s41 = sphi 0, %s25
    %s45 = sphi 0, %s45
    %s47 = sphi 0, %s45
    %s48 = sphi 0, %s47
    %s62 = sphi 0, %s48
    %s66 = sphi 0, %s66
    %s68 = sphi 0, %s66
    %s69 = sphi 0, %s68
    %s83 = sphi 0, %s69
    %s87 = sphi 0, %s87
    %s89 = sphi 0, %s87
    %s90 = sphi 0, %s89
    %s104 = sphi 0, %s90
    %s108 = sphi 0, %s108
    %s110 = sphi 0, %s108
    %s111 = sphi 0, %s110
    %s125 = sphi 0, %s111
    %s131 = sphi 0, %s133
    %s134 = sphi 0, %s131
    %s135 = sphi 0, %s134
    %s151 = sphi 0, %s135
  $region4: #{task_prediction_obj_target.6} parent=0 // loop_header_branch
    %14 = sbr.rel (%p12) target = $region8
  $region5: #{task_prediction_obj_target.6} parent=0 // loop_body
    %s16 = ssub.s32 %s11, 1
    %s17 = ssub.s32 %s11, 2
    %s18 = sadd.s32 %s11, 1
    %s19 = ssub.s32 %s11, %s18
    %p20 = scmp.eq.s32.totalorder %s19, 0
    %s22 = sadd.s32 %s21, 1
    %s23 = scalar_select %p20, %s21, %s22
    %p26 = pneg %p20
    %p27 = scmp.eq.s32.totalorder %s11, 1
    %p28 = por %p26, %p27
    %p29 = scmp.ne.s32.totalorder %s21, %s24
    %p30 = scmp.eq.s32.totalorder %s11, 0
    %p31 = por %p29, %p30
    %p32 = scmp.ne.s32.totalorder %s21, %s24
    %p33 = scmp.eq.s32.totalorder %s16, 1
    %p34 = por %p32, %p33
    %p35 = scmp.ne.s32.totalorder %s24, %s25
    %p36 = scmp.eq.s32.totalorder %s16, 0
    %p37 = por %p35, %p36
    %p38 = scmp.ne.s32.totalorder %s24, %s25
    %p39 = scmp.eq.s32.totalorder %s17, 1
    %p40 = por %p38, %p39
    %p42 = scmp.ne.s32.totalorder %s25, %s41
    %p43 = scmp.eq.s32.totalorder %s17, 0
    %p44 = por %p42, %p43
    %s46 = sadd.s32 %s45, 1
    %p49 = scmp.eq.s32.totalorder %s11, 1
    %p50 = scmp.ne.s32.totalorder %s45, %s47
    %p51 = scmp.eq.s32.totalorder %s11, 0
    %p52 = por %p50, %p51
    %p53 = scmp.ne.s32.totalorder %s45, %s47
    %p54 = scmp.eq.s32.totalorder %s16, 1
    %p55 = por %p53, %p54
    %p56 = scmp.ne.s32.totalorder %s47, %s48
    %p57 = scmp.eq.s32.totalorder %s16, 0
    %p58 = por %p56, %p57
    %p59 = scmp.ne.s32.totalorder %s47, %s48
    %p60 = scmp.eq.s32.totalorder %s17, 1
    %p61 = por %p59, %p60
    %p63 = scmp.ne.s32.totalorder %s48, %s62
    %p64 = scmp.eq.s32.totalorder %s17, 0
    %p65 = por %p63, %p64
    %s67 = sadd.s32 %s66, 1
    %p70 = scmp.eq.s32.totalorder %s11, 1
    %p71 = scmp.ne.s32.totalorder %s66, %s68
    %p72 = scmp.eq.s32.totalorder %s11, 0
    %p73 = por %p71, %p72
    %p74 = scmp.ne.s32.totalorder %s66, %s68
    %p75 = scmp.eq.s32.totalorder %s16, 1
    %p76 = por %p74, %p75
    %p77 = scmp.ne.s32.totalorder %s68, %s69
    %p78 = scmp.eq.s32.totalorder %s16, 0
    %p79 = por %p77, %p78
    %p80 = scmp.ne.s32.totalorder %s68, %s69
    %p81 = scmp.eq.s32.totalorder %s17, 1
    %p82 = por %p80, %p81
    %p84 = scmp.ne.s32.totalorder %s69, %s83
    %p85 = scmp.eq.s32.totalorder %s17, 0
    %p86 = por %p84, %p85
    %s88 = sadd.s32 %s87, 1
    %p91 = scmp.eq.s32.totalorder %s11, 1
    %p92 = scmp.ne.s32.totalorder %s87, %s89
    %p93 = scmp.eq.s32.totalorder %s11, 0
    %p94 = por %p92, %p93
    %p95 = scmp.ne.s32.totalorder %s87, %s89
    %p96 = scmp.eq.s32.totalorder %s16, 1
    %p97 = por %p95, %p96
    %p98 = scmp.ne.s32.totalorder %s89, %s90
    %p99 = scmp.eq.s32.totalorder %s16, 0
    %p100 = por %p98, %p99
    %p101 = scmp.ne.s32.totalorder %s89, %s90
    %p102 = scmp.eq.s32.totalorder %s17, 1
    %p103 = por %p101, %p102
    %p105 = scmp.ne.s32.totalorder %s90, %s104
    %p106 = scmp.eq.s32.totalorder %s17, 0
    %p107 = por %p105, %p106
    %s109 = sadd.s32 %s108, 1
    %p112 = scmp.eq.s32.totalorder %s11, 1
    %p113 = scmp.ne.s32.totalorder %s108, %s110
    %p114 = scmp.eq.s32.totalorder %s11, 0
    %p115 = por %p113, %p114
    %p116 = scmp.ne.s32.totalorder %s108, %s110
    %p117 = scmp.eq.s32.totalorder %s16, 1
    %p118 = por %p116, %p117
    %p119 = scmp.ne.s32.totalorder %s110, %s111
    %p120 = scmp.eq.s32.totalorder %s16, 0
    %p121 = por %p119, %p120
    %p122 = scmp.ne.s32.totalorder %s110, %s111
    %p123 = scmp.eq.s32.totalorder %s17, 1
    %p124 = por %p122, %p123
    %p126 = scmp.ne.s32.totalorder %s111, %s125
    %p127 = scmp.eq.s32.totalorder %s17, 0
    %p128 = por %p126, %p127
    %s129 = ssub.s32 %s11, %s18
    %p130 = scmp.eq.s32.totalorder %s129, 0
    %s132 = sadd.s32 %s131, 1
    %s133 = scalar_select %p130, %s131, %s132
    %p136 = pneg %p130
    %p137 = scmp.eq.s32.totalorder %s11, 1
    %p138 = por %p136, %p137
    %p139 = scmp.ne.s32.totalorder %s131, %s134
    %p140 = scmp.eq.s32.totalorder %s11, 0
    %p141 = por %p139, %p140
    %p142 = scmp.ne.s32.totalorder %s131, %s134
    %p143 = scmp.eq.s32.totalorder %s16, 1
    %p144 = por %p142, %p143
    %p145 = scmp.ne.s32.totalorder %s134, %s135
    %p146 = scmp.eq.s32.totalorder %s16, 0
    %p147 = por %p145, %p146
    %p148 = scmp.ne.s32.totalorder %s134, %s135
    %p149 = scmp.eq.s32.totalorder %s17, 1
    %p150 = por %p148, %p149
    %p152 = scmp.ne.s32.totalorder %s135, %s151
    %p153 = scmp.eq.s32.totalorder %s17, 0
    %p154 = por %p152, %p153
    %p155 = scmp.le.s32.totalorder 1, %s11
    %p156 = scmp.lt.s32.totalorder %s11, 3
    %p157 = pnand %p155, %p156
    %p158 = pneg %p157
    // Predicated region
    $region9: #{task_prediction_obj_target.6} parent=5 // pred_check
      _
    $region10: #{task_prediction_obj_target.6} parent=5 // pred_check_branch
      %160 = sbr.rel (%p157) target = $region12
    $region11: #{task_prediction_obj_target.6} parent=5 // pred_region
      %s161 = ssub.s32 %s11, 1
      // Predicated region
      $region13: #{task_prediction_obj_target.6} parent=11 // pred_check
        %p162 = pneg %p58
      $region14: #{task_prediction_obj_target.6} parent=11 // pred_check_branch
        %164 = sbr.rel (%p162) target = $region16
      $region15: #{task_prediction_obj_target.6} parent=11 // pred_region
        _
      $region16: #{task_prediction_obj_target.6} parent=11 // pred_fallthru
        _
      // Predicated region
      $region17: #{task_prediction_obj_target.6} parent=11 // pred_check
        %p165 = pneg %p79
      $region18: #{task_prediction_obj_target.6} parent=11 // pred_check_branch
        %167 = sbr.rel (%p165) target = $region20
      $region19: #{task_prediction_obj_target.6} parent=11 // pred_region
        _
      $region20: #{task_prediction_obj_target.6} parent=11 // pred_fallthru
        _
      // Predicated region
      $region21: #{task_prediction_obj_target.6} parent=11 // pred_check
        %p168 = pneg %p100
      $region22: #{task_prediction_obj_target.6} parent=11 // pred_check_branch
        %170 = sbr.rel (%p168) target = $region24
      $region23: #{task_prediction_obj_target.6} parent=11 // pred_region
        _
      $region24: #{task_prediction_obj_target.6} parent=11 // pred_fallthru
        _
      // Predicated region
      $region25: #{task_prediction_obj_target.6} parent=11 // pred_check
        %p171 = pneg %p121
      $region26: #{task_prediction_obj_target.6} parent=11 // pred_check_branch
        %173 = sbr.rel (%p171) target = $region28
      $region27: #{task_prediction_obj_target.6} parent=11 // pred_region
        _
      $region28: #{task_prediction_obj_target.6} parent=11 // pred_fallthru
        _
    $region12: #{task_prediction_obj_target.6} parent=5 // pred_fallthru
      _
    %p174 = scmp.lt.s32.totalorder %s11, 2
    // Predicated region
    $region29: #{task_prediction_obj_target.6} parent=5 // pred_check
      %p175 = pneg %p174
    $region30: #{task_prediction_obj_target.6} parent=5 // pred_check_branch
      %177 = sbr.rel (%p175) target = $region32
    $region31: #{task_prediction_obj_target.6} parent=5 // pred_region
      // Predicated region
      $region33: #{task_prediction_obj_target.6} parent=31 // pred_check
        %p178 = pneg %p31
      $region34: #{task_prediction_obj_target.6} parent=31 // pred_check_branch
        %180 = sbr.rel (%p178) target = $region36
      $region35: #{task_prediction_obj_target.6} parent=31 // pred_region
        %p181 = scmp.lt.s32.totalorder %s11, 1
        %s182 = scalar_select %p181, %s11, 1
        %s183 = smul.addr %s182, 8
        %s184 = scalar_lea.vmem %s0, %s183
      $region36: #{task_prediction_obj_target.6} parent=31 // pred_fallthru
        _
    $region32: #{task_prediction_obj_target.6} parent=5 // pred_fallthru
      _
    %p185 = scmp.le.s32.totalorder 1, %s11
    %p186 = scmp.lt.s32.totalorder %s11, 3
    %p187 = pnand %p185, %p186
    %p188 = pneg %p187
    // Predicated region
    $region37: #{task_prediction_obj_target.6} parent=5 // pred_check
      _
    $region38: #{task_prediction_obj_target.6} parent=5 // pred_check_branch
      %190 = sbr.rel (%p187) target = $region40
    $region39: #{task_prediction_obj_target.6} parent=5 // pred_region
      %s191 = ssub.s32 %s11, 1
      %p192 = scmp.lt.s32.totalorder %s16, 1
      %s193 = scalar_select %p192, %s16, 1
      %s194 = smul.addr %s193, 8
      %s195 = scalar_lea.vmem %s0, %s194
      %p196 = pneg %p37
      %p197 = pneg %p34
      %p198 = pneg %p58
      %p199 = pneg %p55
      %p200 = pneg %p79
      %p201 = pneg %p76
      %p202 = pneg %p100
      %p203 = pneg %p97
      %p204 = pneg %p121
      %p205 = pneg %p118
      %p206 = pneg %p147
      %p207 = pneg %p144
      %p208 = scmp.lt.s32.totalorder %s16, 1
      %s209 = scalar_select %p208, %s16, 1
      %s210 = smul.addr %s209, 4
      %s211 = scalar_lea.vmem %s5, %s210
      %p212 = scmp.lt.s32.totalorder %s16, 1
      %s213 = scalar_select %p212, %s16, 1
      %s214 = smul.addr %s213, 8
      %s215 = scalar_lea.vmem %s0, %s214
      %p216 = scmp.lt.s32.totalorder %s16, 1
      %s217 = scalar_select %p216, %s16, 1
      %s218 = smul.addr %s217, 4
      %s219 = scalar_lea.vmem %s5, %s218
      %v220 = vld [vmem:[%s215] sm:$0xff]
      %v221 = vld [vmem:[%s1] sm:$0xff]
      %v222 = vadd.f32 %v220, %v221
      %v223 = vld [vmem:[%s2] sm:$0x1]
      %v225 = vlaneseq
      %v226 = vshrl.u32 %v225, 7
      %v227 = vsub.s32 0, %v226
      %v228 = vrot.slane %v223, %v227
      %v230 = vadd.f32 %v222, %v228
      %v231 = vld [vmem:[%s3] sm:$0x1]
      %v232 = vld [vmem:[%s4] sm:$0x1]
      %vm233 = vcmask 261120
      %v234 = vsel %vm233, %v230, 0.0
      %235 = vadd.xlane.f32.xlu0 %v234
      %v236 = vpop.xlane.xlu0 %235
      %v237 = vrcp.pop 32.0
      %v238 = vmul.f32 %v236, %v237
      %v239 = vsub.f32 %v230, %v238
      %v240 = vmul.f32 %v239, %v239
      %v241 = vsel %vm233, %v240, 0.0
      %242 = vadd.xlane.f32.xlu0 %v241
      %v243 = vpop.xlane.xlu0 %242
      %v244 = vmul.f32 %v243, %v237
      %v245 = vadd.f32 %v244, 1e-12
      %v246 = vrsqrt.pop %v245
      %v247 = vmul.f32 %v239, %v246
      %v249 = vlaneseq
      %v250 = vshrl.u32 %v249, 7
      %v251 = vsub.s32 0, %v250
      %v252 = vrot.slane %v231, %v251
      %v254 = vmul.f32 %v247, %v252
      %v256 = vlaneseq
      %v257 = vshrl.u32 %v256, 7
      %v258 = vsub.s32 0, %v257
      %v259 = vrot.slane %v232, %v258
      %v261 = vadd.f32 %v254, %v259
      %v262 = vpack.c.bf16 %v261, %v261
      %vm263 = vcmask 257024
      %264 = vst.msk [vmem:[%s219] sm:$0xf] %vm263, %v262
      %p265 = scmp.lt.s32.totalorder %s16, 1
      %s266 = scalar_select %p265, %s16, 1
      %s267 = smul.addr %s266, 4
      %s268 = scalar_lea.vmem %s5, %s267
      // Predicated region
      $region41: #{task_prediction_obj_target.6} parent=39 // pred_check
        %p269 = pneg %p144
      $region42: #{task_prediction_obj_target.6} parent=39 // pred_check_branch
        %271 = sbr.rel (%p269) target = $region44
      $region43: #{task_prediction_obj_target.6} parent=39 // pred_region
        _
      $region44: #{task_prediction_obj_target.6} parent=39 // pred_fallthru
        _
    $region40: #{task_prediction_obj_target.6} parent=5 // pred_fallthru
      _
    %p272 = scmp.le.s32.totalorder 2, %s11
    // Predicated region
    $region45: #{task_prediction_obj_target.6} parent=5 // pred_check
      %p273 = pneg %p272
    $region46: #{task_prediction_obj_target.6} parent=5 // pred_check_branch
      %275 = sbr.rel (%p273) target = $region48
    $region47: #{task_prediction_obj_target.6} parent=5 // pred_region
      %s276 = ssub.s32 %s11, 2
      // Predicated region
      $region49: #{task_prediction_obj_target.6} parent=47 // pred_check
        %p277 = pneg %p150
      $region50: #{task_prediction_obj_target.6} parent=47 // pred_check_branch
        %279 = sbr.rel (%p277) target = $region52
      $region51: #{task_prediction_obj_target.6} parent=47 // pred_region
        %p280 = scmp.lt.s32.totalorder %s17, 1
        %s281 = scalar_select %p280, %s17, 1
        %s282 = smul.addr %s281, 4
        %s283 = scalar_lea.vmem %s5, %s282
      $region52: #{task_prediction_obj_target.6} parent=47 // pred_fallthru
        _
    $region48: #{task_prediction_obj_target.6} parent=5 // pred_fallthru
      _
  $region6: #{task_prediction_obj_target.6} parent=0 // loop_footer
    %s15 = sadd.s32 1, %s11
  $region7: #{task_prediction_obj_target.6} parent=0 // loop_footer_branch
    %10 = sbr.rel target = $region3
  $region8: #{task_prediction_obj_target.6} parent=0 // loop_exit
    _

// kernel: task_prediction_obj_target.11
$region0: #{task_prediction_obj_target.11}
  #allocation0 [shape = 'u32[]', space=smem, size = 0x4, offset = 0x4, fixed_abs, tag = 'smem constant byte address 0x4 - core index']
  #allocation1 [shape = 'u32[144,128]{1,0:T(1,128)}', space=vmem, size = 0x12000, scoped, tag = 'internal scratch']
  %s0 = inlined_call_operand.vmem [shape: bf16[2,32], index: 0, kind: input, shape index: {}]
  %s1 = inlined_call_operand.vmem [shape: bf16[32,32], index: 1, kind: input, shape index: {}]
  %s2 = inlined_call_operand.vmem [shape: f32[1,32], index: 2, kind: input, shape index: {}]
  %s3 = inlined_call_operand.vmem [shape: bf16[32,16], index: 3, kind: input, shape index: {}]
  %s4 = inlined_call_operand.vmem [shape: f32[1,16], index: 4, kind: input, shape index: {}]
  %s5 = inlined_call_operand.vmem [shape: bf16[16,128], index: 5, kind: input, shape index: {}]
  %s6 = inlined_call_operand.vmem [shape: f32[1,128], index: 6, kind: input, shape index: {}]
  %s7 = inlined_call_operand.hbm [shape: f32[2,128], index: 7, kind: output, shape index: {}]
  %s8 = sld [smem:[#allocation0]]
  $region38: #{task_prediction_obj_target.11} parent=0
    _
  %s10 = ssub.s32 1, %s8
  %s11 = scalar_select 0, %s10, %s8
  $region1: #{task_prediction_obj_target.11} parent=0
    #allocation2 [shape = 'u8[1024]{0}', space=vmem, size = 0x400, scoped, tag = 'output window, operand 0, single buffered']
    #allocation3 [shape = 's32[1]{0}', space=sflag, size = 0x4, scoped, tag = 'scoped memory for task_prediction_obj_target.11']
    %12 = vsyncpa [#allocation3], 0
    // Predicated region
    $region2: #{task_prediction_obj_target.11} parent=1 // pred_check
      _
    $region3: #{task_prediction_obj_target.11} parent=1 // pred_check_branch
      %14 = sbr.rel (0) target = $region5
    $region4: #{task_prediction_obj_target.11} parent=1 // pred_region
      _
    $region5: #{task_prediction_obj_target.11} parent=1 // pred_fallthru
      _
    // Predicated region
    $region6: #{task_prediction_obj_target.11} parent=1 // pred_check
      _
    $region7: #{task_prediction_obj_target.11} parent=1 // pred_check_branch
      %16 = sbr.rel (0) target = $region9
    $region8: #{task_prediction_obj_target.11} parent=1 // pred_region
      _
    $region9: #{task_prediction_obj_target.11} parent=1 // pred_fallthru
      _
    // Predicated region
    $region10: #{task_prediction_obj_target.11} parent=1 // pred_check
      _
    $region11: #{task_prediction_obj_target.11} parent=1 // pred_check_branch
      %18 = sbr.rel (0) target = $region13
    $region12: #{task_prediction_obj_target.11} parent=1 // pred_region
      _
    $region13: #{task_prediction_obj_target.11} parent=1 // pred_fallthru
      _
    // Predicated region
    $region14: #{task_prediction_obj_target.11} parent=1 // pred_check
      _
    $region15: #{task_prediction_obj_target.11} parent=1 // pred_check_branch
      %20 = sbr.rel (0) target = $region17
    $region16: #{task_prediction_obj_target.11} parent=1 // pred_region
      _
    $region17: #{task_prediction_obj_target.11} parent=1 // pred_fallthru
      _
    // Predicated region
    $region18: #{task_prediction_obj_target.11} parent=1 // pred_check
      _
    $region19: #{task_prediction_obj_target.11} parent=1 // pred_check_branch
      %22 = sbr.rel (0) target = $region21
    $region20: #{task_prediction_obj_target.11} parent=1 // pred_region
      _
    $region21: #{task_prediction_obj_target.11} parent=1 // pred_fallthru
      _
    // Predicated region
    $region22: #{task_prediction_obj_target.11} parent=1 // pred_check
      _
    $region23: #{task_prediction_obj_target.11} parent=1 // pred_check_branch
      %24 = sbr.rel (0) target = $region25
    $region24: #{task_prediction_obj_target.11} parent=1 // pred_region
      _
    $region25: #{task_prediction_obj_target.11} parent=1 // pred_fallthru
      _
    // Predicated region
    $region26: #{task_prediction_obj_target.11} parent=1 // pred_check
      _
    $region27: #{task_prediction_obj_target.11} parent=1 // pred_check_branch
      %26 = sbr.rel (0) target = $region29
    $region28: #{task_prediction_obj_target.11} parent=1 // pred_region
      _
    $region29: #{task_prediction_obj_target.11} parent=1 // pred_fallthru
      _
    %v28 = vld [vmem:[%s0] sm:$0x1]
    %v29 = vld [vmem:[%s1] sm:$0xf]
    %v30 = vld [vmem:[%s1 + $0x4] sm:$0xf]
    %v31 = vld [vmem:[%s1 + $0x8] sm:$0xf]
    %v32 = vld [vmem:[%s1 + $0xc] sm:$0xf]
    %v33 = vld [vmem:[%s2] sm:$0x1]
    %v35 = vlaneseq
    %v36 = vshrl.u32 %v35, 7
    %v37 = vsub.s32 0, %v36
    %v38 = vrot.slane %v33, %v37
    %v44 = vunpack.c.l.b16 %v29
    %v45 = vunpack.c.l.b16 %v30
    %v46 = vunpack.c.l.b16 %v31
    %v47 = vunpack.c.l.b16 %v32
    %v48 = vpack.c.b16 %v45, %v44
    %v49 = vpack.c.b16 %v47, %v46
    %vm52 = vcmask 261120
    %v54 = vsel %vm52, %v28, 0
    %56 = vmatprep.subr.bf16.mxu0 0
    %57 = vmatpush1.bf16.msra.mxu0 %v48
    %58 = vmatprep.subr.bf16.mxu0 0
    %59 = vmatpush1.bf16.msra.mxu0 %v49
    %60 = vmatprep.subr.bf16.mxu0 0
    %61 = vmatpush1.bf16.msra.mxu0 0
    %62 = vmatprep.subr.bf16.mxu0 0
    %63 = vmatpush1.bf16.msra.mxu0 0
    %64 = vmatprep.subr.bf16.mxu0 0
    %65 = vmatpush1.bf16.msra.mxu0 0
    %66 = vmatprep.subr.bf16.mxu0 0
    %67 = vmatpush1.bf16.msra.mxu0 0
    %68 = vmatprep.subr.bf16.mxu0 0
    %69 = vmatpush1.bf16.msra.mxu0 0
    %70 = vmatprep.subr.bf16.mxu0 0
    %71 = vmatpush1.bf16.msra.mxu0 0
    %72 = vmatprep.subr.bf16.mxu0 0
    %73 = vmatpush1.bf16.msra.mxu0 0
    %74 = vmatprep.subr.bf16.mxu0 0
    %75 = vmatpush1.bf16.msra.mxu0 0
    %76 = vmatprep.subr.bf16.mxu0 0
    %77 = vmatpush1.bf16.msra.mxu0 0
    %78 = vmatprep.subr.bf16.mxu0 0
    %79 = vmatpush1.bf16.msra.mxu0 0
    %80 = vmatprep.subr.bf16.mxu0 0
    %81 = vmatpush1.bf16.msra.mxu0 0
    %82 = vmatprep.subr.bf16.mxu0 0
    %83 = vmatpush1.bf16.msra.mxu0 0
    %84 = vmatprep.subr.bf16.mxu0 0
    %85 = vmatpush1.bf16.msra.mxu0 0
    %86 = vmatprep.subr.bf16.mxu0 0
    %87 = vmatpush1.bf16.msra.mxu0 0
    %88 = vmatprep.mubr.bf16.mxu0 0
    %89 = vmatmul.mubr.bf16.gmra.mrb[0].mxu0 %v54
    %v90 = vpop.f32.mrb[0].mxu0
    %v91 = vadd.f32 %v38, %v90
    %v92 = vpop.f32.mrb[0].mxu0
    %v93 = vpop.f32.mrb[0].mxu0
    %v94 = vpop.f32.mrb[0].mxu0
    %95 = vdwg.mxu0
    %v96 = vtanh.pop %v91
    %v97 = vpack.c.bf16 %v96, %v96
    %v98 = vld [vmem:[%s3] sm:$0xf]
    %v99 = vld [vmem:[%s3 + $0x4] sm:$0xf]
    %v100 = vld [vmem:[%s3 + $0x8] sm:$0xf]
    %v101 = vld [vmem:[%s3 + $0xc] sm:$0xf]
    %v102 = vld [vmem:[%s4] sm:$0x1]
    %v104 = vlaneseq
    %v105 = vshrl.u32 %v104, 7
    %v106 = vsub.s32 0, %v105
    %v107 = vrot.slane %v102, %v106
    %v113 = vunpack.c.l.b16 %v98
    %v114 = vunpack.c.l.b16 %v99
    %v115 = vunpack.c.l.b16 %v100
    %v116 = vunpack.c.l.b16 %v101
    %v117 = vpack.c.b16 %v114, %v113
    %v118 = vpack.c.b16 %v116, %v115
    %v122 = vsel %vm52, %v97, 0
    %124 = vmatprep.subr.bf16.mxu0 0
    %125 = vmatpush1.bf16.msra.mxu0 %v117
    %126 = vmatprep.subr.bf16.mxu0 0
    %127 = vmatpush1.bf16.msra.mxu0 %v118
    %128 = vmatprep.subr.bf16.mxu0 0
    %129 = vmatpush1.bf16.msra.mxu0 0
    %130 = vmatprep.subr.bf16.mxu0 0
    %131 = vmatpush1.bf16.msra.mxu0 0
    %132 = vmatprep.subr.bf16.mxu0 0
    %133 = vmatpush1.bf16.msra.mxu0 0
    %134 = vmatprep.subr.bf16.mxu0 0
    %135 = vmatpush1.bf16.msra.mxu0 0
    %136 = vmatprep.subr.bf16.mxu0 0
    %137 = vmatpush1.bf16.msra.mxu0 0
    %138 = vmatprep.subr.bf16.mxu0 0
    %139 = vmatpush1.bf16.msra.mxu0 0
    %140 = vmatprep.subr.bf16.mxu0 0
    %141 = vmatpush1.bf16.msra.mxu0 0
    %142 = vmatprep.subr.bf16.mxu0 0
    %143 = vmatpush1.bf16.msra.mxu0 0
    %144 = vmatprep.subr.bf16.mxu0 0
    %145 = vmatpush1.bf16.msra.mxu0 0
    %146 = vmatprep.subr.bf16.mxu0 0
    %147 = vmatpush1.bf16.msra.mxu0 0
    %148 = vmatprep.subr.bf16.mxu0 0
    %149 = vmatpush1.bf16.msra.mxu0 0
    %150 = vmatprep.subr.bf16.mxu0 0
    %151 = vmatpush1.bf16.msra.mxu0 0
    %152 = vmatprep.subr.bf16.mxu0 0
    %153 = vmatpush1.bf16.msra.mxu0 0
    %154 = vmatprep.subr.bf16.mxu0 0
    %155 = vmatpush1.bf16.msra.mxu0 0
    %156 = vmatprep.mubr.bf16.mxu0 0
    %157 = vmatmul.mubr.bf16.gmra.mrb[0].mxu0 %v122
    %v158 = vpop.f32.mrb[0].mxu0
    %v159 = vadd.f32 %v107, %v158
    %v160 = vpop.f32.mrb[0].mxu0
    %v161 = vpop.f32.mrb[0].mxu0
    %v162 = vpop.f32.mrb[0].mxu0
    %163 = vdwg.mxu0
    %v164 = vmax.f32 %v159, 0.0
    %v165 = vpack.c.bf16 %v164, %v164
    %v166 = vld [vmem:[%s5] sm:$0xf]
    %v167 = vld [vmem:[%s5 + $0x4] sm:$0xf]
    %v168 = vld [vmem:[%s6] sm:$0x1]
    %v170 = vlaneseq
    %v171 = vshrl.u32 %v170, 7
    %v172 = vsub.s32 0, %v171
    %v173 = vrot.slane %v168, %v172
    %v177 = vunpack.c.l.b16 %v166
    %v178 = vunpack.c.l.b16 %v167
    %v179 = vpack.c.b16 %v178, %v177
    %vm181 = vcmask 130048
    %v183 = vsel %vm181, %v165, 0
    %185 = vmatprep.subr.bf16.mxu0 0
    %186 = vmatpush1.bf16.msra.mxu0 %v179
    %187 = vmatprep.subr.bf16.mxu0 0
    %188 = vmatpush1.bf16.msra.mxu0 0
    %189 = vmatprep.subr.bf16.mxu0 0
    %190 = vmatpush1.bf16.msra.mxu0 0
    %191 = vmatprep.subr.bf16.mxu0 0
    %192 = vmatpush1.bf16.msra.mxu0 0
    %193 = vmatprep.subr.bf16.mxu0 0
    %194 = vmatpush1.bf16.msra.mxu0 0
    %195 = vmatprep.subr.bf16.mxu0 0
    %196 = vmatpush1.bf16.msra.mxu0 0
    %197 = vmatprep.subr.bf16.mxu0 0
    %198 = vmatpush1.bf16.msra.mxu0 0
    %199 = vmatprep.subr.bf16.mxu0 0
    %200 = vmatpush1.bf16.msra.mxu0 0
    %201 = vmatprep.subr.bf16.mxu0 0
    %202 = vmatpush1.bf16.msra.mxu0 0
    %203 = vmatprep.subr.bf16.mxu0 0
    %204 = vmatpush1.bf16.msra.mxu0 0
    %205 = vmatprep.subr.bf16.mxu0 0
    %206 = vmatpush1.bf16.msra.mxu0 0
    %207 = vmatprep.subr.bf16.mxu0 0
    %208 = vmatpush1.bf16.msra.mxu0 0
    %209 = vmatprep.subr.bf16.mxu0 0
    %210 = vmatpush1.bf16.msra.mxu0 0
    %211 = vmatprep.subr.bf16.mxu0 0
    %212 = vmatpush1.bf16.msra.mxu0 0
    %213 = vmatprep.subr.bf16.mxu0 0
    %214 = vmatpush1.bf16.msra.mxu0 0
    %215 = vmatprep.subr.bf16.mxu0 0
    %216 = vmatpush1.bf16.msra.mxu0 0
    %217 = vmatprep.mubr.bf16.mxu0 0
    %218 = vmatmul.mubr.bf16.gmra.mrb[0].mxu0 %v183
    %v219 = vpop.f32.mrb[0].mxu0
    %v220 = vadd.f32 %v173, %v219
    %v221 = vpop.f32.mrb[0].mxu0
    %v222 = vpop.f32.mrb[0].mxu0
    %v223 = vpop.f32.mrb[0].mxu0
    %224 = vdwg.mxu0
    %225 = vst [vmem:[#allocation2] sm:$0x3] %v220
    // Predicated region
    $region30: #{task_prediction_obj_target.11} parent=1 // pred_check
      _
    $region31: #{task_prediction_obj_target.11} parent=1 // pred_check_branch
      %227 = sbr.rel (0) target = $region33
    $region32: #{task_prediction_obj_target.11} parent=1 // pred_region
      %s229 = ssub.s32 32, 32
      %230 = vsyncadd [#allocation3], %s229
      %s232 = sshll.u32 [#allocation2], 4
      %s233 = int_to_ptr.vmem [resolvable:$true] %s232
      %235 = dma.vmem_to_hbm [thread:$0]  %s233, 32, %s7, [#allocation3]
    $region33: #{task_prediction_obj_target.11} parent=1 // pred_fallthru
      _
    // Predicated region
    $region34: #{task_prediction_obj_target.11} parent=1 // pred_check
      _
    $region35: #{task_prediction_obj_target.11} parent=1 // pred_check_branch
      %237 = sbr.rel (0) target = $region37
    $region36: #{task_prediction_obj_target.11} parent=1 // pred_region
      %238 = dma.done [#allocation3], 32
    $region37: #{task_prediction_obj_target.11} parent=1 // pred_fallthru
      _
    %239 = vsyncpa [#allocation3], 1

// kernel: task_prediction_obj_target.8
$region0: #{task_prediction_obj_target.8}
  #allocation0 [shape = 'u32[]', space=smem, size = 0x4, offset = 0x4, fixed_abs, tag = 'smem constant byte address 0x4 - core index']
  #allocation1 [shape = 'u32[144,128]{1,0:T(1,128)}', space=vmem, size = 0x12000, scoped, tag = 'internal scratch']
  %s0 = inlined_call_operand.vmem [shape: bf16[16,32], index: 0, kind: input, shape index: {}]
  %s1 = inlined_call_operand.vmem [shape: bf16[32,64], index: 1, kind: input, shape index: {}]
  %s2 = inlined_call_operand.vmem [shape: f32[1,64], index: 2, kind: input, shape index: {}]
  %s3 = inlined_call_operand.vmem [shape: bf16[64,32], index: 3, kind: input, shape index: {}]
  %s4 = inlined_call_operand.vmem [shape: f32[1,32], index: 4, kind: input, shape index: {}]
  %s5 = inlined_call_operand.vmem [shape: f32[1,32], index: 5, kind: input, shape index: {}]
  %s6 = inlined_call_operand.vmem [shape: f32[1,32], index: 6, kind: input, shape index: {}]
  %s7 = inlined_call_operand.vmem [shape: bf16[16,32], index: 7, kind: output, shape index: {}]
  %s8 = sld [smem:[#allocation0]]
  $region38: #{task_prediction_obj_target.8} parent=0
    _
  %s10 = ssub.s32 1, %s8
  %s11 = scalar_select 0, %s10, %s8
  // Predicated region
  $region2: #{task_prediction_obj_target.8} parent=0 // pred_check
    _
  $region3: #{task_prediction_obj_target.8} parent=0 // pred_check_branch
    %13 = sbr.rel (0) target = $region5
  $region4: #{task_prediction_obj_target.8} parent=0 // pred_region
    _
  $region5: #{task_prediction_obj_target.8} parent=0 // pred_fallthru
    _
  // Predicated region
  $region6: #{task_prediction_obj_target.8} parent=0 // pred_check
    _
  $region7: #{task_prediction_obj_target.8} parent=0 // pred_check_branch
    %15 = sbr.rel (0) target = $region9
  $region8: #{task_prediction_obj_target.8} parent=0 // pred_region
    _
  $region9: #{task_prediction_obj_target.8} parent=0 // pred_fallthru
    _
  // Predicated region
  $region10: #{task_prediction_obj_target.8} parent=0 // pred_check
    _
  $region11: #{task_prediction_obj_target.8} parent=0 // pred_check_branch
    %17 = sbr.rel (0) target = $region13
  $region12: #{task_prediction_obj_target.8} parent=0 // pred_region
    _
  $region13: #{task_prediction_obj_target.8} parent=0 // pred_fallthru
    _
  // Predicated region
  $region14: #{task_prediction_obj_target.8} parent=0 // pred_check
    _
  $region15: #{task_prediction_obj_target.8} parent=0 // pred_check_branch
    %19 = sbr.rel (0) target = $region17
  $region16: #{task_prediction_obj_target.8} parent=0 // pred_region
    _
  $region17: #{task_prediction_obj_target.8} parent=0 // pred_fallthru
    _
  // Predicated region
  $region18: #{task_prediction_obj_target.8} parent=0 // pred_check
    _
  $region19: #{task_prediction_obj_target.8} parent=0 // pred_check_branch
    %21 = sbr.rel (0) target = $region21
  $region20: #{task_prediction_obj_target.8} parent=0 // pred_region
    _
  $region21: #{task_prediction_obj_target.8} parent=0 // pred_fallthru
    _
  // Predicated region
  $region22: #{task_prediction_obj_target.8} parent=0 // pred_check
    _
  $region23: #{task_prediction_obj_target.8} parent=0 // pred_check_branch
    %23 = sbr.rel (0) target = $region25
  $region24: #{task_prediction_obj_target.8} parent=0 // pred_region
    _
  $region25: #{task_prediction_obj_target.8} parent=0 // pred_fallthru
    _
  // Predicated region
  $region26: #{task_prediction_obj_target.8} parent=0 // pred_check
    _
  $region27: #{task_prediction_obj_target.8} parent=0 // pred_check_branch
    %25 = sbr.rel (0) target = $region29
  $region28: #{task_prediction_obj_target.8} parent=0 // pred_region
    _
  $region29: #{task_prediction_obj_target.8} parent=0 // pred_fallthru
    _
  %v27 = vld [vmem:[%s0] sm:$0xf]
  %v28 = vld [vmem:[%s0 + $0x4] sm:$0xf]
  %v29 = vld [vmem:[%s1] sm:$0xf]
  %v30 = vld [vmem:[%s1 + $0x4] sm:$0xf]
  %v31 = vld [vmem:[%s1 + $0x8] sm:$0xf]
  %v32 = vld [vmem:[%s1 + $0xc] sm:$0xf]
  %v33 = vld [vmem:[%s2] sm:$0x1]
  %v35 = vlaneseq
  %v36 = vshrl.u32 %v35, 7
  %v37 = vsub.s32 0, %v36
  %v38 = vrot.slane %v33, %v37
  %v42 = vunpack.c.l.b16 %v27
  %v43 = vunpack.c.l.b16 %v28
  %v44 = vpack.c.b16 %v43, %v42
  %v49 = vunpack.c.l.b16 %v29
  %v50 = vunpack.c.l.b16 %v30
  %v51 = vunpack.c.l.b16 %v31
  %v52 = vunpack.c.l.b16 %v32
  %v53 = vpack.c.b16 %v50, %v49
  %v54 = vpack.c.b16 %v52, %v51
  %vm57 = vcmask 261120
  %v59 = vsel %vm57, %v44, 0
  %61 = vmatprep.subr.bf16.mxu0 0
  %62 = vmatpush1.bf16.msra.mxu0 %v53
  %63 = vmatprep.subr.bf16.mxu0 0
  %64 = vmatpush1.bf16.msra.mxu0 %v54
  %65 = vmatprep.subr.bf16.mxu0 0
  %66 = vmatpush1.bf16.msra.mxu0 0
  %67 = vmatprep.subr.bf16.mxu0 0
  %68 = vmatpush1.bf16.msra.mxu0 0
  %69 = vmatprep.subr.bf16.mxu0 0
  %70 = vmatpush1.bf16.msra.mxu0 0
  %71 = vmatprep.subr.bf16.mxu0 0
  %72 = vmatpush1.bf16.msra.mxu0 0
  %73 = vmatprep.subr.bf16.mxu0 0
  %74 = vmatpush1.bf16.msra.mxu0 0
  %75 = vmatprep.subr.bf16.mxu0 0
  %76 = vmatpush1.bf16.msra.mxu0 0
  %77 = vmatprep.subr.bf16.mxu0 0
  %78 = vmatpush1.bf16.msra.mxu0 0
  %79 = vmatprep.subr.bf16.mxu0 0
  %80 = vmatpush1.bf16.msra.mxu0 0
  %81 = vmatprep.subr.bf16.mxu0 0
  %82 = vmatpush1.bf16.msra.mxu0 0
  %83 = vmatprep.subr.bf16.mxu0 0
  %84 = vmatpush1.bf16.msra.mxu0 0
  %85 = vmatprep.subr.bf16.mxu0 0
  %86 = vmatpush1.bf16.msra.mxu0 0
  %87 = vmatprep.subr.bf16.mxu0 0
  %88 = vmatpush1.bf16.msra.mxu0 0
  %89 = vmatprep.subr.bf16.mxu0 0
  %90 = vmatpush1.bf16.msra.mxu0 0
  %91 = vmatprep.subr.bf16.mxu0 0
  %92 = vmatpush1.bf16.msra.mxu0 0
  %93 = vmatprep.mubr.bf16.mxu0 0
  %94 = vmatmul.mubr.bf16.gmra.mrb[0].mxu0 %v59
  %v95 = vpop.f32.mrb[0].mxu0
  %v96 = vadd.f32 %v38, %v95
  %v97 = vpop.f32.mrb[0].mxu0
  %v98 = vpop.f32.mrb[0].mxu0
  %v99 = vadd.f32 %v38, %v98
  %v100 = vpop.f32.mrb[0].mxu0
  %101 = vdwg.mxu0
  %v102 = vmul.f32 %v96, %v96
  %v103 = vmul.f32 %v99, %v99
  %v104 = vmul.f32 %v96, %v102
  %v105 = vmul.f32 %v99, %v103
  %v106 = vmul.f32 %v104, 0.044715
  %v107 = vmul.f32 %v105, 0.044715
  %v108 = vadd.f32 %v96, %v106
  %v109 = vadd.f32 %v99, %v107
  %v110 = vmul.f32 %v108, 0.7978846
  %v111 = vmul.f32 %v109, 0.7978846
  %v112 = vtanh.pop %v110
  %v113 = vtanh.pop %v111
  %v114 = vadd.f32 %v112, 1.0
  %v115 = vadd.f32 %v113, 1.0
  %v116 = vmul.f32 %v114, 0.5
  %v117 = vmul.f32 %v115, 0.5
  %v118 = vmul.f32 %v96, %v116
  %v119 = vmul.f32 %v99, %v117
  %v120 = vpack.c.bf16 %v119, %v118
  %v121 = vld [vmem:[%s3] sm:$0xf]
  %v122 = vld [vmem:[%s3 + $0x4] sm:$0xf]
  %v123 = vld [vmem:[%s3 + $0x8] sm:$0xf]
  %v124 = vld [vmem:[%s3 + $0xc] sm:$0xf]
  %v125 = vld [vmem:[%s3 + $0x10] sm:$0xf]
  %v126 = vld [vmem:[%s3 + $0x14] sm:$0xf]
  %v127 = vld [vmem:[%s3 + $0x18] sm:$0xf]
  %v128 = vld [vmem:[%s3 + $0x1c] sm:$0xf]
  %v129 = vld [vmem:[%s4] sm:$0x1]
  %v131 = vlaneseq
  %v132 = vshrl.u32 %v131, 7
  %v133 = vsub.s32 0, %v132
  %v134 = vrot.slane %v129, %v133
  %v144 = vunpack.c.l.b16 %v121
  %v145 = vunpack.c.l.b16 %v122
  %v146 = vunpack.c.l.b16 %v123
  %v147 = vunpack.c.l.b16 %v124
  %v148 = vunpack.c.l.b16 %v125
  %v149 = vunpack.c.l.b16 %v126
  %v150 = vunpack.c.l.b16 %v127
  %v151 = vunpack.c.l.b16 %v128
  %v152 = vpack.c.b16 %v145, %v144
  %v153 = vpack.c.b16 %v147, %v146
  %v154 = vpack.c.b16 %v149, %v148
  %v155 = vpack.c.b16 %v151, %v150
  %vm160 = vcmask 523264
  %v162 = vsel %vm160, %v120, 0
  %164 = vmatprep.subr.bf16.mxu0 0
  %165 = vmatpush1.bf16.msra.mxu0 %v152
  %166 = vmatprep.subr.bf16.mxu0 0
  %167 = vmatpush1.bf16.msra.mxu0 %v153
  %168 = vmatprep.subr.bf16.mxu0 0
  %169 = vmatpush1.bf16.msra.mxu0 %v154
  %170 = vmatprep.subr.bf16.mxu0 0
  %171 = vmatpush1.bf16.msra.mxu0 %v155
  %172 = vmatprep.subr.bf16.mxu0 0
  %173 = vmatpush1.bf16.msra.mxu0 0
  %174 = vmatprep.subr.bf16.mxu0 0
  %175 = vmatpush1.bf16.msra.mxu0 0
  %176 = vmatprep.subr.bf16.mxu0 0
  %177 = vmatpush1.bf16.msra.mxu0 0
  %178 = vmatprep.subr.bf16.mxu0 0
  %179 = vmatpush1.bf16.msra.mxu0 0
  %180 = vmatprep.subr.bf16.mxu0 0
  %181 = vmatpush1.bf16.msra.mxu0 0
  %182 = vmatprep.subr.bf16.mxu0 0
  %183 = vmatpush1.bf16.msra.mxu0 0
  %184 = vmatprep.subr.bf16.mxu0 0
  %185 = vmatpush1.bf16.msra.mxu0 0
  %186 = vmatprep.subr.bf16.mxu0 0
  %187 = vmatpush1.bf16.msra.mxu0 0
  %188 = vmatprep.subr.bf16.mxu0 0
  %189 = vmatpush1.bf16.msra.mxu0 0
  %190 = vmatprep.subr.bf16.mxu0 0
  %191 = vmatpush1.bf16.msra.mxu0 0
  %192 = vmatprep.subr.bf16.mxu0 0
  %193 = vmatpush1.bf16.msra.mxu0 0
  %194 = vmatprep.subr.bf16.mxu0 0
  %195 = vmatpush1.bf16.msra.mxu0 0
  %196 = vmatprep.mubr.bf16.mxu0 0
  %197 = vmatmul.mubr.bf16.gmra.mrb[0].mxu0 %v162
  %v198 = vpop.f32.mrb[0].mxu0
  %v199 = vadd.f32 %v134, %v198
  %v200 = vpop.f32.mrb[0].mxu0
  %v201 = vpop.f32.mrb[0].mxu0
  %v202 = vadd.f32 %v134, %v201
  %v203 = vpop.f32.mrb[0].mxu0
  %204 = vdwg.mxu0
  %v205 = vunpack.c.l.bf16 %v27
  %v206 = vunpack.c.l.bf16 %v28
  %v207 = vadd.f32 %v205, %v199
  %v208 = vadd.f32 %v206, %v202
  %v209 = vld [vmem:[%s5] sm:$0x1]
  %v210 = vld [vmem:[%s6] sm:$0x1]
  %v211 = vsel %vm57, %v207, 0.0
  %212 = vadd.xlane.f32.xlu0 %v211
  %v213 = vpop.xlane.xlu0 %212
  %v214 = vsel %vm57, %v208, 0.0
  %215 = vadd.xlane.f32.xlu0 %v214
  %v216 = vpop.xlane.xlu0 %215
  %v217 = vrcp.pop 32.0
  %v218 = vmul.f32 %v213, %v217
  %v219 = vmul.f32 %v216, %v217
  %v220 = vsub.f32 %v207, %v218
  %v221 = vsub.f32 %v208, %v219
  %v222 = vmul.f32 %v220, %v220
  %v223 = vmul.f32 %v221, %v221
  %v224 = vsel %vm57, %v222, 0.0
  %225 = vadd.xlane.f32.xlu0 %v224
  %v226 = vpop.xlane.xlu0 %225
  %v227 = vsel %vm57, %v223, 0.0
  %228 = vadd.xlane.f32.xlu0 %v227
  %v229 = vpop.xlane.xlu0 %228
  %v230 = vmul.f32 %v226, %v217
  %v231 = vmul.f32 %v229, %v217
  %v232 = vadd.f32 %v230, 1e-12
  %v233 = vadd.f32 %v231, 1e-12
  %v234 = vrsqrt.pop %v232
  %v235 = vrsqrt.pop %v233
  %v236 = vmul.f32 %v220, %v234
  %v237 = vmul.f32 %v221, %v235
  %v239 = vlaneseq
  %v240 = vshrl.u32 %v239, 7
  %v241 = vsub.s32 0, %v240
  %v242 = vrot.slane %v209, %v241
  %v244 = vmul.f32 %v236, %v242
  %v245 = vmul.f32 %v237, %v242
  %v247 = vlaneseq
  %v248 = vshrl.u32 %v247, 7
  %v249 = vsub.s32 0, %v248
  %v250 = vrot.slane %v210, %v249
  %v252 = vadd.f32 %v244, %v250
  %v253 = vadd.f32 %v245, %v250
  %v254 = vpack.c.bf16 %v253, %v252
  %v256 = vunpack.c.l.b16 %v254
  %v257 = vunpack.c.h.b16 %v254
  %v258 = vpack.c.b16 %v256, %v256
  %v259 = vpack.c.b16 %v257, %v257
  %vm262 = vcmask 257024
  %263 = vst.msk [vmem:[%s7] sm:$0xf] %vm262, %v258
  %264 = vst.msk [vmem:[%s7 + $0x4] sm:$0xf] %vm262, %v259
  // Predicated region
  $region30: #{task_prediction_obj_target.8} parent=0 // pred_check
    _
  $region31: #{task_prediction_obj_target.8} parent=0 // pred_check_branch
    %266 = sbr.rel (0) target = $region33
  $region32: #{task_prediction_obj_target.8} parent=0 // pred_region
    _
  $region33: #{task_prediction_obj_target.8} parent=0 // pred_fallthru
    _
  // Predicated region
  $region34: #{task_prediction_obj_target.8} parent=0 // pred_check
    _
  $region35: #{task_prediction_obj_target.8} parent=0 // pred_check_branch
    %268 = sbr.rel (0) target = $region37
  $region36: #{task_prediction_obj_target.8} parent=0 // pred_region
    _
  $region37: #{task_prediction_obj_target.8} parent=0 // pred_fallthru
    _

// kernel: task_prediction_obj_target.7
$region0: #{task_prediction_obj_target.7}
  #allocation0 [shape = 'u32[]', space=smem, size = 0x4, offset = 0x4, fixed_abs, tag = 'smem constant byte address 0x4 - core index']
  #allocation1 [shape = 'u32[144,128]{1,0:T(1,128)}', space=vmem, size = 0x12000, scoped, tag = 'internal scratch']
  %s0 = inlined_call_operand.vmem [shape: bf16[2,8,32], index: 0, kind: input, shape index: {}]
  %s1 = inlined_call_operand.vmem [shape: bf16[32,96], index: 1, kind: input, shape index: {}]
  %s2 = inlined_call_operand.vmem [shape: f32[1,96], index: 2, kind: input, shape index: {}]
  %s3 = inlined_call_operand.vmem [shape: bf16[32,32], index: 3, kind: input, shape index: {}]
  %s4 = inlined_call_operand.vmem [shape: f32[1,32], index: 4, kind: input, shape index: {}]
  %s5 = inlined_call_operand.vmem [shape: f32[1,32], index: 5, kind: input, shape index: {}]
  %s6 = inlined_call_operand.vmem [shape: f32[1,32], index: 6, kind: input, shape index: {}]
  %s7 = inlined_call_operand.vmem [shape: bf16[2,8,32], index: 7, kind: output, shape index: {}]
  %s8 = sld [smem:[#allocation0]]
  $region61: #{task_prediction_obj_target.7} parent=0
    _
  %s10 = ssub.s32 1, %s8
  %s11 = scalar_select 0, %s10, %s8
  loop: start=0, step=1, limit=4
  $region2: #{task_prediction_obj_target.7} parent=0 // loop_pre_header
    _
  $region3: #{task_prediction_obj_target.7} parent=0 // loop_header
    %s13 = sphi 0, %s17
    %p14 = scmp.ge.s32.totalorder %s13, 4
    %s23 = sphi 0, %s25
    %s26 = sphi 0, %s23
    %s27 = sphi 0, %s26
    %s43 = sphi 0, %s27
    %s47 = sphi 0, %s47
    %s49 = sphi 0, %s47
    %s50 = sphi 0, %s49
    %s64 = sphi 0, %s50
    %s68 = sphi 0, %s68
    %s70 = sphi 0, %s68
    %s71 = sphi 0, %s70
    %s85 = sphi 0, %s71
    %s89 = sphi 0, %s89
    %s91 = sphi 0, %s89
    %s92 = sphi 0, %s91
    %s106 = sphi 0, %s92
    %s110 = sphi 0, %s110
    %s112 = sphi 0, %s110
    %s113 = sphi 0, %s112
    %s127 = sphi 0, %s113
    %s131 = sphi 0, %s131
    %s133 = sphi 0, %s131
    %s134 = sphi 0, %s133
    %s148 = sphi 0, %s134
    %s152 = sphi 0, %s152
    %s154 = sphi 0, %s152
    %s155 = sphi 0, %s154
    %s169 = sphi 0, %s155
    %s175 = sphi 0, %s177
    %s178 = sphi 0, %s175
    %s179 = sphi 0, %s178
    %s195 = sphi 0, %s179
  $region4: #{task_prediction_obj_target.7} parent=0 // loop_header_branch
    %16 = sbr.rel (%p14) target = $region8
  $region5: #{task_prediction_obj_target.7} parent=0 // loop_body
    %s18 = ssub.s32 %s13, 1
    %s19 = ssub.s32 %s13, 2
    %s20 = sadd.s32 %s13, 1
    %s21 = ssub.s32 %s13, %s20
    %p22 = scmp.eq.s32.totalorder %s21, 0
    %s24 = sadd.s32 %s23, 1
    %s25 = scalar_select %p22, %s23, %s24
    %p28 = pneg %p22
    %p29 = scmp.eq.s32.totalorder %s13, 1
    %p30 = por %p28, %p29
    %p31 = scmp.ne.s32.totalorder %s23, %s26
    %p32 = scmp.eq.s32.totalorder %s13, 0
    %p33 = por %p31, %p32
    %p34 = scmp.ne.s32.totalorder %s23, %s26
    %p35 = scmp.eq.s32.totalorder %s18, 1
    %p36 = por %p34, %p35
    %p37 = scmp.ne.s32.totalorder %s26, %s27
    %p38 = scmp.eq.s32.totalorder %s18, 0
    %p39 = por %p37, %p38
    %p40 = scmp.ne.s32.totalorder %s26, %s27
    %p41 = scmp.eq.s32.totalorder %s19, 1
    %p42 = por %p40, %p41
    %p44 = scmp.ne.s32.totalorder %s27, %s43
    %p45 = scmp.eq.s32.totalorder %s19, 0
    %p46 = por %p44, %p45
    %s48 = sadd.s32 %s47, 1
    %p51 = scmp.eq.s32.totalorder %s13, 1
    %p52 = scmp.ne.s32.totalorder %s47, %s49
    %p53 = scmp.eq.s32.totalorder %s13, 0
    %p54 = por %p52, %p53
    %p55 = scmp.ne.s32.totalorder %s47, %s49
    %p56 = scmp.eq.s32.totalorder %s18, 1
    %p57 = por %p55, %p56
    %p58 = scmp.ne.s32.totalorder %s49, %s50
    %p59 = scmp.eq.s32.totalorder %s18, 0
    %p60 = por %p58, %p59
    %p61 = scmp.ne.s32.totalorder %s49, %s50
    %p62 = scmp.eq.s32.totalorder %s19, 1
    %p63 = por %p61, %p62
    %p65 = scmp.ne.s32.totalorder %s50, %s64
    %p66 = scmp.eq.s32.totalorder %s19, 0
    %p67 = por %p65, %p66
    %s69 = sadd.s32 %s68, 1
    %p72 = scmp.eq.s32.totalorder %s13, 1
    %p73 = scmp.ne.s32.totalorder %s68, %s70
    %p74 = scmp.eq.s32.totalorder %s13, 0
    %p75 = por %p73, %p74
    %p76 = scmp.ne.s32.totalorder %s68, %s70
    %p77 = scmp.eq.s32.totalorder %s18, 1
    %p78 = por %p76, %p77
    %p79 = scmp.ne.s32.totalorder %s70, %s71
    %p80 = scmp.eq.s32.totalorder %s18, 0
    %p81 = por %p79, %p80
    %p82 = scmp.ne.s32.totalorder %s70, %s71
    %p83 = scmp.eq.s32.totalorder %s19, 1
    %p84 = por %p82, %p83
    %p86 = scmp.ne.s32.totalorder %s71, %s85
    %p87 = scmp.eq.s32.totalorder %s19, 0
    %p88 = por %p86, %p87
    %s90 = sadd.s32 %s89, 1
    %p93 = scmp.eq.s32.totalorder %s13, 1
    %p94 = scmp.ne.s32.totalorder %s89, %s91
    %p95 = scmp.eq.s32.totalorder %s13, 0
    %p96 = por %p94, %p95
    %p97 = scmp.ne.s32.totalorder %s89, %s91
    %p98 = scmp.eq.s32.totalorder %s18, 1
    %p99 = por %p97, %p98
    %p100 = scmp.ne.s32.totalorder %s91, %s92
    %p101 = scmp.eq.s32.totalorder %s18, 0
    %p102 = por %p100, %p101
    %p103 = scmp.ne.s32.totalorder %s91, %s92
    %p104 = scmp.eq.s32.totalorder %s19, 1
    %p105 = por %p103, %p104
    %p107 = scmp.ne.s32.totalorder %s92, %s106
    %p108 = scmp.eq.s32.totalorder %s19, 0
    %p109 = por %p107, %p108
    %s111 = sadd.s32 %s110, 1
    %p114 = scmp.eq.s32.totalorder %s13, 1
    %p115 = scmp.ne.s32.totalorder %s110, %s112
    %p116 = scmp.eq.s32.totalorder %s13, 0
    %p117 = por %p115, %p116
    %p118 = scmp.ne.s32.totalorder %s110, %s112
    %p119 = scmp.eq.s32.totalorder %s18, 1
    %p120 = por %p118, %p119
    %p121 = scmp.ne.s32.totalorder %s112, %s113
    %p122 = scmp.eq.s32.totalorder %s18, 0
    %p123 = por %p121, %p122
    %p124 = scmp.ne.s32.totalorder %s112, %s113
    %p125 = scmp.eq.s32.totalorder %s19, 1
    %p126 = por %p124, %p125
    %p128 = scmp.ne.s32.totalorder %s113, %s127
    %p129 = scmp.eq.s32.totalorder %s19, 0
    %p130 = por %p128, %p129
    %s132 = sadd.s32 %s131, 1
    %p135 = scmp.eq.s32.totalorder %s13, 1
    %p136 = scmp.ne.s32.totalorder %s131, %s133
    %p137 = scmp.eq.s32.totalorder %s13, 0
    %p138 = por %p136, %p137
    %p139 = scmp.ne.s32.totalorder %s131, %s133
    %p140 = scmp.eq.s32.totalorder %s18, 1
    %p141 = por %p139, %p140
    %p142 = scmp.ne.s32.totalorder %s133, %s134
    %p143 = scmp.eq.s32.totalorder %s18, 0
    %p144 = por %p142, %p143
    %p145 = scmp.ne.s32.totalorder %s133, %s134
    %p146 = scmp.eq.s32.totalorder %s19, 1
    %p147 = por %p145, %p146
    %p149 = scmp.ne.s32.totalorder %s134, %s148
    %p150 = scmp.eq.s32.totalorder %s19, 0
    %p151 = por %p149, %p150
    %s153 = sadd.s32 %s152, 1
    %p156 = scmp.eq.s32.totalorder %s13, 1
    %p157 = scmp.ne.s32.totalorder %s152, %s154
    %p158 = scmp.eq.s32.totalorder %s13, 0
    %p159 = por %p157, %p158
    %p160 = scmp.ne.s32.totalorder %s152, %s154
    %p161 = scmp.eq.s32.totalorder %s18, 1
    %p162 = por %p160, %p161
    %p163 = scmp.ne.s32.totalorder %s154, %s155
    %p164 = scmp.eq.s32.totalorder %s18, 0
    %p165 = por %p163, %p164
    %p166 = scmp.ne.s32.totalorder %s154, %s155
    %p167 = scmp.eq.s32.totalorder %s19, 1
    %p168 = por %p166, %p167
    %p170 = scmp.ne.s32.totalorder %s155, %s169
    %p171 = scmp.eq.s32.totalorder %s19, 0
    %p172 = por %p170, %p171
    %s173 = ssub.s32 %s13, %s20
    %p174 = scmp.eq.s32.totalorder %s173, 0
    %s176 = sadd.s32 %s175, 1
    %s177 = scalar_select %p174, %s175, %s176
    %p180 = pneg %p174
    %p181 = scmp.eq.s32.totalorder %s13, 1
    %p182 = por %p180, %p181
    %p183 = scmp.ne.s32.totalorder %s175, %s178
    %p184 = scmp.eq.s32.totalorder %s13, 0
    %p185 = por %p183, %p184
    %p186 = scmp.ne.s32.totalorder %s175, %s178
    %p187 = scmp.eq.s32.totalorder %s18, 1
    %p188 = por %p186, %p187
    %p189 = scmp.ne.s32.totalorder %s178, %s179
    %p190 = scmp.eq.s32.totalorder %s18, 0
    %p191 = por %p189, %p190
    %p192 = scmp.ne.s32.totalorder %s178, %s179
    %p193 = scmp.eq.s32.totalorder %s19, 1
    %p194 = por %p192, %p193
    %p196 = scmp.ne.s32.totalorder %s179, %s195
    %p197 = scmp.eq.s32.totalorder %s19, 0
    %p198 = por %p196, %p197
    %p199 = scmp.le.s32.totalorder 1, %s13
    %p200 = scmp.lt.s32.totalorder %s13, 3
    %p201 = pnand %p199, %p200
    %p202 = pneg %p201
    // Predicated region
    $region9: #{task_prediction_obj_target.7} parent=5 // pred_check
      _
    $region10: #{task_prediction_obj_target.7} parent=5 // pred_check_branch
      %204 = sbr.rel (%p201) target = $region12
    $region11: #{task_prediction_obj_target.7} parent=5 // pred_region
      %s205 = ssub.s32 %s13, 1
      // Predicated region
      $region13: #{task_prediction_obj_target.7} parent=11 // pred_check
        %p206 = pneg %p60
      $region14: #{task_prediction_obj_target.7} parent=11 // pred_check_branch
        %208 = sbr.rel (%p206) target = $region16
      $region15: #{task_prediction_obj_target.7} parent=11 // pred_region
        _
      $region16: #{task_prediction_obj_target.7} parent=11 // pred_fallthru
        _
      // Predicated region
      $region17: #{task_prediction_obj_target.7} parent=11 // pred_check
        %p209 = pneg %p81
      $region18: #{task_prediction_obj_target.7} parent=11 // pred_check_branch
        %211 = sbr.rel (%p209) target = $region20
      $region19: #{task_prediction_obj_target.7} parent=11 // pred_region
        _
      $region20: #{task_prediction_obj_target.7} parent=11 // pred_fallthru
        _
      // Predicated region
      $region21: #{task_prediction_obj_target.7} parent=11 // pred_check
        %p212 = pneg %p102
      $region22: #{task_prediction_obj_target.7} parent=11 // pred_check_branch
        %214 = sbr.rel (%p212) target = $region24
      $region23: #{task_prediction_obj_target.7} parent=11 // pred_region
        _
      $region24: #{task_prediction_obj_target.7} parent=11 // pred_fallthru
        _
      // Predicated region
      $region25: #{task_prediction_obj_target.7} parent=11 // pred_check
        %p215 = pneg %p123
      $region26: #{task_prediction_obj_target.7} parent=11 // pred_check_branch
        %217 = sbr.rel (%p215) target = $region28
      $region27: #{task_prediction_obj_target.7} parent=11 // pred_region
        _
      $region28: #{task_prediction_obj_target.7} parent=11 // pred_fallthru
        _
      // Predicated region
      $region29: #{task_prediction_obj_target.7} parent=11 // pred_check
        %p218 = pneg %p144
      $region30: #{task_prediction_obj_target.7} parent=11 // pred_check_branch
        %220 = sbr.rel (%p218) target = $region32
      $region31: #{task_prediction_obj_target.7} parent=11 // pred_region
        _
      $region32: #{task_prediction_obj_target.7} parent=11 // pred_fallthru
        _
      // Predicated region
      $region33: #{task_prediction_obj_target.7} parent=11 // pred_check
        %p221 = pneg %p165
      $region34: #{task_prediction_obj_target.7} parent=11 // pred_check_branch
        %223 = sbr.rel (%p221) target = $region36
      $region35: #{task_prediction_obj_target.7} parent=11 // pred_region
        _
      $region36: #{task_prediction_obj_target.7} parent=11 // pred_fallthru
        _
    $region12: #{task_prediction_obj_target.7} parent=5 // pred_fallthru
      _
    %p224 = scmp.lt.s32.totalorder %s13, 2
    // Predicated region
    $region37: #{task_prediction_obj_target.7} parent=5 // pred_check
      %p225 = pneg %p224
    $region38: #{task_prediction_obj_target.7} parent=5 // pred_check_branch
      %227 = sbr.rel (%p225) target = $region40
    $region39: #{task_prediction_obj_target.7} parent=5 // pred_region
      // Predicated region
      $region41: #{task_prediction_obj_target.7} parent=39 // pred_check
        %p228 = pneg %p33
      $region42: #{task_prediction_obj_target.7} parent=39 // pred_check_branch
        %230 = sbr.rel (%p228) target = $region44
      $region43: #{task_prediction_obj_target.7} parent=39 // pred_region
        %p231 = scmp.lt.s32.totalorder %s13, 1
        %s232 = scalar_select %p231, %s13, 1
        %s233 = smul.addr %s232, 4
        %s234 = scalar_lea.vmem %s0, %s233
      $region44: #{task_prediction_obj_target.7} parent=39 // pred_fallthru
        _
    $region40: #{task_prediction_obj_target.7} parent=5 // pred_fallthru
      _
    %p235 = scmp.le.s32.totalorder 1, %s13
    %p236 = scmp.lt.s32.totalorder %s13, 3
    %p237 = pnand %p235, %p236
    %p238 = pneg %p237
    // Predicated region
    $region45: #{task_prediction_obj_target.7} parent=5 // pred_check
      _
    $region46: #{task_prediction_obj_target.7} parent=5 // pred_check_branch
      %240 = sbr.rel (%p237) target = $region48
    $region47: #{task_prediction_obj_target.7} parent=5 // pred_region
      %s241 = ssub.s32 %s13, 1
      %p242 = scmp.lt.s32.totalorder %s18, 1
      %s243 = scalar_select %p242, %s18, 1
      %s244 = smul.addr %s243, 4
      %s245 = scalar_lea.vmem %s0, %s244
      %p246 = pneg %p39
      %p247 = pneg %p36
      %p248 = pneg %p60
      %p249 = pneg %p57
      %p250 = pneg %p81
      %p251 = pneg %p78
      %p252 = pneg %p102
      %p253 = pneg %p99
      %p254 = pneg %p123
      %p255 = pneg %p120
      %p256 = pneg %p144
      %p257 = pneg %p141
      %p258 = pneg %p165
      %p259 = pneg %p162
      %p260 = pneg %p191
      %p261 = pneg %p188
      %p262 = scmp.lt.s32.totalorder %s18, 1
      %s263 = scalar_select %p262, %s18, 1
      %s264 = smul.addr %s263, 4
      %s265 = scalar_lea.vmem %s7, %s264
      %p266 = scmp.lt.s32.totalorder %s18, 1
      %s267 = scalar_select %p266, %s18, 1
      %s268 = smul.addr %s267, 4
      %s269 = scalar_lea.vmem %s0, %s268
      %p270 = scmp.lt.s32.totalorder %s18, 1
      %s271 = scalar_select %p270, %s18, 1
      %s272 = smul.addr %s271, 4
      %s273 = scalar_lea.vmem %s7, %s272
      %v275 = vld [vmem:[%s269] sm:$0xf]
      %v276 = vld [vmem:[%s1] sm:$0xf]
      %v277 = vld [vmem:[%s1 + $0x4] sm:$0xf]
      %v278 = vld [vmem:[%s1 + $0x8] sm:$0xf]
      %v279 = vld [vmem:[%s1 + $0xc] sm:$0xf]
      %v280 = vld [vmem:[%s2] sm:$0x1]
      %v282 = vlaneseq
      %v283 = vshrl.u32 %v282, 7
      %v284 = vsub.s32 0, %v283
      %v285 = vrot.slane %v280, %v284
      %v291 = vunpack.c.l.b16 %v276
      %v292 = vunpack.c.l.b16 %v277
      %v293 = vunpack.c.l.b16 %v278
      %v294 = vunpack.c.l.b16 %v279
      %v295 = vpack.c.b16 %v292, %v291
      %v296 = vpack.c.b16 %v294, %v293
      %vm299 = vcmask 261120
      %v301 = vsel %vm299, %v275, 0
      %303 = vmatprep.subr.bf16.mxu0 0
      %304 = vmatpush1.bf16.msra.mxu0 %v295
      %305 = vmatprep.subr.bf16.mxu0 0
      %306 = vmatpush1.bf16.msra.mxu0 %v296
      %307 = vmatprep.subr.bf16.mxu0 0
      %308 = vmatpush1.bf16.msra.mxu0 0
      %309 = vmatprep.subr.bf16.mxu0 0
      %310 = vmatpush1.bf16.msra.mxu0 0
      %311 = vmatprep.subr.bf16.mxu0 0
      %312 = vmatpush1.bf16.msra.mxu0 0
      %313 = vmatprep.subr.bf16.mxu0 0
      %314 = vmatpush1.bf16.msra.mxu0 0
      %315 = vmatprep.subr.bf16.mxu0 0
      %316 = vmatpush1.bf16.msra.mxu0 0
      %317 = vmatprep.subr.bf16.mxu0 0
      %318 = vmatpush1.bf16.msra.mxu0 0
      %319 = vmatprep.subr.bf16.mxu0 0
      %320 = vmatpush1.bf16.msra.mxu0 0
      %321 = vmatprep.subr.bf16.mxu0 0
      %322 = vmatpush1.bf16.msra.mxu0 0
      %323 = vmatprep.subr.bf16.mxu0 0
      %324 = vmatpush1.bf16.msra.mxu0 0
      %325 = vmatprep.subr.bf16.mxu0 0
      %326 = vmatpush1.bf16.msra.mxu0 0
      %327 = vmatprep.subr.bf16.mxu0 0
      %328 = vmatpush1.bf16.msra.mxu0 0
      %329 = vmatprep.subr.bf16.mxu0 0
      %330 = vmatpush1.bf16.msra.mxu0 0
      %331 = vmatprep.subr.bf16.mxu0 0
      %332 = vmatpush1.bf16.msra.mxu0 0
      %333 = vmatprep.subr.bf16.mxu0 0
      %334 = vmatpush1.bf16.msra.mxu0 0
      %335 = vmatprep.mubr.bf16.mxu0 0
      %336 = vmatmul.mubr.bf16.gmra.mrb[0].mxu0 %v301
      %v337 = vpop.f32.mrb[0].mxu0
      %v338 = vadd.f32 %v285, %v337
      %v339 = vpop.f32.mrb[0].mxu0
      %v340 = vpop.f32.mrb[0].mxu0
      %v341 = vpop.f32.mrb[0].mxu0
      %342 = vdwg.mxu0
      %v343 = vpack.c.bf16 %v338, %v338
      %345 = vrot.lane.b32.xlu0 %v343, 120
      %v346 = vpop.permute.xlu0 %345
      %347 = vrot.lane.b32.xlu0 %v343, 112
      %v348 = vpop.permute.xlu0 %347
      %349 = vrot.lane.b32.xlu0 %v343, 104
      %v350 = vpop.permute.xlu0 %349
      %351 = vrot.lane.b32.xlu0 %v343, 96
      %v352 = vpop.permute.xlu0 %351
      %353 = vrot.lane.b32.xlu0 %v346, 96
      %v354 = vpop.permute.xlu0 %353
      %355 = vrot.lane.b32.xlu0 %v348, 96
      %v356 = vpop.permute.xlu0 %355
      %357 = vrot.lane.b32.xlu0 %v350, 96
      %v358 = vpop.permute.xlu0 %357
      %363 = vxpose.xlu0.c.b16.start [1/8] %v352, 128
      %364 = vxpose.xlu0.c.b16.cont [2/8] 0, 128
      %365 = vxpose.xlu0.c.b16.cont [3/8] 0, 128
      %366 = vxpose.xlu0.c.b16.cont [4/8] 0, 128
      %367 = vxpose.xlu0.c.b16.cont [5/8] 0, 128
      %368 = vxpose.xlu0.c.b16.cont [6/8] 0, 128
      %369 = vxpose.xlu0.c.b16.cont [7/8] 0, 128
      %370 = vxpose.xlu0.c.b16.end [8/8] 0, 128
      %v371 = vpop.trf.xlu0
      %v372 = vpop.trf.xlu0
      %v373 = vpop.trf.xlu0
      %v374 = vpop.trf.xlu0
      %v375 = vpop.trf.xlu0
      %v376 = vpop.trf.xlu0
      %v377 = vpop.trf.xlu0
      %v378 = vpop.trf.xlu0
      %379 = vxpose.xlu0.c.b16.start [1/8] %v354, 128
      %380 = vxpose.xlu0.c.b16.cont [2/8] 0, 128
      %381 = vxpose.xlu0.c.b16.cont [3/8] 0, 128
      %382 = vxpose.xlu0.c.b16.cont [4/8] 0, 128
      %383 = vxpose.xlu0.c.b16.cont [5/8] 0, 128
      %384 = vxpose.xlu0.c.b16.cont [6/8] 0, 128
      %385 = vxpose.xlu0.c.b16.cont [7/8] 0, 128
      %386 = vxpose.xlu0.c.b16.end [8/8] 0, 128
      %v387 = vpop.trf.xlu0
      %v388 = vpop.trf.xlu0
      %v389 = vpop.trf.xlu0
      %v390 = vpop.trf.xlu0
      %v391 = vpop.trf.xlu0
      %v392 = vpop.trf.xlu0
      %v393 = vpop.trf.xlu0
      %v394 = vpop.trf.xlu0
      %395 = vxpose.xlu0.c.b16.start [1/8] %v356, 128
      %396 = vxpose.xlu0.c.b16.cont [2/8] 0, 128
      %397 = vxpose.xlu0.c.b16.cont [3/8] 0, 128
      %398 = vxpose.xlu0.c.b16.cont [4/8] 0, 128
      %399 = vxpose.xlu0.c.b16.cont [5/8] 0, 128
      %400 = vxpose.xlu0.c.b16.cont [6/8] 0, 128
      %401 = vxpose.xlu0.c.b16.cont [7/8] 0, 128
      %402 = vxpose.xlu0.c.b16.end [8/8] 0, 128
      %v403 = vpop.trf.xlu0
      %v404 = vpop.trf.xlu0
      %v405 = vpop.trf.xlu0
      %v406 = vpop.trf.xlu0
      %v407 = vpop.trf.xlu0
      %v408 = vpop.trf.xlu0
      %v409 = vpop.trf.xlu0
      %v410 = vpop.trf.xlu0
      %411 = vxpose.xlu0.c.b16.start [1/8] %v358, 128
      %412 = vxpose.xlu0.c.b16.cont [2/8] 0, 128
      %413 = vxpose.xlu0.c.b16.cont [3/8] 0, 128
      %414 = vxpose.xlu0.c.b16.cont [4/8] 0, 128
      %415 = vxpose.xlu0.c.b16.cont [5/8] 0, 128
      %416 = vxpose.xlu0.c.b16.cont [6/8] 0, 128
      %417 = vxpose.xlu0.c.b16.cont [7/8] 0, 128
      %418 = vxpose.xlu0.c.b16.end [8/8] 0, 128
      %v419 = vpop.trf.xlu0
      %v420 = vpop.trf.xlu0
      %v421 = vpop.trf.xlu0
      %v422 = vpop.trf.xlu0
      %v423 = vpop.trf.xlu0
      %v424 = vpop.trf.xlu0
      %v425 = vpop.trf.xlu0
      %v426 = vpop.trf.xlu0
      %vm427 = vcmask 64512
      %v429 = vsel %vm427, %v343, 0
      %vm431 = vcmask 1043456
      %v433 = vsel %vm431, %v371, 0
      %435 = vmatprep.subr.bf16.mxu0 0
      %436 = vmatpush1.bf16.msra.mxu0 %v433
      %437 = vmatprep.subr.bf16.mxu0 0
      %438 = vmatpush1.bf16.msra.mxu0 0
      %439 = vmatprep.subr.bf16.mxu0 0
      %440 = vmatpush1.bf16.msra.mxu0 0
      %441 = vmatprep.subr.bf16.mxu0 0
      %442 = vmatpush1.bf16.msra.mxu0 0
      %443 = vmatprep.subr.bf16.mxu0 0
      %444 = vmatpush1.bf16.msra.mxu0 0
      %445 = vmatprep.subr.bf16.mxu0 0
      %446 = vmatpush1.bf16.msra.mxu0 0
      %447 = vmatprep.subr.bf16.mxu0 0
      %448 = vmatpush1.bf16.msra.mxu0 0
      %449 = vmatprep.subr.bf16.mxu0 0
      %450 = vmatpush1.bf16.msra.mxu0 0
      %451 = vmatprep.subr.bf16.mxu0 0
      %452 = vmatpush1.bf16.msra.mxu0 0
      %453 = vmatprep.subr.bf16.mxu0 0
      %454 = vmatpush1.bf16.msra.mxu0 0
      %455 = vmatprep.subr.bf16.mxu0 0
      %456 = vmatpush1.bf16.msra.mxu0 0
      %457 = vmatprep.subr.bf16.mxu0 0
      %458 = vmatpush1.bf16.msra.mxu0 0
      %459 = vmatprep.subr.bf16.mxu0 0
      %460 = vmatpush1.bf16.msra.mxu0 0
      %461 = vmatprep.subr.bf16.mxu0 0
      %462 = vmatpush1.bf16.msra.mxu0 0
      %463 = vmatprep.subr.bf16.mxu0 0
      %464 = vmatpush1.bf16.msra.mxu0 0
      %465 = vmatprep.subr.bf16.mxu0 0
      %466 = vmatpush1.bf16.msra.mxu0 0
      %467 = vmatprep.mubr.bf16.mxu0 0
      %468 = vmatmul.mubr.bf16.gmra.mrb[0].mxu0 %v429
      %v469 = vpop.f32.mrb[0].mxu0
      %v470 = vadd.f32 0.0, %v469
      %v471 = vpop.f32.mrb[0].mxu0
      %v472 = vpop.f32.mrb[0].mxu0
      %v473 = vpop.f32.mrb[0].mxu0
      %474 = vdwg.mxu0
      %v476 = vsel %vm427, %v346, 0
      %v479 = vsel %vm431, %v387, 0
      %481 = vmatprep.subr.bf16.mxu0 0
      %482 = vmatpush1.bf16.msra.mxu0 %v479
      %483 = vmatprep.subr.bf16.mxu0 0
      %484 = vmatpush1.bf16.msra.mxu0 0
      %485 = vmatprep.subr.bf16.mxu0 0
      %486 = vmatpush1.bf16.msra.mxu0 0
      %487 = vmatprep.subr.bf16.mxu0 0
      %488 = vmatpush1.bf16.msra.mxu0 0
      %489 = vmatprep.subr.bf16.mxu0 0
      %490 = vmatpush1.bf16.msra.mxu0 0
      %491 = vmatprep.subr.bf16.mxu0 0
      %492 = vmatpush1.bf16.msra.mxu0 0
      %493 = vmatprep.subr.bf16.mxu0 0
      %494 = vmatpush1.bf16.msra.mxu0 0
      %495 = vmatprep.subr.bf16.mxu0 0
      %496 = vmatpush1.bf16.msra.mxu0 0
      %497 = vmatprep.subr.bf16.mxu0 0
      %498 = vmatpush1.bf16.msra.mxu0 0
      %499 = vmatprep.subr.bf16.mxu0 0
      %500 = vmatpush1.bf16.msra.mxu0 0
      %501 = vmatprep.subr.bf16.mxu0 0
      %502 = vmatpush1.bf16.msra.mxu0 0
      %503 = vmatprep.subr.bf16.mxu0 0
      %504 = vmatpush1.bf16.msra.mxu0 0
      %505 = vmatprep.subr.bf16.mxu0 0
      %506 = vmatpush1.bf16.msra.mxu0 0
      %507 = vmatprep.subr.bf16.mxu0 0
      %508 = vmatpush1.bf16.msra.mxu0 0
      %509 = vmatprep.subr.bf16.mxu0 0
      %510 = vmatpush1.bf16.msra.mxu0 0
      %511 = vmatprep.subr.bf16.mxu0 0
      %512 = vmatpush1.bf16.msra.mxu0 0
      %513 = vmatprep.mubr.bf16.mxu0 0
      %514 = vmatmul.mubr.bf16.gmra.mrb[0].mxu0 %v476
      %v515 = vpop.f32.mrb[0].mxu0
      %v516 = vadd.f32 0.0, %v515
      %v517 = vpop.f32.mrb[0].mxu0
      %v518 = vpop.f32.mrb[0].mxu0
      %v519 = vpop.f32.mrb[0].mxu0
      %520 = vdwg.mxu0
      %v522 = vsel %vm427, %v348, 0
      %v525 = vsel %vm431, %v403, 0
      %527 = vmatprep.subr.bf16.mxu0 0
      %528 = vmatpush1.bf16.msra.mxu0 %v525
      %529 = vmatprep.subr.bf16.mxu0 0
      %530 = vmatpush1.bf16.msra.mxu0 0
      %531 = vmatprep.subr.bf16.mxu0 0
      %532 = vmatpush1.bf16.msra.mxu0 0
      %533 = vmatprep.subr.bf16.mxu0 0
      %534 = vmatpush1.bf16.msra.mxu0 0
      %535 = vmatprep.subr.bf16.mxu0 0
      %536 = vmatpush1.bf16.msra.mxu0 0
      %537 = vmatprep.subr.bf16.mxu0 0
      %538 = vmatpush1.bf16.msra.mxu0 0
      %539 = vmatprep.subr.bf16.mxu0 0
      %540 = vmatpush1.bf16.msra.mxu0 0
      %541 = vmatprep.subr.bf16.mxu0 0
      %542 = vmatpush1.bf16.msra.mxu0 0
      %543 = vmatprep.subr.bf16.mxu0 0
      %544 = vmatpush1.bf16.msra.mxu0 0
      %545 = vmatprep.subr.bf16.mxu0 0
      %546 = vmatpush1.bf16.msra.mxu0 0
      %547 = vmatprep.subr.bf16.mxu0 0
      %548 = vmatpush1.bf16.msra.mxu0 0
      %549 = vmatprep.subr.bf16.mxu0 0
      %550 = vmatpush1.bf16.msra.mxu0 0
      %551 = vmatprep.subr.bf16.mxu0 0
      %552 = vmatpush1.bf16.msra.mxu0 0
      %553 = vmatprep.subr.bf16.mxu0 0
      %554 = vmatpush1.bf16.msra.mxu0 0
      %555 = vmatprep.subr.bf16.mxu0 0
      %556 = vmatpush1.bf16.msra.mxu0 0
      %557 = vmatprep.subr.bf16.mxu0 0
      %558 = vmatpush1.bf16.msra.mxu0 0
      %559 = vmatprep.mubr.bf16.mxu0 0
      %560 = vmatmul.mubr.bf16.gmra.mrb[0].mxu0 %v522
      %v561 = vpop.f32.mrb[0].mxu0
      %v562 = vadd.f32 0.0, %v561
      %v563 = vpop.f32.mrb[0].mxu0
      %v564 = vpop.f32.mrb[0].mxu0
      %v565 = vpop.f32.mrb[0].mxu0
      %566 = vdwg.mxu0
      %v568 = vsel %vm427, %v350, 0
      %v571 = vsel %vm431, %v419, 0
      %573 = vmatprep.subr.bf16.mxu0 0
      %574 = vmatpush1.bf16.msra.mxu0 %v571
      %575 = vmatprep.subr.bf16.mxu0 0
      %576 = vmatpush1.bf16.msra.mxu0 0
      %577 = vmatprep.subr.bf16.mxu0 0
      %578 = vmatpush1.bf16.msra.mxu0 0
      %579 = vmatprep.subr.bf16.mxu0 0
      %580 = vmatpush1.bf16.msra.mxu0 0
      %581 = vmatprep.subr.bf16.mxu0 0
      %582 = vmatpush1.bf16.msra.mxu0 0
      %583 = vmatprep.subr.bf16.mxu0 0
      %584 = vmatpush1.bf16.msra.mxu0 0
      %585 = vmatprep.subr.bf16.mxu0 0
      %586 = vmatpush1.bf16.msra.mxu0 0
      %587 = vmatprep.subr.bf16.mxu0 0
      %588 = vmatpush1.bf16.msra.mxu0 0
      %589 = vmatprep.subr.bf16.mxu0 0
      %590 = vmatpush1.bf16.msra.mxu0 0
      %591 = vmatprep.subr.bf16.mxu0 0
      %592 = vmatpush1.bf16.msra.mxu0 0
      %593 = vmatprep.subr.bf16.mxu0 0
      %594 = vmatpush1.bf16.msra.mxu0 0
      %595 = vmatprep.subr.bf16.mxu0 0
      %596 = vmatpush1.bf16.msra.mxu0 0
      %597 = vmatprep.subr.bf16.mxu0 0
      %598 = vmatpush1.bf16.msra.mxu0 0
      %599 = vmatprep.subr.bf16.mxu0 0
      %600 = vmatpush1.bf16.msra.mxu0 0
      %601 = vmatprep.subr.bf16.mxu0 0
      %602 = vmatpush1.bf16.msra.mxu0 0
      %603 = vmatprep.subr.bf16.mxu0 0
      %604 = vmatpush1.bf16.msra.mxu0 0
      %605 = vmatprep.mubr.bf16.mxu0 0
      %606 = vmatmul.mubr.bf16.gmra.mrb[0].mxu0 %v568
      %v607 = vpop.f32.mrb[0].mxu0
      %v608 = vadd.f32 0.0, %v607
      %v609 = vpop.f32.mrb[0].mxu0
      %v610 = vpop.f32.mrb[0].mxu0
      %v611 = vpop.f32.mrb[0].mxu0
      %612 = vdwg.mxu0
      %v613 = vmul.f32 %v470, 0.35355338
      %v614 = vmul.f32 %v516, 0.35355338
      %v615 = vmul.f32 %v562, 0.35355338
      %v616 = vmul.f32 %v608, 0.35355338
      %v617 = vsel %vm427, %v613, -inf
      %618 = vmax.xlane.f32.xlu0 %v617
      %v619 = vpop.xlane.xlu0 %618
      %v620 = vsel %vm427, %v614, -inf
      %621 = vmax.xlane.f32.xlu0 %v620
      %v622 = vpop.xlane.xlu0 %621
      %v623 = vsel %vm427, %v615, -inf
      %624 = vmax.xlane.f32.xlu0 %v623
      %v625 = vpop.xlane.xlu0 %624
      %v626 = vsel %vm427, %v616, -inf
      %627 = vmax.xlane.f32.xlu0 %v626
      %v628 = vpop.xlane.xlu0 %627
      %v629 = vsub.f32 %v613, %v619
      %v630 = vsub.f32 %v614, %v622
      %v631 = vsub.f32 %v615, %v625
      %v632 = vsub.f32 %v616, %v628
      %v633 = vmul.f32 %v629, 1.442695
      %v634 = vpow.pop %v633
      %v635 = vmul.f32 %v630, 1.442695
      %v636 = vpow.pop %v635
      %v637 = vmul.f32 %v631, 1.442695
      %v638 = vpow.pop %v637
      %v639 = vmul.f32 %v632, 1.442695
      %v640 = vpow.pop %v639
      %v641 = vsel %vm427, %v634, 0.0
      %642 = vadd.xlane.f32.xlu0 %v641
      %v643 = vpop.xlane.xlu0 %642
      %v644 = vsel %vm427, %v636, 0.0
      %645 = vadd.xlane.f32.xlu0 %v644
      %v646 = vpop.xlane.xlu0 %645
      %v647 = vsel %vm427, %v638, 0.0
      %648 = vadd.xlane.f32.xlu0 %v647
      %v649 = vpop.xlane.xlu0 %648
      %v650 = vsel %vm427, %v640, 0.0
      %651 = vadd.xlane.f32.xlu0 %v650
      %v652 = vpop.xlane.xlu0 %651
      %v653 = vrcp.pop %v643
      %v654 = vrcp.pop %v646
      %v655 = vrcp.pop %v649
      %v656 = vrcp.pop %v652
      %v657 = vmul.f32 %v634, %v653
      %v658 = vmul.f32 %v636, %v654
      %v659 = vmul.f32 %v638, %v655
      %v660 = vmul.f32 %v640, %v656
      %v661 = vpack.c.bf16 %v657, %v657
      %v662 = vpack.c.bf16 %v658, %v658
      %v663 = vpack.c.bf16 %v659, %v659
      %v664 = vpack.c.bf16 %v660, %v660
      %665 = vrot.lane.b32.xlu0 %v343, 64
      %v666 = vpop.permute.xlu0 %665
      %667 = vrot.lane.b32.xlu0 %v346, 64
      %v668 = vpop.permute.xlu0 %667
      %669 = vrot.lane.b32.xlu0 %v348, 64
      %v670 = vpop.permute.xlu0 %669
      %671 = vrot.lane.b32.xlu0 %v350, 64
      %v672 = vpop.permute.xlu0 %671
      %677 = vxpose.xlu0.c.b16.start [1/8] %v666, 128
      %678 = vxpose.xlu0.c.b16.cont [2/8] 0, 128
      %679 = vxpose.xlu0.c.b16.cont [3/8] 0, 128
      %680 = vxpose.xlu0.c.b16.cont [4/8] 0, 128
      %681 = vxpose.xlu0.c.b16.cont [5/8] 0, 128
      %682 = vxpose.xlu0.c.b16.cont [6/8] 0, 128
      %683 = vxpose.xlu0.c.b16.cont [7/8] 0, 128
      %684 = vxpose.xlu0.c.b16.end [8/8] 0, 128
      %v685 = vpop.trf.xlu0
      %v686 = vpop.trf.xlu0
      %v687 = vpop.trf.xlu0
      %v688 = vpop.trf.xlu0
      %v689 = vpop.trf.xlu0
      %v690 = vpop.trf.xlu0
      %v691 = vpop.trf.xlu0
      %v692 = vpop.trf.xlu0
      %693 = vxpose.xlu0.c.b16.start [1/8] %v668, 128
      %694 = vxpose.xlu0.c.b16.cont [2/8] 0, 128
      %695 = vxpose.xlu0.c.b16.cont [3/8] 0, 128
      %696 = vxpose.xlu0.c.b16.cont [4/8] 0, 128
      %697 = vxpose.xlu0.c.b16.cont [5/8] 0, 128
      %698 = vxpose.xlu0.c.b16.cont [6/8] 0, 128
      %699 = vxpose.xlu0.c.b16.cont [7/8] 0, 128
      %700 = vxpose.xlu0.c.b16.end [8/8] 0, 128
      %v701 = vpop.trf.xlu0
      %v702 = vpop.trf.xlu0
      %v703 = vpop.trf.xlu0
      %v704 = vpop.trf.xlu0
      %v705 = vpop.trf.xlu0
      %v706 = vpop.trf.xlu0
      %v707 = vpop.trf.xlu0
      %v708 = vpop.trf.xlu0
      %709 = vxpose.xlu0.c.b16.start [1/8] %v670, 128
      %710 = vxpose.xlu0.c.b16.cont [2/8] 0, 128
      %711 = vxpose.xlu0.c.b16.cont [3/8] 0, 128
      %712 = vxpose.xlu0.c.b16.cont [4/8] 0, 128
      %713 = vxpose.xlu0.c.b16.cont [5/8] 0, 128
      %714 = vxpose.xlu0.c.b16.cont [6/8] 0, 128
      %715 = vxpose.xlu0.c.b16.cont [7/8] 0, 128
      %716 = vxpose.xlu0.c.b16.end [8/8] 0, 128
      %v717 = vpop.trf.xlu0
      %v718 = vpop.trf.xlu0
      %v719 = vpop.trf.xlu0
      %v720 = vpop.trf.xlu0
      %v721 = vpop.trf.xlu0
      %v722 = vpop.trf.xlu0
      %v723 = vpop.trf.xlu0
      %v724 = vpop.trf.xlu0
      %725 = vxpose.xlu0.c.b16.start [1/8] %v672, 128
      %726 = vxpose.xlu0.c.b16.cont [2/8] 0, 128
      %727 = vxpose.xlu0.c.b16.cont [3/8] 0, 128
      %728 = vxpose.xlu0.c.b16.cont [4/8] 0, 128
      %729 = vxpose.xlu0.c.b16.cont [5/8] 0, 128
      %730 = vxpose.xlu0.c.b16.cont [6/8] 0, 128
      %731 = vxpose.xlu0.c.b16.cont [7/8] 0, 128
      %732 = vxpose.xlu0.c.b16.end [8/8] 0, 128
      %v733 = vpop.trf.xlu0
      %v734 = vpop.trf.xlu0
      %v735 = vpop.trf.xlu0
      %v736 = vpop.trf.xlu0
      %v737 = vpop.trf.xlu0
      %v738 = vpop.trf.xlu0
      %v739 = vpop.trf.xlu0
      %v740 = vpop.trf.xlu0
      %v742 = vsel %vm427, %v685, 0
      %v745 = vsel %vm427, %v661, 0
      %747 = vmatprep.subr.bf16.mxu0 0
      %748 = vmatpush1.bf16.xpose.msra.mxu0 %v745
      %749 = vmatprep.subr.bf16.mxu0 0
      %750 = vmatpush1.bf16.xpose.msra.mxu0 0
      %751 = vmatprep.subr.bf16.mxu0 0
      %752 = vmatpush1.bf16.xpose.msra.mxu0 0
      %753 = vmatprep.subr.bf16.mxu0 0
      %754 = vmatpush1.bf16.xpose.msra.mxu0 0
      %755 = vmatprep.subr.bf16.mxu0 0
      %756 = vmatpush1.bf16.xpose.msra.mxu0 0
      %757 = vmatprep.subr.bf16.mxu0 0
      %758 = vmatpush1.bf16.xpose.msra.mxu0 0
      %759 = vmatprep.subr.bf16.mxu0 0
      %760 = vmatpush1.bf16.xpose.msra.mxu0 0
      %761 = vmatprep.subr.bf16.mxu0 0
      %762 = vmatpush1.bf16.xpose.msra.mxu0 0
      %763 = vmatprep.subr.bf16.mxu0 0
      %764 = vmatpush1.bf16.xpose.msra.mxu0 0
      %765 = vmatprep.subr.bf16.mxu0 0
      %766 = vmatpush1.bf16.xpose.msra.mxu0 0
      %767 = vmatprep.subr.bf16.mxu0 0
      %768 = vmatpush1.bf16.xpose.msra.mxu0 0
      %769 = vmatprep.subr.bf16.mxu0 0
      %770 = vmatpush1.bf16.xpose.msra.mxu0 0
      %771 = vmatprep.subr.bf16.mxu0 0
      %772 = vmatpush1.bf16.xpose.msra.mxu0 0
      %773 = vmatprep.subr.bf16.mxu0 0
      %774 = vmatpush1.bf16.xpose.msra.mxu0 0
      %775 = vmatprep.subr.bf16.mxu0 0
      %776 = vmatpush1.bf16.xpose.msra.mxu0 0
      %777 = vmatprep.subr.bf16.mxu0 0
      %778 = vmatpush1.bf16.xpose.msra.mxu0 0
      %779 = vmatprep.mubr.bf16.mxu0 0
      %780 = vmatmul.mubr.bf16.gmra.mrb[0].mxu0 %v742
      %v781 = vpop.f32.mrb[0].mxu0
      %v782 = vadd.f32 0.0, %v781
      %v783 = vpop.f32.mrb[0].mxu0
      %v784 = vpop.f32.mrb[0].mxu0
      %v785 = vpop.f32.mrb[0].mxu0
      %786 = vdwg.mxu0
      %v788 = vsel %vm427, %v701, 0
      %v791 = vsel %vm427, %v662, 0
      %793 = vmatprep.subr.bf16.mxu0 0
      %794 = vmatpush1.bf16.xpose.msra.mxu0 %v791
      %795 = vmatprep.subr.bf16.mxu0 0
      %796 = vmatpush1.bf16.xpose.msra.mxu0 0
      %797 = vmatprep.subr.bf16.mxu0 0
      %798 = vmatpush1.bf16.xpose.msra.mxu0 0
      %799 = vmatprep.subr.bf16.mxu0 0
      %800 = vmatpush1.bf16.xpose.msra.mxu0 0
      %801 = vmatprep.subr.bf16.mxu0 0
      %802 = vmatpush1.bf16.xpose.msra.mxu0 0
      %803 = vmatprep.subr.bf16.mxu0 0
      %804 = vmatpush1.bf16.xpose.msra.mxu0 0
      %805 = vmatprep.subr.bf16.mxu0 0
      %806 = vmatpush1.bf16.xpose.msra.mxu0 0
      %807 = vmatprep.subr.bf16.mxu0 0
      %808 = vmatpush1.bf16.xpose.msra.mxu0 0
      %809 = vmatprep.subr.bf16.mxu0 0
      %810 = vmatpush1.bf16.xpose.msra.mxu0 0
      %811 = vmatprep.subr.bf16.mxu0 0
      %812 = vmatpush1.bf16.xpose.msra.mxu0 0
      %813 = vmatprep.subr.bf16.mxu0 0
      %814 = vmatpush1.bf16.xpose.msra.mxu0 0
      %815 = vmatprep.subr.bf16.mxu0 0
      %816 = vmatpush1.bf16.xpose.msra.mxu0 0
      %817 = vmatprep.subr.bf16.mxu0 0
      %818 = vmatpush1.bf16.xpose.msra.mxu0 0
      %819 = vmatprep.subr.bf16.mxu0 0
      %820 = vmatpush1.bf16.xpose.msra.mxu0 0
      %821 = vmatprep.subr.bf16.mxu0 0
      %822 = vmatpush1.bf16.xpose.msra.mxu0 0
      %823 = vmatprep.subr.bf16.mxu0 0
      %824 = vmatpush1.bf16.xpose.msra.mxu0 0
      %825 = vmatprep.mubr.bf16.mxu0 0
      %826 = vmatmul.mubr.bf16.gmra.mrb[0].mxu0 %v788
      %v827 = vpop.f32.mrb[0].mxu0
      %v828 = vadd.f32 0.0, %v827
      %v829 = vpop.f32.mrb[0].mxu0
      %v830 = vpop.f32.mrb[0].mxu0
      %v831 = vpop.f32.mrb[0].mxu0
      %832 = vdwg.mxu0
      %v834 = vsel %vm427, %v717, 0
      %v837 = vsel %vm427, %v663, 0
      %839 = vmatprep.subr.bf16.mxu0 0
      %840 = vmatpush1.bf16.xpose.msra.mxu0 %v837
      %841 = vmatprep.subr.bf16.mxu0 0
      %842 = vmatpush1.bf16.xpose.msra.mxu0 0
      %843 = vmatprep.subr.bf16.mxu0 0
      %844 = vmatpush1.bf16.xpose.msra.mxu0 0
      %845 = vmatprep.subr.bf16.mxu0 0
      %846 = vmatpush1.bf16.xpose.msra.mxu0 0
      %847 = vmatprep.subr.bf16.mxu0 0
      %848 = vmatpush1.bf16.xpose.msra.mxu0 0
      %849 = vmatprep.subr.bf16.mxu0 0
      %850 = vmatpush1.bf16.xpose.msra.mxu0 0
      %851 = vmatprep.subr.bf16.mxu0 0
      %852 = vmatpush1.bf16.xpose.msra.mxu0 0
      %853 = vmatprep.subr.bf16.mxu0 0
      %854 = vmatpush1.bf16.xpose.msra.mxu0 0
      %855 = vmatprep.subr.bf16.mxu0 0
      %856 = vmatpush1.bf16.xpose.msra.mxu0 0
      %857 = vmatprep.subr.bf16.mxu0 0
      %858 = vmatpush1.bf16.xpose.msra.mxu0 0
      %859 = vmatprep.subr.bf16.mxu0 0
      %860 = vmatpush1.bf16.xpose.msra.mxu0 0
      %861 = vmatprep.subr.bf16.mxu0 0
      %862 = vmatpush1.bf16.xpose.msra.mxu0 0
      %863 = vmatprep.subr.bf16.mxu0 0
      %864 = vmatpush1.bf16.xpose.msra.mxu0 0
      %865 = vmatprep.subr.bf16.mxu0 0
      %866 = vmatpush1.bf16.xpose.msra.mxu0 0
      %867 = vmatprep.subr.bf16.mxu0 0
      %868 = vmatpush1.bf16.xpose.msra.mxu0 0
      %869 = vmatprep.subr.bf16.mxu0 0
      %870 = vmatpush1.bf16.xpose.msra.mxu0 0
      %871 = vmatprep.mubr.bf16.mxu0 0
      %872 = vmatmul.mubr.bf16.gmra.mrb[0].mxu0 %v834
      %v873 = vpop.f32.mrb[0].mxu0
      %v874 = vadd.f32 0.0, %v873
      %v875 = vpop.f32.mrb[0].mxu0
      %v876 = vpop.f32.mrb[0].mxu0
      %v877 = vpop.f32.mrb[0].mxu0
      %878 = vdwg.mxu0
      %v880 = vsel %vm427, %v733, 0
      %v883 = vsel %vm427, %v664, 0
      %885 = vmatprep.subr.bf16.mxu0 0
      %886 = vmatpush1.bf16.xpose.msra.mxu0 %v883
      %887 = vmatprep.subr.bf16.mxu0 0
      %888 = vmatpush1.bf16.xpose.msra.mxu0 0
      %889 = vmatprep.subr.bf16.mxu0 0
      %890 = vmatpush1.bf16.xpose.msra.mxu0 0
      %891 = vmatprep.subr.bf16.mxu0 0
      %892 = vmatpush1.bf16.xpose.msra.mxu0 0
      %893 = vmatprep.subr.bf16.mxu0 0
      %894 = vmatpush1.bf16.xpose.msra.mxu0 0
      %895 = vmatprep.subr.bf16.mxu0 0
      %896 = vmatpush1.bf16.xpose.msra.mxu0 0
      %897 = vmatprep.subr.bf16.mxu0 0
      %898 = vmatpush1.bf16.xpose.msra.mxu0 0
      %899 = vmatprep.subr.bf16.mxu0 0
      %900 = vmatpush1.bf16.xpose.msra.mxu0 0
      %901 = vmatprep.subr.bf16.mxu0 0
      %902 = vmatpush1.bf16.xpose.msra.mxu0 0
      %903 = vmatprep.subr.bf16.mxu0 0
      %904 = vmatpush1.bf16.xpose.msra.mxu0 0
      %905 = vmatprep.subr.bf16.mxu0 0
      %906 = vmatpush1.bf16.xpose.msra.mxu0 0
      %907 = vmatprep.subr.bf16.mxu0 0
      %908 = vmatpush1.bf16.xpose.msra.mxu0 0
      %909 = vmatprep.subr.bf16.mxu0 0
      %910 = vmatpush1.bf16.xpose.msra.mxu0 0
      %911 = vmatprep.subr.bf16.mxu0 0
      %912 = vmatpush1.bf16.xpose.msra.mxu0 0
      %913 = vmatprep.subr.bf16.mxu0 0
      %914 = vmatpush1.bf16.xpose.msra.mxu0 0
      %915 = vmatprep.subr.bf16.mxu0 0
      %916 = vmatpush1.bf16.xpose.msra.mxu0 0
      %917 = vmatprep.mubr.bf16.mxu0 0
      %918 = vmatmul.mubr.bf16.gmra.mrb[0].mxu0 %v880
      %v919 = vpop.f32.mrb[0].mxu0
      %v920 = vadd.f32 0.0, %v919
      %v921 = vpop.f32.mrb[0].mxu0
      %v922 = vpop.f32.mrb[0].mxu0
      %v923 = vpop.f32.mrb[0].mxu0
      %924 = vdwg.mxu0
      %925 = vxpose.xlu0.b32.start [1/16] %v782, 128
      %926 = vxpose.xlu0.b32.cont [2/16] 0.0, 128
      %927 = vxpose.xlu0.b32.cont [3/16] 0.0, 128
      %928 = vxpose.xlu0.b32.cont [4/16] 0.0, 128
      %929 = vxpose.xlu0.b32.cont [5/16] 0.0, 128
      %930 = vxpose.xlu0.b32.cont [6/16] 0.0, 128
      %931 = vxpose.xlu0.b32.cont [7/16] 0.0, 128
      %932 = vxpose.xlu0.b32.cont [8/16] 0.0, 128
      %933 = vxpose.xlu0.b32.cont [9/16] 0.0, 128
      %934 = vxpose.xlu0.b32.cont [10/16] 0.0, 128
      %935 = vxpose.xlu0.b32.cont [11/16] 0.0, 128
      %936 = vxpose.xlu0.b32.cont [12/16] 0.0, 128
      %937 = vxpose.xlu0.b32.cont [13/16] 0.0, 128
      %938 = vxpose.xlu0.b32.cont [14/16] 0.0, 128
      %939 = vxpose.xlu0.b32.cont [15/16] 0.0, 128
      %940 = vxpose.xlu0.b32.end [16/16] 0.0, 128
      %v941 = vpop.trf.xlu0
      %v942 = vpop.trf.xlu0
      %v943 = vpop.trf.xlu0
      %v944 = vpop.trf.xlu0
      %v945 = vpop.trf.xlu0
      %v946 = vpop.trf.xlu0
      %v947 = vpop.trf.xlu0
      %v948 = vpop.trf.xlu0
      %v949 = vpop.trf.xlu0
      %v950 = vpop.trf.xlu0
      %v951 = vpop.trf.xlu0
      %v952 = vpop.trf.xlu0
      %v953 = vpop.trf.xlu0
      %v954 = vpop.trf.xlu0
      %v955 = vpop.trf.xlu0
      %v956 = vpop.trf.xlu0
      %957 = vxpose.xlu0.b32.start [1/16] %v828, 128
      %958 = vxpose.xlu0.b32.cont [2/16] 0.0, 128
      %959 = vxpose.xlu0.b32.cont [3/16] 0.0, 128
      %960 = vxpose.xlu0.b32.cont [4/16] 0.0, 128
      %961 = vxpose.xlu0.b32.cont [5/16] 0.0, 128
      %962 = vxpose.xlu0.b32.cont [6/16] 0.0, 128
      %963 = vxpose.xlu0.b32.cont [7/16] 0.0, 128
      %964 = vxpose.xlu0.b32.cont [8/16] 0.0, 128
      %965 = vxpose.xlu0.b32.cont [9/16] 0.0, 128
      %966 = vxpose.xlu0.b32.cont [10/16] 0.0, 128
      %967 = vxpose.xlu0.b32.cont [11/16] 0.0, 128
      %968 = vxpose.xlu0.b32.cont [12/16] 0.0, 128
      %969 = vxpose.xlu0.b32.cont [13/16] 0.0, 128
      %970 = vxpose.xlu0.b32.cont [14/16] 0.0, 128
      %971 = vxpose.xlu0.b32.cont [15/16] 0.0, 128
      %972 = vxpose.xlu0.b32.end [16/16] 0.0, 128
      %v973 = vpop.trf.xlu0
      %v974 = vpop.trf.xlu0
      %v975 = vpop.trf.xlu0
      %v976 = vpop.trf.xlu0
      %v977 = vpop.trf.xlu0
      %v978 = vpop.trf.xlu0
      %v979 = vpop.trf.xlu0
      %v980 = vpop.trf.xlu0
      %v981 = vpop.trf.xlu0
      %v982 = vpop.trf.xlu0
      %v983 = vpop.trf.xlu0
      %v984 = vpop.trf.xlu0
      %v985 = vpop.trf.xlu0
      %v986 = vpop.trf.xlu0
      %v987 = vpop.trf.xlu0
      %v988 = vpop.trf.xlu0
      %989 = vxpose.xlu0.b32.start [1/16] %v874, 128
      %990 = vxpose.xlu0.b32.cont [2/16] 0.0, 128
      %991 = vxpose.xlu0.b32.cont [3/16] 0.0, 128
      %992 = vxpose.xlu0.b32.cont [4/16] 0.0, 128
      %993 = vxpose.xlu0.b32.cont [5/16] 0.0, 128
      %994 = vxpose.xlu0.b32.cont [6/16] 0.0, 128
      %995 = vxpose.xlu0.b32.cont [7/16] 0.0, 128
      %996 = vxpose.xlu0.b32.cont [8/16] 0.0, 128
      %997 = vxpose.xlu0.b32.cont [9/16] 0.0, 128
      %998 = vxpose.xlu0.b32.cont [10/16] 0.0, 128
      %999 = vxpose.xlu0.b32.cont [11/16] 0.0, 128
      %1000 = vxpose.xlu0.b32.cont [12/16] 0.0, 128
      %1001 = vxpose.xlu0.b32.cont [13/16] 0.0, 128
      %1002 = vxpose.xlu0.b32.cont [14/16] 0.0, 128
      %1003 = vxpose.xlu0.b32.cont [15/16] 0.0, 128
      %1004 = vxpose.xlu0.b32.end [16/16] 0.0, 128
      %v1005 = vpop.trf.xlu0
      %v1006 = vpop.trf.xlu0
      %v1007 = vpop.trf.xlu0
      %v1008 = vpop.trf.xlu0
      %v1009 = vpop.trf.xlu0
      %v1010 = vpop.trf.xlu0
      %v1011 = vpop.trf.xlu0
      %v1012 = vpop.trf.xlu0
      %v1013 = vpop.trf.xlu0
      %v1014 = vpop.trf.xlu0
      %v1015 = vpop.trf.xlu0
      %v1016 = vpop.trf.xlu0
      %v1017 = vpop.trf.xlu0
      %v1018 = vpop.trf.xlu0
      %v1019 = vpop.trf.xlu0
      %v1020 = vpop.trf.xlu0
      %1021 = vxpose.xlu0.b32.start [1/16] %v920, 128
      %1022 = vxpose.xlu0.b32.cont [2/16] 0.0, 128
      %1023 = vxpose.xlu0.b32.cont [3/16] 0.0, 128
      %1024 = vxpose.xlu0.b32.cont [4/16] 0.0, 128
      %1025 = vxpose.xlu0.b32.cont [5/16] 0.0, 128
      %1026 = vxpose.xlu0.b32.cont [6/16] 0.0, 128
      %1027 = vxpose.xlu0.b32.cont [7/16] 0.0, 128
      %1028 = vxpose.xlu0.b32.cont [8/16] 0.0, 128
      %1029 = vxpose.xlu0.b32.cont [9/16] 0.0, 128
      %1030 = vxpose.xlu0.b32.cont [10/16] 0.0, 128
      %1031 = vxpose.xlu0.b32.cont [11/16] 0.0, 128
      %1032 = vxpose.xlu0.b32.cont [12/16] 0.0, 128
      %1033 = vxpose.xlu0.b32.cont [13/16] 0.0, 128
      %1034 = vxpose.xlu0.b32.cont [14/16] 0.0, 128
      %1035 = vxpose.xlu0.b32.cont [15/16] 0.0, 128
      %1036 = vxpose.xlu0.b32.end [16/16] 0.0, 128
      %v1037 = vpop.trf.xlu0
      %v1038 = vpop.trf.xlu0
      %v1039 = vpop.trf.xlu0
      %v1040 = vpop.trf.xlu0
      %v1041 = vpop.trf.xlu0
      %v1042 = vpop.trf.xlu0
      %v1043 = vpop.trf.xlu0
      %v1044 = vpop.trf.xlu0
      %v1045 = vpop.trf.xlu0
      %v1046 = vpop.trf.xlu0
      %v1047 = vpop.trf.xlu0
      %v1048 = vpop.trf.xlu0
      %v1049 = vpop.trf.xlu0
      %v1050 = vpop.trf.xlu0
      %v1051 = vpop.trf.xlu0
      %v1052 = vpop.trf.xlu0
      %v1053 = vcombine.low %v941, %v1005
      %v1054 = vcombine.high %v941, %v1005
      %v1056 = vunpack.c.l.s4 1983009808
      %v1057 = vunpack.c.0.s8 %v1056
      %v1058 = vlaneseq
      %v1059 = vshrl.u32 %v1058, 7
      %v1060 = vsub.s32 %v1057, %v1059
      %v1061 = vrot.slane %v1053, %v1060
      %v1063 = vunpack.c.l.s4 1983009808
      %v1064 = vunpack.c.0.s8 %v1063
      %v1065 = vlaneseq
      %v1066 = vshrl.u32 %v1065, 7
      %v1067 = vsub.s32 %v1064, %v1066
      %v1068 = vrot.slane %v1054, %v1067
      %v1069 = vcombine.low %v973, %v1037
      %v1070 = vcombine.high %v973, %v1037
      %v1072 = vunpack.c.l.s4 1983009808
      %v1073 = vunpack.c.0.s8 %v1072
      %v1074 = vlaneseq
      %v1075 = vshrl.u32 %v1074, 7
      %v1076 = vsub.s32 %v1073, %v1075
      %v1077 = vrot.slane %v1069, %v1076
      %v1079 = vunpack.c.l.s4 1983009808
      %v1080 = vunpack.c.0.s8 %v1079
      %v1081 = vlaneseq
      %v1082 = vshrl.u32 %v1081, 7
      %v1083 = vsub.s32 %v1080, %v1082
      %v1084 = vrot.slane %v1070, %v1083
      %v1085 = vcombine.low %v1061, %v1077
      %v1086 = vcombine.high %v1061, %v1077
      %v1088 = vunpack.c.l.s4 1934713408
      %v1089 = vunpack.c.0.s8 %v1088
      %v1090 = vlaneseq
      %v1091 = vshrl.u32 %v1090, 7
      %v1092 = vsub.s32 %v1089, %v1091
      %v1093 = vrot.slane %v1085, %v1092
      %v1095 = vunpack.c.l.s4 1934713408
      %v1096 = vunpack.c.0.s8 %v1095
      %v1097 = vlaneseq
      %v1098 = vshrl.u32 %v1097, 7
      %v1099 = vsub.s32 %v1096, %v1098
      %v1100 = vrot.slane %v1086, %v1099
      %v1101 = vcombine.low %v1068, %v1084
      %v1102 = vcombine.high %v1068, %v1084
      %v1104 = vunpack.c.l.s4 1934713408
      %v1105 = vunpack.c.0.s8 %v1104
      %v1106 = vlaneseq
      %v1107 = vshrl.u32 %v1106, 7
      %v1108 = vsub.s32 %v1105, %v1107
      %v1109 = vrot.slane %v1101, %v1108
      %v1111 = vunpack.c.l.s4 1934713408
      %v1112 = vunpack.c.0.s8 %v1111
      %v1113 = vlaneseq
      %v1114 = vshrl.u32 %v1113, 7
      %v1115 = vsub.s32 %v1112, %v1114
      %v1116 = vrot.slane %v1102, %v1115
      %v1117 = vcombine.high %v1093, 0.0
      %v1118 = vcombine.high %v1100, 0.0
      %v1119 = vcombine.high %v1109, 0.0
      %v1120 = vcombine.high %v1116, 0.0
      %v1121 = vcombine.low %v1093, %v1100
      %v1123 = vunpack.c.l.s4 1983009808
      %v1124 = vunpack.c.0.s8 %v1123
      %v1125 = vlaneseq
      %v1126 = vshrl.u32 %v1125, 7
      %v1127 = vsub.s32 %v1124, %v1126
      %v1128 = vrot.slane %v1121, %v1127
      %v1129 = vcombine.low %v1117, %v1118
      %v1131 = vunpack.c.l.s4 1983009808
      %v1132 = vunpack.c.0.s8 %v1131
      %v1133 = vlaneseq
      %v1134 = vshrl.u32 %v1133, 7
      %v1135 = vsub.s32 %v1132, %v1134
      %v1136 = vrot.slane %v1129, %v1135
      %v1137 = vcombine.low %v1109, %v1116
      %v1139 = vunpack.c.l.s4 1983009808
      %v1140 = vunpack.c.0.s8 %v1139
      %v1141 = vlaneseq
      %v1142 = vshrl.u32 %v1141, 7
      %v1143 = vsub.s32 %v1140, %v1142
      %v1144 = vrot.slane %v1137, %v1143
      %v1145 = vcombine.low %v1119, %v1120
      %v1147 = vunpack.c.l.s4 1983009808
      %v1148 = vunpack.c.0.s8 %v1147
      %v1149 = vlaneseq
      %v1150 = vshrl.u32 %v1149, 7
      %v1151 = vsub.s32 %v1148, %v1150
      %v1152 = vrot.slane %v1145, %v1151
      %v1153 = vcombine.low %v1128, %v1136
      %v1154 = vcombine.high %v1128, %v1136
      %v1156 = vunpack.c.l.s4 1934713408
      %v1157 = vunpack.c.0.s8 %v1156
      %v1158 = vlaneseq
      %v1159 = vshrl.u32 %v1158, 7
      %v1160 = vsub.s32 %v1157, %v1159
      %v1161 = vrot.slane %v1153, %v1160
      %v1163 = vunpack.c.l.s4 1934713408
      %v1164 = vunpack.c.0.s8 %v1163
      %v1165 = vlaneseq
      %v1166 = vshrl.u32 %v1165, 7
      %v1167 = vsub.s32 %v1164, %v1166
      %v1168 = vrot.slane %v1154, %v1167
      %v1169 = vcombine.low %v1144, %v1152
      %v1170 = vcombine.high %v1144, %v1152
      %v1172 = vunpack.c.l.s4 1934713408
      %v1173 = vunpack.c.0.s8 %v1172
      %v1174 = vlaneseq
      %v1175 = vshrl.u32 %v1174, 7
      %v1176 = vsub.s32 %v1173, %v1175
      %v1177 = vrot.slane %v1169, %v1176
      %v1179 = vunpack.c.l.s4 1934713408
      %v1180 = vunpack.c.0.s8 %v1179
      %v1181 = vlaneseq
      %v1182 = vshrl.u32 %v1181, 7
      %v1183 = vsub.s32 %v1180, %v1182
      %v1184 = vrot.slane %v1170, %v1183
      %v1185 = vcombine.low %v1161, %v1177
      %v1186 = vcombine.high %v1161, %v1177
      %v1187 = vcombine.low %v1168, %v1184
      %v1188 = vcombine.high %v1168, %v1184
      %1190 = vrot.lane.b32.xlu0 %v1186, 8
      %v1191 = vpop.permute.xlu0 %1190
      %1194 = vrot.lane.b32.xlu0 %v1187, 16
      %v1195 = vpop.permute.xlu0 %1194
      %1198 = vrot.lane.b32.xlu0 %v1188, 24
      %v1199 = vpop.permute.xlu0 %1198
      %v1201 = vsel %vm427, %v1185, %v1191
      %vm1202 = vcmask 130048
      %v1203 = vsel %vm1202, %v1201, %v1195
      %vm1204 = vcmask 195584
      %v1205 = vsel %vm1204, %v1203, %v1199
      %v1206 = vpack.c.bf16 %v1205, %v1205
      %v1207 = vld [vmem:[%s3] sm:$0xf]
      %v1208 = vld [vmem:[%s3 + $0x4] sm:$0xf]
      %v1209 = vld [vmem:[%s3 + $0x8] sm:$0xf]
      %v1210 = vld [vmem:[%s3 + $0xc] sm:$0xf]
      %v1211 = vld [vmem:[%s4] sm:$0x1]
      %v1213 = vlaneseq
      %v1214 = vshrl.u32 %v1213, 7
      %v1215 = vsub.s32 0, %v1214
      %v1216 = vrot.slane %v1211, %v1215
      %v1222 = vunpack.c.l.b16 %v1207
      %v1223 = vunpack.c.l.b16 %v1208
      %v1224 = vunpack.c.l.b16 %v1209
      %v1225 = vunpack.c.l.b16 %v1210
      %v1226 = vpack.c.b16 %v1223, %v1222
      %v1227 = vpack.c.b16 %v1225, %v1224
      %v1231 = vsel %vm299, %v1206, 0
      %1233 = vmatprep.subr.bf16.mxu0 0
      %1234 = vmatpush1.bf16.msra.mxu0 %v1226
      %1235 = vmatprep.subr.bf16.mxu0 0
      %1236 = vmatpush1.bf16.msra.mxu0 %v1227
      %1237 = vmatprep.subr.bf16.mxu0 0
      %1238 = vmatpush1.bf16.msra.mxu0 0
      %1239 = vmatprep.subr.bf16.mxu0 0
      %1240 = vmatpush1.bf16.msra.mxu0 0
      %1241 = vmatprep.subr.bf16.mxu0 0
      %1242 = vmatpush1.bf16.msra.mxu0 0
      %1243 = vmatprep.subr.bf16.mxu0 0
      %1244 = vmatpush1.bf16.msra.mxu0 0
      %1245 = vmatprep.subr.bf16.mxu0 0
      %1246 = vmatpush1.bf16.msra.mxu0 0
      %1247 = vmatprep.subr.bf16.mxu0 0
      %1248 = vmatpush1.bf16.msra.mxu0 0
      %1249 = vmatprep.subr.bf16.mxu0 0
      %1250 = vmatpush1.bf16.msra.mxu0 0
      %1251 = vmatprep.subr.bf16.mxu0 0
      %1252 = vmatpush1.bf16.msra.mxu0 0
      %1253 = vmatprep.subr.bf16.mxu0 0
      %1254 = vmatpush1.bf16.msra.mxu0 0
      %1255 = vmatprep.subr.bf16.mxu0 0
      %1256 = vmatpush1.bf16.msra.mxu0 0
      %1257 = vmatprep.subr.bf16.mxu0 0
      %1258 = vmatpush1.bf16.msra.mxu0 0
      %1259 = vmatprep.subr.bf16.mxu0 0
      %1260 = vmatpush1.bf16.msra.mxu0 0
      %1261 = vmatprep.subr.bf16.mxu0 0
      %1262 = vmatpush1.bf16.msra.mxu0 0
      %1263 = vmatprep.subr.bf16.mxu0 0
      %1264 = vmatpush1.bf16.msra.mxu0 0
      %1265 = vmatprep.mubr.bf16.mxu0 0
      %1266 = vmatmul.mubr.bf16.gmra.mrb[0].mxu0 %v1231
      %v1267 = vpop.f32.mrb[0].mxu0
      %v1268 = vadd.f32 %v1216, %v1267
      %v1269 = vpop.f32.mrb[0].mxu0
      %v1270 = vpop.f32.mrb[0].mxu0
      %v1271 = vpop.f32.mrb[0].mxu0
      %1272 = vdwg.mxu0
      %v1273 = vunpack.c.l.bf16 %v275
      %v1274 = vadd.f32 %v1273, %v1268
      %v1275 = vld [vmem:[%s5] sm:$0x1]
      %v1276 = vld [vmem:[%s6] sm:$0x1]
      %v1277 = vsel %vm299, %v1274, 0.0
      %1278 = vadd.xlane.f32.xlu0 %v1277
      %v1279 = vpop.xlane.xlu0 %1278
      %v1280 = vrcp.pop 32.0
      %v1281 = vmul.f32 %v1279, %v1280
      %v1282 = vsub.f32 %v1274, %v1281
      %v1283 = vmul.f32 %v1282, %v1282
      %v1284 = vsel %vm299, %v1283, 0.0
      %1285 = vadd.xlane.f32.xlu0 %v1284
      %v1286 = vpop.xlane.xlu0 %1285
      %v1287 = vmul.f32 %v1286, %v1280
      %v1288 = vadd.f32 %v1287, 1e-12
      %v1289 = vrsqrt.pop %v1288
      %v1290 = vmul.f32 %v1282, %v1289
      %v1292 = vlaneseq
      %v1293 = vshrl.u32 %v1292, 7
      %v1294 = vsub.s32 0, %v1293
      %v1295 = vrot.slane %v1275, %v1294
      %v1297 = vmul.f32 %v1290, %v1295
      %v1299 = vlaneseq
      %v1300 = vshrl.u32 %v1299, 7
      %v1301 = vsub.s32 0, %v1300
      %v1302 = vrot.slane %v1276, %v1301
      %v1304 = vadd.f32 %v1297, %v1302
      %v1305 = vpack.c.bf16 %v1304, %v1304
      %vm1306 = vcmask 257024
      %1307 = vst.msk [vmem:[%s273] sm:$0xf] %vm1306, %v1305
      %p1308 = scmp.lt.s32.totalorder %s18, 1
      %s1309 = scalar_select %p1308, %s18, 1
      %s1310 = smul.addr %s1309, 4
      %s1311 = scalar_lea.vmem %s7, %s1310
      // Predicated region
      $region49: #{task_prediction_obj_target.7} parent=47 // pred_check
        %p1312 = pneg %p188
      $region50: #{task_prediction_obj_target.7} parent=47 // pred_check_branch
        %1314 = sbr.rel (%p1312) target = $region52
      $region51: #{task_prediction_obj_target.7} parent=47 // pred_region
        _
      $region52: #{task_prediction_obj_target.7} parent=47 // pred_fallthru
        _
    $region48: #{task_prediction_obj_target.7} parent=5 // pred_fallthru
      _
    %p1315 = scmp.le.s32.totalorder 2, %s13
    // Predicated region
    $region53: #{task_prediction_obj_target.7} parent=5 // pred_check
      %p1316 = pneg %p1315
    $region54: #{task_prediction_obj_target.7} parent=5 // pred_check_branch
      %1318 = sbr.rel (%p1316) target = $region56
    $region55: #{task_prediction_obj_target.7} parent=5 // pred_region
      %s1319 = ssub.s32 %s13, 2
      // Predicated region
      $region57: #{task_prediction_obj_target.7} parent=55 // pred_check
        %p1320 = pneg %p194
      $region58: #{task_prediction_obj_target.7} parent=55 // pred_check_branch
        %1322 = sbr.rel (%p1320) target = $region60
      $region59: #{task_prediction_obj_target.7} parent=55 // pred_region
        %p1323 = scmp.lt.s32.totalorder %s19, 1
        %s1324 = scalar_select %p1323, %s19, 1
        %s1325 = smul.addr %s1324, 4
        %s1326 = scalar_lea.vmem %s7, %s1325
      $region60: #{task_prediction_obj_target.7} parent=55 // pred_fallthru
        _
    $region56: #{task_prediction_obj_target.7} parent=5 // pred_fallthru
      _
  $region6: #{task_prediction_obj_target.7} parent=0 // loop_footer
    %s17 = sadd.s32 1, %s13
  $region7: #{task_prediction_obj_target.7} parent=0 // loop_footer_branch
    %12 = sbr.rel target = $region3
  $region8: #{task_prediction_obj_target.7} parent=0 // loop_exit
    _

</llo_original>
